<compile_context>
chip_gen: v7x
topology: tpu7x:2x2x1
jax: 0.10.0
libtpu: 0.0.40
codegen_flags: <defaults>
</compile_context>

<pallas_src>
import functools

import jax
import jax.numpy as jnp
from jax import lax
from jax.experimental import pallas as pl
from jax.experimental.pallas import tpu as pltpu

LANE = 128


def _round_up(n, m):
    return ((n + m - 1) // m) * m


def lstm_model_kernel(
    x_ref,       # (T, B, I)     full sequence, time-major, f32
    w_ih0_ref,   # (I, 4*Hp)     layer-0 input weights (gate-padded), f32 (VPU operand)
    b0_ref,      # (1, 4*Hp)     layer-0 folded bias, f32
    w_blk_ref,   # (2*Hp, 8*Hp)  fused block weight [[W_hh0, W_ih1],[0, W_hh1]], bf16
    b1_ref,      # (1, 4*Hp)     layer-1 folded bias, f32
    fc_w_ref,    # (Hp, Op)      FC head weight, f32
    fc_b_ref,    # (1, Op)       FC head bias, f32
    out_ref,     # (B, Op)
    xproj_ref,   # (T, B, 4*Hp)  VMEM scratch: hoisted layer-0 input projection
    *, hidden_pad, seq_len, input_size,
):
    Hp = hidden_pad
    G = 4 * Hp                      # one layer's gate width (4 x 128-lane slabs)
    T = seq_len
    B = x_ref.shape[1]

    # ---- pre-pass: layer-0 input projection for ALL timesteps (no recurrence) ----
    if input_size == 1:
        # Pure VPU broadcast multiply-add: (T,B,1)*(1,G) + (1,G) -> (T,B,G).
        xproj_ref[...] = x_ref[...] * w_ih0_ref[...] + b0_ref[...]
    else:
        xw = jnp.dot(x_ref[...].reshape(T * B, input_size), w_ih0_ref[...],
                     preferred_element_type=jnp.float32)
        xproj_ref[...] = xw.reshape(T, B, G) + b0_ref[...]

    def gate_act(gates):
        # PyTorch gate order i, f, g, o; each gate is a 128-lane-aligned slab,
        # so every slice is a free lane-aligned vreg select.
        i = jax.nn.sigmoid(gates[:, 0 * Hp:1 * Hp])
        f = jax.nn.sigmoid(gates[:, 1 * Hp:2 * Hp])
        g = jnp.tanh(gates[:, 2 * Hp:3 * Hp])
        o = jax.nn.sigmoid(gates[:, 3 * Hp:4 * Hp])
        return i, f, g, o

    # Hoisted loop-invariant broadcast (JAX does not CSE broadcast_in_dim).
    b1_b = jnp.broadcast_to(b1_ref[...], (B, G))

    # ---- wave 0 (peeled): layer-0 step 0; h0_{-1}=c0_{-1}=0 -> no matmul ----
    i0, f0, g0, o0 = gate_act(xproj_ref[0])
    c0 = i0 * g0
    h0 = o0 * jnp.tanh(c0)
    h1 = jnp.zeros((B, Hp), jnp.float32)
    c1 = jnp.zeros((B, Hp), jnp.float32)

    # ---- waves 1 .. T-1: ONE fused matmul per wave ---------------------------
    #   z[:, :G] = h0_{w-1} @ W_hh0                       (layer-0 recurrent term)
    #   z[:, G:] = h0_{w-1} @ W_ih1 + h1_{w-2} @ W_hh1    (layer-1 gates minus b1)
    def wave(w, carry):
        h0, c0, h1, c1 = carry
        lhs = jnp.concatenate([h0, h1], axis=-1).astype(jnp.bfloat16)
        z = jnp.dot(lhs, w_blk_ref[...], preferred_element_type=jnp.float32)

        # layer 0, step w
        ia, fa, ga, oa = gate_act(z[:, :G] + xproj_ref[w])
        c0 = fa * c0 + ia * ga
        h0 = oa * jnp.tanh(c0)

        # layer 1, step w-1
        ib, fb, gb, ob = gate_act(z[:, G:] + b1_b)
        c1 = fb * c1 + ib * gb
        h1 = ob * jnp.tanh(c1)
        return h0, c0, h1, c1

    h0, c0, h1, c1 = lax.fori_loop(1, T, wave, (h0, c0, h1, c1), unroll=True)

    # ---- wave T (peeled): layer-1 step T-1 only ------------------------------
    lhs = jnp.concatenate([h0, h1], axis=-1).astype(jnp.bfloat16)
    z1 = jnp.dot(lhs, w_blk_ref[:, G:], preferred_element_type=jnp.float32)
    ib, fb, gb, ob = gate_act(z1 + b1_b)
    c1 = fb * c1 + ib * gb
    h1 = ob * jnp.tanh(c1)

    # ---- FC head on the last hidden state; lane-dense (B, Op) output slab ----
    out_ref[...] = (
        jnp.dot(h1, fc_w_ref[...], preferred_element_type=jnp.float32)
        + fc_b_ref[...]
    )


def pack_params(params, *, hidden_size, output_size):
    """Pad/fuse PyTorch-layout (pre-transposed) params into 128-lane slabs."""
    H = hidden_size
    Hp = _round_up(H, LANE)
    G = 4 * Hp
    Op = _round_up(output_size, LANE)

    def pad_gate_cols(w):
        # (in, 4H) -> (in, G): gate g occupies lanes [g*Hp, g*Hp + H), rest zero.
        out = jnp.zeros((w.shape[0], G), jnp.float32)
        for g in range(4):
            out = out.at[:, g * Hp:g * Hp + H].set(w[:, g * H:(g + 1) * H])
        return out

    def pad_rows(w, rows):
        return jnp.zeros((rows, w.shape[1]), jnp.float32).at[:w.shape[0], :].set(w)

    w_ih0 = pad_gate_cols(params["w_ih0"])                   # (I, G) f32 (VPU operand)
    b0 = pad_gate_cols(params["b0"])                         # (1, G)
    w_hh0 = pad_rows(pad_gate_cols(params["w_hh0"]), Hp)     # (Hp, G)
    w_ih1 = pad_rows(pad_gate_cols(params["w_ih1"]), Hp)     # (Hp, G)
    w_hh1 = pad_rows(pad_gate_cols(params["w_hh1"]), Hp)     # (Hp, G)
    # Fused wave block weight: [h0 | h1] @ [[W_hh0, W_ih1], [0, W_hh1]]; bf16.
    top = jnp.concatenate([w_hh0, w_ih1], axis=1)            # (Hp, 2G)
    bot = jnp.concatenate([jnp.zeros((Hp, G), jnp.float32), w_hh1], axis=1)
    w_blk = jnp.concatenate([top, bot], axis=0).astype(jnp.bfloat16)  # (2Hp, 2G)
    b1 = pad_gate_cols(params["b1"])                         # (1, G)
    fc_w = (jnp.zeros((Hp, Op), jnp.float32)
            .at[:H, :output_size].set(params["fc_w"]))       # (Hp, Op)
    fc_b = (jnp.zeros((1, Op), jnp.float32)
            .at[:, :output_size].set(params["fc_b"]))        # (1, Op)

    return {"w_ih0": w_ih0, "b0": b0, "w_blk": w_blk, "b1": b1,
            "fc_w": fc_w, "fc_b": fc_b}


@functools.partial(jax.jit, static_argnames=("hidden_size", "output_size"))
def lstm_model_forward(x, packed, *, hidden_size, output_size):
    """x: (B, T, I) float32. Returns (B, output_size)."""
    B, T, I = x.shape
    Hp = _round_up(hidden_size, LANE)
    G = 4 * Hp
    Op = _round_up(output_size, LANE)

    # VMEM-residency guard: v7x has 64 MiB physical VMEM (32 MiB default scoped
    # limit).  For long sequences switch to a time-chunked grid (chunked
    # prepass, h/c carried in scratch) rather than raising vmem_limit_bytes.
    resident_bytes = 4 * (T * B * I + T * B * G          # x + xproj scratch
                          + I * G + 2 * G                # w_ih0, b0, b1
                          + Hp * Op + Op + B * Op)       # fc_w, fc_b, out
    resident_bytes += 2 * (2 * Hp) * (2 * G)             # bf16 block weight
    assert resident_bytes < 12 * 1024 * 1024, (
        "sequence too long for the all-resident kernel; use a time-chunked grid")

    # Time-major so the per-wave dynamic index stays on the untiled leading
    # axis; this transpose (B*T*I floats) is fused into the same jit dispatch.
    x_tbi = jnp.transpose(x, (1, 0, 2))

    def vspec(shape):
        return pl.BlockSpec(shape, lambda i, _n=len(shape): (0,) * _n)

    kernel = functools.partial(lstm_model_kernel, hidden_pad=Hp, seq_len=T,
                               input_size=I)

    out_padded = pl.pallas_call(
        kernel,
        out_shape=jax.ShapeDtypeStruct((B, Op), jnp.float32),
        grid=(1,),                         # single invocation; time loop is in-kernel
        in_specs=[
            vspec((T, B, I)),              # x (whole sequence resident in VMEM)
            vspec((I, G)),                 # w_ih0
            vspec((1, G)),                 # b0
            vspec((2 * Hp, 2 * G)),        # fused block weight (bf16)
            vspec((1, G)),                 # b1
            vspec((Hp, Op)),               # fc_w
            vspec((1, Op)),                # fc_b
        ],
        out_specs=vspec((B, Op)),
        scratch_shapes=[pltpu.VMEM((T, B, G), jnp.float32)],  # hoisted x-projection
        compiler_params=pltpu.CompilerParams(
            dimension_semantics=("arbitrary",),   # serial chain; no megacore split
        ),
    )(
        x_tbi, packed["w_ih0"], packed["b0"], packed["w_blk"],
        packed["b1"], packed["fc_w"], packed["fc_b"],
    )
    return out_padded[:, :output_size]


def make_params(key, input_size, hidden_size, output_size):
    """Deterministic synthetic parameters (PyTorch LSTM shapes, pre-transposed)."""
    H = hidden_size
    ks = jax.random.split(key, 10)
    scale = 1.0 / jnp.sqrt(H)

    def u(k, shape):
        return jax.random.uniform(k, shape, jnp.float32, -scale, scale)

    # PyTorch stores weight_ih_l0 as (4H, I); we pre-transpose to (I, 4H).
    params = {
        "w_ih0": u(ks[0], (input_size, 4 * H)),
        "w_hh0": u(ks[1], (H, 4 * H)),
        # b = b_ih + b_hh (folded), kept 2D for TPU layout.
        "b0": u(ks[2], (1, 4 * H)) + u(ks[3], (1, 4 * H)),
        "w_ih1": u(ks[4], (H, 4 * H)),
        "w_hh1": u(ks[5], (H, 4 * H)),
        "b1": u(ks[6], (1, 4 * H)) + u(ks[7], (1, 4 * H)),
        "fc_w": u(ks[8], (H, output_size)),
        "fc_b": u(ks[9], (1, output_size)),
    }
    return params


def reference_forward(x, params, *, hidden_size):
    """Pure-JAX reference (lax.scan over time, unpadded) for correctness checking."""
    B, T, I = x.shape
    H = hidden_size

    def cell(x_in, h, c, w_ih, w_hh, b):
        gates = x_in @ w_ih + h @ w_hh + b
        i = jax.nn.sigmoid(gates[:, 0:H])
        f = jax.nn.sigmoid(gates[:, H:2 * H])
        g = jnp.tanh(gates[:, 2 * H:3 * H])
        o = jax.nn.sigmoid(gates[:, 3 * H:4 * H])
        c_new = f * c + i * g
        h_new = o * jnp.tanh(c_new)
        return h_new, c_new

    def step(carry, x_t):
        h0, c0, h1, c1 = carry
        h0, c0 = cell(x_t, h0, c0, params["w_ih0"], params["w_hh0"], params["b0"])
        h1, c1 = cell(h0, h1, c1, params["w_ih1"], params["w_hh1"], params["b1"])
        return (h0, c0, h1, c1), None

    z = jnp.zeros((B, H), jnp.float32)
    (h0, c0, h1, c1), _ = jax.lax.scan(step, (z, z, z, z),
                                       jnp.transpose(x, (1, 0, 2)))
    return h1 @ params["fc_w"] + params["fc_b"]


if __name__ == "__main__":
    # Module defaults: input_size=1, hidden_size=50, num_layers=2, output_size=1
    B, T, I, H, O = 2, 8, 1, 50, 1

    key = jax.random.PRNGKey(0)
    kx, kp = jax.random.split(key)
    x = jax.random.normal(kx, (B, T, I), jnp.float32)
    params = make_params(kp, I, H, O)
    packed = pack_params(params, hidden_size=H, output_size=O)

    out = lstm_model_forward(x, packed, hidden_size=H, output_size=O)
    out = jax.block_until_ready(out)

    ref = jax.block_until_ready(reference_forward(x, params, hidden_size=H))
    assert out.shape == (B, O), out.shape
    # bf16 MXU truncation compounds over the T-step recurrence; use a
    # bf16-appropriate tolerance (error here is typically a few 1e-4).
    assert jnp.allclose(out, ref, atol=5e-3, rtol=5e-3), (out, ref)

    print("KERNEL_OK")
</pallas_src>

<mosaic_0001>
module attributes {stable_mosaic.version = 11 : i64} {
  func.func @lstm_model_kernel(%arg0: i32, %arg1: memref<8x2x1xf32, #tpu.memory_space<vmem>>, %arg2: memref<1x512xf32, #tpu.memory_space<vmem>>, %arg3: memref<1x512xf32, #tpu.memory_space<vmem>>, %arg4: memref<256x1024xbf16, #tpu.memory_space<vmem>>, %arg5: memref<1x512xf32, #tpu.memory_space<vmem>>, %arg6: memref<128x128xf32, #tpu.memory_space<vmem>>, %arg7: memref<1x128xf32, #tpu.memory_space<vmem>>, %arg8: memref<2x128xf32, #tpu.memory_space<vmem>>, %arg9: memref<8x2x512xf32, #tpu.memory_space<vmem>>) attributes {dimension_semantics = [#tpu.dimension_semantics<arbitrary>], iteration_bounds = array<i64: 1>, scalar_prefetch = 0 : i64, scratch_operands = 1 : i64, tpu.core_type = #tpu.core_type<tc>, window_params = [{pipeline_mode = #tpu.pipeline_mode<synchronous>, transform_indices = @transform_0, window_bounds = array<i64: 8, 2, 1>}, {pipeline_mode = #tpu.pipeline_mode<synchronous>, transform_indices = @transform_1, window_bounds = array<i64: 1, 512>}, {pipeline_mode = #tpu.pipeline_mode<synchronous>, transform_indices = @transform_2, window_bounds = array<i64: 1, 512>}, {pipeline_mode = #tpu.pipeline_mode<synchronous>, transform_indices = @transform_3, window_bounds = array<i64: 256, 1024>}, {pipeline_mode = #tpu.pipeline_mode<synchronous>, transform_indices = @transform_4, window_bounds = array<i64: 1, 512>}, {pipeline_mode = #tpu.pipeline_mode<synchronous>, transform_indices = @transform_5, window_bounds = array<i64: 128, 128>}, {pipeline_mode = #tpu.pipeline_mode<synchronous>, transform_indices = @transform_6, window_bounds = array<i64: 1, 128>}, {pipeline_mode = #tpu.pipeline_mode<synchronous>, transform_indices = @transform_7, window_bounds = array<i64: 2, 128>}]} {
    %c0 = arith.constant 0 : index
    %c0_0 = arith.constant 0 : index
    %c0_1 = arith.constant 0 : index
    %0 = vector.load %arg1[%c0, %c0_0, %c0_1] : memref<8x2x1xf32, #tpu.memory_space<vmem>>, vector<8x2x1xf32>
    %c0_2 = arith.constant 0 : index
    %c0_3 = arith.constant 0 : index
    %1 = vector.load %arg2[%c0_2, %c0_3] : memref<1x512xf32, #tpu.memory_space<vmem>>, vector<1x512xf32>
    %2 = vector.shape_cast %1 : vector<1x512xf32> to vector<1x1x512xf32>
    %3 = vector.broadcast %0 : vector<8x2x1xf32> to vector<8x2x512xf32>
    %4 = vector.broadcast %2 : vector<1x1x512xf32> to vector<8x2x512xf32>
    %5 = arith.mulf %3, %4 : vector<8x2x512xf32>
    %c0_4 = arith.constant 0 : index
    %c0_5 = arith.constant 0 : index
    %6 = vector.load %arg3[%c0_4, %c0_5] : memref<1x512xf32, #tpu.memory_space<vmem>>, vector<1x512xf32>
    %7 = vector.shape_cast %6 : vector<1x512xf32> to vector<1x1x512xf32>
    %8 = vector.broadcast %7 : vector<1x1x512xf32> to vector<8x2x512xf32>
    %9 = arith.addf %5, %8 : vector<8x2x512xf32>
    %c0_6 = arith.constant 0 : index
    %c0_7 = arith.constant 0 : index
    %c0_8 = arith.constant 0 : index
    %10 = vector.load %arg9[%c0_6, %c0_7, %c0_8] : memref<8x2x512xf32, #tpu.memory_space<vmem>>, vector<8x2x512xf32>
    tpu.vector_store %arg9[%c0_6, %c0_7, %c0_8], %9 {strides = array<i32>} : memref<8x2x512xf32, #tpu.memory_space<vmem>>, vector<8x2x512xf32>,
    %c0_9 = arith.constant 0 : index
    %c0_10 = arith.constant 0 : index
    %11 = vector.load %arg5[%c0_9, %c0_10] : memref<1x512xf32, #tpu.memory_space<vmem>>, vector<1x512xf32>
    %12 = vector.shape_cast %11 : vector<1x512xf32> to vector<1x512xf32>
    %13 = vector.broadcast %12 : vector<1x512xf32> to vector<2x512xf32>
    %c0_11 = arith.constant 0 : index
    %c0_12 = arith.constant 0 : index
    %c0_13 = arith.constant 0 : index
    %14 = vector.load %arg9[%c0_11, %c0_12, %c0_13] : memref<8x2x512xf32, #tpu.memory_space<vmem>>, vector<1x2x512xf32>
    %15 = vector.shape_cast %14 : vector<1x2x512xf32> to vector<2x512xf32>
    %16 = vector.extract_strided_slice %15 {offsets = [0, 0], sizes = [2, 128], strides = [1, 1]} : vector<2x512xf32> to vector<2x128xf32>
    %17 = arith.negf %16 : vector<2x128xf32>
    %18 = math.exp %17 : vector<2x128xf32>
    %cst = arith.constant 1.000000e+00 : f32
    %19 = vector.broadcast %cst : f32 to vector<2x128xf32>
    %20 = arith.addf %19, %18 : vector<2x128xf32>
    %21 = arith.divf %19, %20 : vector<2x128xf32>
    %22 = vector.extract_strided_slice %15 {offsets = [0, 256], sizes = [2, 128], strides = [1, 1]} : vector<2x512xf32> to vector<2x128xf32>
    %23 = math.tanh %22 : vector<2x128xf32>
    %24 = vector.extract_strided_slice %15 {offsets = [0, 384], sizes = [2, 128], strides = [1, 1]} : vector<2x512xf32> to vector<2x128xf32>
    %25 = arith.negf %24 : vector<2x128xf32>
    %26 = math.exp %25 : vector<2x128xf32>
    %cst_14 = arith.constant 1.000000e+00 : f32
    %27 = vector.broadcast %cst_14 : f32 to vector<2x128xf32>
    %28 = arith.addf %27, %26 : vector<2x128xf32>
    %29 = arith.divf %27, %28 : vector<2x128xf32>
    %30 = arith.mulf %21, %23 : vector<2x128xf32>
    %31 = math.tanh %30 : vector<2x128xf32>
    %32 = arith.mulf %29, %31 : vector<2x128xf32>
    %cst_15 = arith.constant 0.000000e+00 : f32
    %33 = vector.broadcast %cst_15 : f32 to vector<2x128xf32>
    %cst_16 = arith.constant 0.000000e+00 : f32
    %34 = vector.broadcast %cst_16 : f32 to vector<2x128xf32>
    %c1_i32 = arith.constant 1 : i32
    %35 = tpu.concatenate %32, %33 in 1 : vector<2x128xf32>, vector<2x128xf32> -> vector<2x256xf32>
    %36 = arith.truncf %35 : vector<2x256xf32> to vector<2x256xbf16>
    %c0_17 = arith.constant 0 : index
    %c0_18 = arith.constant 0 : index
    %37 = vector.load %arg4[%c0_17, %c0_18] : memref<256x1024xbf16, #tpu.memory_space<vmem>>, vector<256x1024xbf16>
    %cst_19 = arith.constant dense<0.000000e+00> : vector<2x1024xf32>
    %38 = tpu.matmul %36, %37, %cst_19 {dimension_numbers = #tpu.dot_dimension_numbers<[1], [0], [0], [1], [0, 0, 1, 1], [], []>} : vector<2x256xbf16>, vector<256x1024xbf16>, vector<2x1024xf32> -> vector<2x1024xf32>
    %39 = vector.extract_strided_slice %38 {offsets = [0, 0], sizes = [2, 512], strides = [1, 1]} : vector<2x1024xf32> to vector<2x512xf32>
    %40 = arith.index_cast %c1_i32 : i32 to index
    %c0_20 = arith.constant 0 : index
    %c0_21 = arith.constant 0 : index
    %41 = vector.load %arg9[%40, %c0_20, %c0_21] : memref<8x2x512xf32, #tpu.memory_space<vmem>>, vector<1x2x512xf32>
    %42 = vector.shape_cast %41 : vector<1x2x512xf32> to vector<2x512xf32>
    %43 = arith.addf %39, %42 : vector<2x512xf32>
    %44 = vector.extract_strided_slice %43 {offsets = [0, 0], sizes = [2, 128], strides = [1, 1]} : vector<2x512xf32> to vector<2x128xf32>
    %45 = arith.negf %44 : vector<2x128xf32>
    %46 = math.exp %45 : vector<2x128xf32>
    %cst_22 = arith.constant 1.000000e+00 : f32
    %47 = vector.broadcast %cst_22 : f32 to vector<2x128xf32>
    %48 = arith.addf %47, %46 : vector<2x128xf32>
    %49 = arith.divf %47, %48 : vector<2x128xf32>
    %50 = vector.extract_strided_slice %43 {offsets = [0, 128], sizes = [2, 128], strides = [1, 1]} : vector<2x512xf32> to vector<2x128xf32>
    %51 = arith.negf %50 : vector<2x128xf32>
    %52 = math.exp %51 : vector<2x128xf32>
    %cst_23 = arith.constant 1.000000e+00 : f32
    %53 = vector.broadcast %cst_23 : f32 to vector<2x128xf32>
    %54 = arith.addf %53, %52 : vector<2x128xf32>
    %55 = arith.divf %53, %54 : vector<2x128xf32>
    %56 = vector.extract_strided_slice %43 {offsets = [0, 256], sizes = [2, 128], strides = [1, 1]} : vector<2x512xf32> to vector<2x128xf32>
    %57 = math.tanh %56 : vector<2x128xf32>
    %58 = vector.extract_strided_slice %43 {offsets = [0, 384], sizes = [2, 128], strides = [1, 1]} : vector<2x512xf32> to vector<2x128xf32>
    %59 = arith.negf %58 : vector<2x128xf32>
    %60 = math.exp %59 : vector<2x128xf32>
    %cst_24 = arith.constant 1.000000e+00 : f32
    %61 = vector.broadcast %cst_24 : f32 to vector<2x128xf32>
    %62 = arith.addf %61, %60 : vector<2x128xf32>
    %63 = arith.divf %61, %62 : vector<2x128xf32>
    %64 = arith.mulf %55, %30 : vector<2x128xf32>
    %65 = arith.mulf %49, %57 : vector<2x128xf32>
    %66 = arith.addf %64, %65 : vector<2x128xf32>
    %67 = math.tanh %66 : vector<2x128xf32>
    %68 = arith.mulf %63, %67 : vector<2x128xf32>
    %69 = vector.extract_strided_slice %38 {offsets = [0, 512], sizes = [2, 512], strides = [1, 1]} : vector<2x1024xf32> to vector<2x512xf32>
    %70 = arith.addf %69, %13 : vector<2x512xf32>
    %71 = vector.extract_strided_slice %70 {offsets = [0, 0], sizes = [2, 128], strides = [1, 1]} : vector<2x512xf32> to vector<2x128xf32>
    %72 = arith.negf %71 : vector<2x128xf32>
    %73 = math.exp %72 : vector<2x128xf32>
    %cst_25 = arith.constant 1.000000e+00 : f32
    %74 = vector.broadcast %cst_25 : f32 to vector<2x128xf32>
    %75 = arith.addf %74, %73 : vector<2x128xf32>
    %76 = arith.divf %74, %75 : vector<2x128xf32>
    %77 = vector.extract_strided_slice %70 {offsets = [0, 128], sizes = [2, 128], strides = [1, 1]} : vector<2x512xf32> to vector<2x128xf32>
    %78 = arith.negf %77 : vector<2x128xf32>
    %79 = math.exp %78 : vector<2x128xf32>
    %cst_26 = arith.constant 1.000000e+00 : f32
    %80 = vector.broadcast %cst_26 : f32 to vector<2x128xf32>
    %81 = arith.addf %80, %79 : vector<2x128xf32>
    %82 = arith.divf %80, %81 : vector<2x128xf32>
    %83 = vector.extract_strided_slice %70 {offsets = [0, 256], sizes = [2, 128], strides = [1, 1]} : vector<2x512xf32> to vector<2x128xf32>
    %84 = math.tanh %83 : vector<2x128xf32>
    %85 = vector.extract_strided_slice %70 {offsets = [0, 384], sizes = [2, 128], strides = [1, 1]} : vector<2x512xf32> to vector<2x128xf32>
    %86 = arith.negf %85 : vector<2x128xf32>
    %87 = math.exp %86 : vector<2x128xf32>
    %cst_27 = arith.constant 1.000000e+00 : f32
    %88 = vector.broadcast %cst_27 : f32 to vector<2x128xf32>
    %89 = arith.addf %88, %87 : vector<2x128xf32>
    %90 = arith.divf %88, %89 : vector<2x128xf32>
    %91 = arith.mulf %82, %34 : vector<2x128xf32>
    %92 = arith.mulf %76, %84 : vector<2x128xf32>
    %93 = arith.addf %91, %92 : vector<2x128xf32>
    %94 = math.tanh %93 : vector<2x128xf32>
    %95 = arith.mulf %90, %94 : vector<2x128xf32>
    %c2_i32 = arith.constant 2 : i32
    %96 = tpu.concatenate %68, %95 in 1 : vector<2x128xf32>, vector<2x128xf32> -> vector<2x256xf32>
    %97 = arith.truncf %96 : vector<2x256xf32> to vector<2x256xbf16>
    %c0_28 = arith.constant 0 : index
    %c0_29 = arith.constant 0 : index
    %98 = vector.load %arg4[%c0_28, %c0_29] : memref<256x1024xbf16, #tpu.memory_space<vmem>>, vector<256x1024xbf16>
    %cst_30 = arith.constant dense<0.000000e+00> : vector<2x1024xf32>
    %99 = tpu.matmul %97, %98, %cst_30 {dimension_numbers = #tpu.dot_dimension_numbers<[1], [0], [0], [1], [0, 0, 1, 1], [], []>} : vector<2x256xbf16>, vector<256x1024xbf16>, vector<2x1024xf32> -> vector<2x1024xf32>
    %100 = vector.extract_strided_slice %99 {offsets = [0, 0], sizes = [2, 512], strides = [1, 1]} : vector<2x1024xf32> to vector<2x512xf32>
    %101 = arith.index_cast %c2_i32 : i32 to index
    %c0_31 = arith.constant 0 : index
    %c0_32 = arith.constant 0 : index
    %102 = vector.load %arg9[%101, %c0_31, %c0_32] : memref<8x2x512xf32, #tpu.memory_space<vmem>>, vector<1x2x512xf32>
    %103 = vector.shape_cast %102 : vector<1x2x512xf32> to vector<2x512xf32>
    %104 = arith.addf %100, %103 : vector<2x512xf32>
    %105 = vector.extract_strided_slice %104 {offsets = [0, 0], sizes = [2, 128], strides = [1, 1]} : vector<2x512xf32> to vector<2x128xf32>
    %106 = arith.negf %105 : vector<2x128xf32>
    %107 = math.exp %106 : vector<2x128xf32>
    %cst_33 = arith.constant 1.000000e+00 : f32
    %108 = vector.broadcast %cst_33 : f32 to vector<2x128xf32>
    %109 = arith.addf %108, %107 : vector<2x128xf32>
    %110 = arith.divf %108, %109 : vector<2x128xf32>
    %111 = vector.extract_strided_slice %104 {offsets = [0, 128], sizes = [2, 128], strides = [1, 1]} : vector<2x512xf32> to vector<2x128xf32>
    %112 = arith.negf %111 : vector<2x128xf32>
    %113 = math.exp %112 : vector<2x128xf32>
    %cst_34 = arith.constant 1.000000e+00 : f32
    %114 = vector.broadcast %cst_34 : f32 to vector<2x128xf32>
    %115 = arith.addf %114, %113 : vector<2x128xf32>
    %116 = arith.divf %114, %115 : vector<2x128xf32>
    %117 = vector.extract_strided_slice %104 {offsets = [0, 256], sizes = [2, 128], strides = [1, 1]} : vector<2x512xf32> to vector<2x128xf32>
    %118 = math.tanh %117 : vector<2x128xf32>
    %119 = vector.extract_strided_slice %104 {offsets = [0, 384], sizes = [2, 128], strides = [1, 1]} : vector<2x512xf32> to vector<2x128xf32>
    %120 = arith.negf %119 : vector<2x128xf32>
    %121 = math.exp %120 : vector<2x128xf32>
    %cst_35 = arith.constant 1.000000e+00 : f32
    %122 = vector.broadcast %cst_35 : f32 to vector<2x128xf32>
    %123 = arith.addf %122, %121 : vector<2x128xf32>
    %124 = arith.divf %122, %123 : vector<2x128xf32>
    %125 = arith.mulf %116, %66 : vector<2x128xf32>
    %126 = arith.mulf %110, %118 : vector<2x128xf32>
    %127 = arith.addf %125, %126 : vector<2x128xf32>
    %128 = math.tanh %127 : vector<2x128xf32>
    %129 = arith.mulf %124, %128 : vector<2x128xf32>
    %130 = vector.extract_strided_slice %99 {offsets = [0, 512], sizes = [2, 512], strides = [1, 1]} : vector<2x1024xf32> to vector<2x512xf32>
    %131 = arith.addf %130, %13 : vector<2x512xf32>
    %132 = vector.extract_strided_slice %131 {offsets = [0, 0], sizes = [2, 128], strides = [1, 1]} : vector<2x512xf32> to vector<2x128xf32>
    %133 = arith.negf %132 : vector<2x128xf32>
    %134 = math.exp %133 : vector<2x128xf32>
    %cst_36 = arith.constant 1.000000e+00 : f32
    %135 = vector.broadcast %cst_36 : f32 to vector<2x128xf32>
    %136 = arith.addf %135, %134 : vector<2x128xf32>
    %137 = arith.divf %135, %136 : vector<2x128xf32>
    %138 = vector.extract_strided_slice %131 {offsets = [0, 128], sizes = [2, 128], strides = [1, 1]} : vector<2x512xf32> to vector<2x128xf32>
    %139 = arith.negf %138 : vector<2x128xf32>
    %140 = math.exp %139 : vector<2x128xf32>
    %cst_37 = arith.constant 1.000000e+00 : f32
    %141 = vector.broadcast %cst_37 : f32 to vector<2x128xf32>
    %142 = arith.addf %141, %140 : vector<2x128xf32>
    %143 = arith.divf %141, %142 : vector<2x128xf32>
    %144 = vector.extract_strided_slice %131 {offsets = [0, 256], sizes = [2, 128], strides = [1, 1]} : vector<2x512xf32> to vector<2x128xf32>
    %145 = math.tanh %144 : vector<2x128xf32>
    %146 = vector.extract_strided_slice %131 {offsets = [0, 384], sizes = [2, 128], strides = [1, 1]} : vector<2x512xf32> to vector<2x128xf32>
    %147 = arith.negf %146 : vector<2x128xf32>
    %148 = math.exp %147 : vector<2x128xf32>
    %cst_38 = arith.constant 1.000000e+00 : f32
    %149 = vector.broadcast %cst_38 : f32 to vector<2x128xf32>
    %150 = arith.addf %149, %148 : vector<2x128xf32>
    %151 = arith.divf %149, %150 : vector<2x128xf32>
    %152 = arith.mulf %143, %93 : vector<2x128xf32>
    %153 = arith.mulf %137, %145 : vector<2x128xf32>
    %154 = arith.addf %152, %153 : vector<2x128xf32>
    %155 = math.tanh %154 : vector<2x128xf32>
    %156 = arith.mulf %151, %155 : vector<2x128xf32>
    %c3_i32 = arith.constant 3 : i32
    %157 = tpu.concatenate %129, %156 in 1 : vector<2x128xf32>, vector<2x128xf32> -> vector<2x256xf32>
    %158 = arith.truncf %157 : vector<2x256xf32> to vector<2x256xbf16>
    %c0_39 = arith.constant 0 : index
    %c0_40 = arith.constant 0 : index
    %159 = vector.load %arg4[%c0_39, %c0_40] : memref<256x1024xbf16, #tpu.memory_space<vmem>>, vector<256x1024xbf16>
    %cst_41 = arith.constant dense<0.000000e+00> : vector<2x1024xf32>
    %160 = tpu.matmul %158, %159, %cst_41 {dimension_numbers = #tpu.dot_dimension_numbers<[1], [0], [0], [1], [0, 0, 1, 1], [], []>} : vector<2x256xbf16>, vector<256x1024xbf16>, vector<2x1024xf32> -> vector<2x1024xf32>
    %161 = vector.extract_strided_slice %160 {offsets = [0, 0], sizes = [2, 512], strides = [1, 1]} : vector<2x1024xf32> to vector<2x512xf32>
    %162 = arith.index_cast %c3_i32 : i32 to index
    %c0_42 = arith.constant 0 : index
    %c0_43 = arith.constant 0 : index
    %163 = vector.load %arg9[%162, %c0_42, %c0_43] : memref<8x2x512xf32, #tpu.memory_space<vmem>>, vector<1x2x512xf32>
    %164 = vector.shape_cast %163 : vector<1x2x512xf32> to vector<2x512xf32>
    %165 = arith.addf %161, %164 : vector<2x512xf32>
    %166 = vector.extract_strided_slice %165 {offsets = [0, 0], sizes = [2, 128], strides = [1, 1]} : vector<2x512xf32> to vector<2x128xf32>
    %167 = arith.negf %166 : vector<2x128xf32>
    %168 = math.exp %167 : vector<2x128xf32>
    %cst_44 = arith.constant 1.000000e+00 : f32
    %169 = vector.broadcast %cst_44 : f32 to vector<2x128xf32>
    %170 = arith.addf %169, %168 : vector<2x128xf32>
    %171 = arith.divf %169, %170 : vector<2x128xf32>
    %172 = vector.extract_strided_slice %165 {offsets = [0, 128], sizes = [2, 128], strides = [1, 1]} : vector<2x512xf32> to vector<2x128xf32>
    %173 = arith.negf %172 : vector<2x128xf32>
    %174 = math.exp %173 : vector<2x128xf32>
    %cst_45 = arith.constant 1.000000e+00 : f32
    %175 = vector.broadcast %cst_45 : f32 to vector<2x128xf32>
    %176 = arith.addf %175, %174 : vector<2x128xf32>
    %177 = arith.divf %175, %176 : vector<2x128xf32>
    %178 = vector.extract_strided_slice %165 {offsets = [0, 256], sizes = [2, 128], strides = [1, 1]} : vector<2x512xf32> to vector<2x128xf32>
    %179 = math.tanh %178 : vector<2x128xf32>
    %180 = vector.extract_strided_slice %165 {offsets = [0, 384], sizes = [2, 128], strides = [1, 1]} : vector<2x512xf32> to vector<2x128xf32>
    %181 = arith.negf %180 : vector<2x128xf32>
    %182 = math.exp %181 : vector<2x128xf32>
    %cst_46 = arith.constant 1.000000e+00 : f32
    %183 = vector.broadcast %cst_46 : f32 to vector<2x128xf32>
    %184 = arith.addf %183, %182 : vector<2x128xf32>
    %185 = arith.divf %183, %184 : vector<2x128xf32>
    %186 = arith.mulf %177, %127 : vector<2x128xf32>
    %187 = arith.mulf %171, %179 : vector<2x128xf32>
    %188 = arith.addf %186, %187 : vector<2x128xf32>
    %189 = math.tanh %188 : vector<2x128xf32>
    %190 = arith.mulf %185, %189 : vector<2x128xf32>
    %191 = vector.extract_strided_slice %160 {offsets = [0, 512], sizes = [2, 512], strides = [1, 1]} : vector<2x1024xf32> to vector<2x512xf32>
    %192 = arith.addf %191, %13 : vector<2x512xf32>
    %193 = vector.extract_strided_slice %192 {offsets = [0, 0], sizes = [2, 128], strides = [1, 1]} : vector<2x512xf32> to vector<2x128xf32>
    %194 = arith.negf %193 : vector<2x128xf32>
    %195 = math.exp %194 : vector<2x128xf32>
    %cst_47 = arith.constant 1.000000e+00 : f32
    %196 = vector.broadcast %cst_47 : f32 to vector<2x128xf32>
    %197 = arith.addf %196, %195 : vector<2x128xf32>
    %198 = arith.divf %196, %197 : vector<2x128xf32>
    %199 = vector.extract_strided_slice %192 {offsets = [0, 128], sizes = [2, 128], strides = [1, 1]} : vector<2x512xf32> to vector<2x128xf32>
    %200 = arith.negf %199 : vector<2x128xf32>
    %201 = math.exp %200 : vector<2x128xf32>
    %cst_48 = arith.constant 1.000000e+00 : f32
    %202 = vector.broadcast %cst_48 : f32 to vector<2x128xf32>
    %203 = arith.addf %202, %201 : vector<2x128xf32>
    %204 = arith.divf %202, %203 : vector<2x128xf32>
    %205 = vector.extract_strided_slice %192 {offsets = [0, 256], sizes = [2, 128], strides = [1, 1]} : vector<2x512xf32> to vector<2x128xf32>
    %206 = math.tanh %205 : vector<2x128xf32>
    %207 = vector.extract_strided_slice %192 {offsets = [0, 384], sizes = [2, 128], strides = [1, 1]} : vector<2x512xf32> to vector<2x128xf32>
    %208 = arith.negf %207 : vector<2x128xf32>
    %209 = math.exp %208 : vector<2x128xf32>
    %cst_49 = arith.constant 1.000000e+00 : f32
    %210 = vector.broadcast %cst_49 : f32 to vector<2x128xf32>
    %211 = arith.addf %210, %209 : vector<2x128xf32>
    %212 = arith.divf %210, %211 : vector<2x128xf32>
    %213 = arith.mulf %204, %154 : vector<2x128xf32>
    %214 = arith.mulf %198, %206 : vector<2x128xf32>
    %215 = arith.addf %213, %214 : vector<2x128xf32>
    %216 = math.tanh %215 : vector<2x128xf32>
    %217 = arith.mulf %212, %216 : vector<2x128xf32>
    %c4_i32 = arith.constant 4 : i32
    %218 = tpu.concatenate %190, %217 in 1 : vector<2x128xf32>, vector<2x128xf32> -> vector<2x256xf32>
    %219 = arith.truncf %218 : vector<2x256xf32> to vector<2x256xbf16>
    %c0_50 = arith.constant 0 : index
    %c0_51 = arith.constant 0 : index
    %220 = vector.load %arg4[%c0_50, %c0_51] : memref<256x1024xbf16, #tpu.memory_space<vmem>>, vector<256x1024xbf16>
    %cst_52 = arith.constant dense<0.000000e+00> : vector<2x1024xf32>
    %221 = tpu.matmul %219, %220, %cst_52 {dimension_numbers = #tpu.dot_dimension_numbers<[1], [0], [0], [1], [0, 0, 1, 1], [], []>} : vector<2x256xbf16>, vector<256x1024xbf16>, vector<2x1024xf32> -> vector<2x1024xf32>
    %222 = vector.extract_strided_slice %221 {offsets = [0, 0], sizes = [2, 512], strides = [1, 1]} : vector<2x1024xf32> to vector<2x512xf32>
    %223 = arith.index_cast %c4_i32 : i32 to index
    %c0_53 = arith.constant 0 : index
    %c0_54 = arith.constant 0 : index
    %224 = vector.load %arg9[%223, %c0_53, %c0_54] : memref<8x2x512xf32, #tpu.memory_space<vmem>>, vector<1x2x512xf32>
    %225 = vector.shape_cast %224 : vector<1x2x512xf32> to vector<2x512xf32>
    %226 = arith.addf %222, %225 : vector<2x512xf32>
    %227 = vector.extract_strided_slice %226 {offsets = [0, 0], sizes = [2, 128], strides = [1, 1]} : vector<2x512xf32> to vector<2x128xf32>
    %228 = arith.negf %227 : vector<2x128xf32>
    %229 = math.exp %228 : vector<2x128xf32>
    %cst_55 = arith.constant 1.000000e+00 : f32
    %230 = vector.broadcast %cst_55 : f32 to vector<2x128xf32>
    %231 = arith.addf %230, %229 : vector<2x128xf32>
    %232 = arith.divf %230, %231 : vector<2x128xf32>
    %233 = vector.extract_strided_slice %226 {offsets = [0, 128], sizes = [2, 128], strides = [1, 1]} : vector<2x512xf32> to vector<2x128xf32>
    %234 = arith.negf %233 : vector<2x128xf32>
    %235 = math.exp %234 : vector<2x128xf32>
    %cst_56 = arith.constant 1.000000e+00 : f32
    %236 = vector.broadcast %cst_56 : f32 to vector<2x128xf32>
    %237 = arith.addf %236, %235 : vector<2x128xf32>
    %238 = arith.divf %236, %237 : vector<2x128xf32>
    %239 = vector.extract_strided_slice %226 {offsets = [0, 256], sizes = [2, 128], strides = [1, 1]} : vector<2x512xf32> to vector<2x128xf32>
    %240 = math.tanh %239 : vector<2x128xf32>
    %241 = vector.extract_strided_slice %226 {offsets = [0, 384], sizes = [2, 128], strides = [1, 1]} : vector<2x512xf32> to vector<2x128xf32>
    %242 = arith.negf %241 : vector<2x128xf32>
    %243 = math.exp %242 : vector<2x128xf32>
    %cst_57 = arith.constant 1.000000e+00 : f32
    %244 = vector.broadcast %cst_57 : f32 to vector<2x128xf32>
    %245 = arith.addf %244, %243 : vector<2x128xf32>
    %246 = arith.divf %244, %245 : vector<2x128xf32>
    %247 = arith.mulf %238, %188 : vector<2x128xf32>
    %248 = arith.mulf %232, %240 : vector<2x128xf32>
    %249 = arith.addf %247, %248 : vector<2x128xf32>
    %250 = math.tanh %249 : vector<2x128xf32>
    %251 = arith.mulf %246, %250 : vector<2x128xf32>
    %252 = vector.extract_strided_slice %221 {offsets = [0, 512], sizes = [2, 512], strides = [1, 1]} : vector<2x1024xf32> to vector<2x512xf32>
    %253 = arith.addf %252, %13 : vector<2x512xf32>
    %254 = vector.extract_strided_slice %253 {offsets = [0, 0], sizes = [2, 128], strides = [1, 1]} : vector<2x512xf32> to vector<2x128xf32>
    %255 = arith.negf %254 : vector<2x128xf32>
    %256 = math.exp %255 : vector<2x128xf32>
    %cst_58 = arith.constant 1.000000e+00 : f32
    %257 = vector.broadcast %cst_58 : f32 to vector<2x128xf32>
    %258 = arith.addf %257, %256 : vector<2x128xf32>
    %259 = arith.divf %257, %258 : vector<2x128xf32>
    %260 = vector.extract_strided_slice %253 {offsets = [0, 128], sizes = [2, 128], strides = [1, 1]} : vector<2x512xf32> to vector<2x128xf32>
    %261 = arith.negf %260 : vector<2x128xf32>
    %262 = math.exp %261 : vector<2x128xf32>
    %cst_59 = arith.constant 1.000000e+00 : f32
    %263 = vector.broadcast %cst_59 : f32 to vector<2x128xf32>
    %264 = arith.addf %263, %262 : vector<2x128xf32>
    %265 = arith.divf %263, %264 : vector<2x128xf32>
    %266 = vector.extract_strided_slice %253 {offsets = [0, 256], sizes = [2, 128], strides = [1, 1]} : vector<2x512xf32> to vector<2x128xf32>
    %267 = math.tanh %266 : vector<2x128xf32>
    %268 = vector.extract_strided_slice %253 {offsets = [0, 384], sizes = [2, 128], strides = [1, 1]} : vector<2x512xf32> to vector<2x128xf32>
    %269 = arith.negf %268 : vector<2x128xf32>
    %270 = math.exp %269 : vector<2x128xf32>
    %cst_60 = arith.constant 1.000000e+00 : f32
    %271 = vector.broadcast %cst_60 : f32 to vector<2x128xf32>
    %272 = arith.addf %271, %270 : vector<2x128xf32>
    %273 = arith.divf %271, %272 : vector<2x128xf32>
    %274 = arith.mulf %265, %215 : vector<2x128xf32>
    %275 = arith.mulf %259, %267 : vector<2x128xf32>
    %276 = arith.addf %274, %275 : vector<2x128xf32>
    %277 = math.tanh %276 : vector<2x128xf32>
    %278 = arith.mulf %273, %277 : vector<2x128xf32>
    %c5_i32 = arith.constant 5 : i32
    %279 = tpu.concatenate %251, %278 in 1 : vector<2x128xf32>, vector<2x128xf32> -> vector<2x256xf32>
    %280 = arith.truncf %279 : vector<2x256xf32> to vector<2x256xbf16>
    %c0_61 = arith.constant 0 : index
    %c0_62 = arith.constant 0 : index
    %281 = vector.load %arg4[%c0_61, %c0_62] : memref<256x1024xbf16, #tpu.memory_space<vmem>>, vector<256x1024xbf16>
    %cst_63 = arith.constant dense<0.000000e+00> : vector<2x1024xf32>
    %282 = tpu.matmul %280, %281, %cst_63 {dimension_numbers = #tpu.dot_dimension_numbers<[1], [0], [0], [1], [0, 0, 1, 1], [], []>} : vector<2x256xbf16>, vector<256x1024xbf16>, vector<2x1024xf32> -> vector<2x1024xf32>
    %283 = vector.extract_strided_slice %282 {offsets = [0, 0], sizes = [2, 512], strides = [1, 1]} : vector<2x1024xf32> to vector<2x512xf32>
    %284 = arith.index_cast %c5_i32 : i32 to index
    %c0_64 = arith.constant 0 : index
    %c0_65 = arith.constant 0 : index
    %285 = vector.load %arg9[%284, %c0_64, %c0_65] : memref<8x2x512xf32, #tpu.memory_space<vmem>>, vector<1x2x512xf32>
    %286 = vector.shape_cast %285 : vector<1x2x512xf32> to vector<2x512xf32>
    %287 = arith.addf %283, %286 : vector<2x512xf32>
    %288 = vector.extract_strided_slice %287 {offsets = [0, 0], sizes = [2, 128], strides = [1, 1]} : vector<2x512xf32> to vector<2x128xf32>
    %289 = arith.negf %288 : vector<2x128xf32>
    %290 = math.exp %289 : vector<2x128xf32>
    %cst_66 = arith.constant 1.000000e+00 : f32
    %291 = vector.broadcast %cst_66 : f32 to vector<2x128xf32>
    %292 = arith.addf %291, %290 : vector<2x128xf32>
    %293 = arith.divf %291, %292 : vector<2x128xf32>
    %294 = vector.extract_strided_slice %287 {offsets = [0, 128], sizes = [2, 128], strides = [1, 1]} : vector<2x512xf32> to vector<2x128xf32>
    %295 = arith.negf %294 : vector<2x128xf32>
    %296 = math.exp %295 : vector<2x128xf32>
    %cst_67 = arith.constant 1.000000e+00 : f32
    %297 = vector.broadcast %cst_67 : f32 to vector<2x128xf32>
    %298 = arith.addf %297, %296 : vector<2x128xf32>
    %299 = arith.divf %297, %298 : vector<2x128xf32>
    %300 = vector.extract_strided_slice %287 {offsets = [0, 256], sizes = [2, 128], strides = [1, 1]} : vector<2x512xf32> to vector<2x128xf32>
    %301 = math.tanh %300 : vector<2x128xf32>
    %302 = vector.extract_strided_slice %287 {offsets = [0, 384], sizes = [2, 128], strides = [1, 1]} : vector<2x512xf32> to vector<2x128xf32>
    %303 = arith.negf %302 : vector<2x128xf32>
    %304 = math.exp %303 : vector<2x128xf32>
    %cst_68 = arith.constant 1.000000e+00 : f32
    %305 = vector.broadcast %cst_68 : f32 to vector<2x128xf32>
    %306 = arith.addf %305, %304 : vector<2x128xf32>
    %307 = arith.divf %305, %306 : vector<2x128xf32>
    %308 = arith.mulf %299, %249 : vector<2x128xf32>
    %309 = arith.mulf %293, %301 : vector<2x128xf32>
    %310 = arith.addf %308, %309 : vector<2x128xf32>
    %311 = math.tanh %310 : vector<2x128xf32>
    %312 = arith.mulf %307, %311 : vector<2x128xf32>
    %313 = vector.extract_strided_slice %282 {offsets = [0, 512], sizes = [2, 512], strides = [1, 1]} : vector<2x1024xf32> to vector<2x512xf32>
    %314 = arith.addf %313, %13 : vector<2x512xf32>
    %315 = vector.extract_strided_slice %314 {offsets = [0, 0], sizes = [2, 128], strides = [1, 1]} : vector<2x512xf32> to vector<2x128xf32>
    %316 = arith.negf %315 : vector<2x128xf32>
    %317 = math.exp %316 : vector<2x128xf32>
    %cst_69 = arith.constant 1.000000e+00 : f32
    %318 = vector.broadcast %cst_69 : f32 to vector<2x128xf32>
    %319 = arith.addf %318, %317 : vector<2x128xf32>
    %320 = arith.divf %318, %319 : vector<2x128xf32>
    %321 = vector.extract_strided_slice %314 {offsets = [0, 128], sizes = [2, 128], strides = [1, 1]} : vector<2x512xf32> to vector<2x128xf32>
    %322 = arith.negf %321 : vector<2x128xf32>
    %323 = math.exp %322 : vector<2x128xf32>
    %cst_70 = arith.constant 1.000000e+00 : f32
    %324 = vector.broadcast %cst_70 : f32 to vector<2x128xf32>
    %325 = arith.addf %324, %323 : vector<2x128xf32>
    %326 = arith.divf %324, %325 : vector<2x128xf32>
    %327 = vector.extract_strided_slice %314 {offsets = [0, 256], sizes = [2, 128], strides = [1, 1]} : vector<2x512xf32> to vector<2x128xf32>
    %328 = math.tanh %327 : vector<2x128xf32>
    %329 = vector.extract_strided_slice %314 {offsets = [0, 384], sizes = [2, 128], strides = [1, 1]} : vector<2x512xf32> to vector<2x128xf32>
    %330 = arith.negf %329 : vector<2x128xf32>
    %331 = math.exp %330 : vector<2x128xf32>
    %cst_71 = arith.constant 1.000000e+00 : f32
    %332 = vector.broadcast %cst_71 : f32 to vector<2x128xf32>
    %333 = arith.addf %332, %331 : vector<2x128xf32>
    %334 = arith.divf %332, %333 : vector<2x128xf32>
    %335 = arith.mulf %326, %276 : vector<2x128xf32>
    %336 = arith.mulf %320, %328 : vector<2x128xf32>
    %337 = arith.addf %335, %336 : vector<2x128xf32>
    %338 = math.tanh %337 : vector<2x128xf32>
    %339 = arith.mulf %334, %338 : vector<2x128xf32>
    %c6_i32 = arith.constant 6 : i32
    %340 = tpu.concatenate %312, %339 in 1 : vector<2x128xf32>, vector<2x128xf32> -> vector<2x256xf32>
    %341 = arith.truncf %340 : vector<2x256xf32> to vector<2x256xbf16>
    %c0_72 = arith.constant 0 : index
    %c0_73 = arith.constant 0 : index
    %342 = vector.load %arg4[%c0_72, %c0_73] : memref<256x1024xbf16, #tpu.memory_space<vmem>>, vector<256x1024xbf16>
    %cst_74 = arith.constant dense<0.000000e+00> : vector<2x1024xf32>
    %343 = tpu.matmul %341, %342, %cst_74 {dimension_numbers = #tpu.dot_dimension_numbers<[1], [0], [0], [1], [0, 0, 1, 1], [], []>} : vector<2x256xbf16>, vector<256x1024xbf16>, vector<2x1024xf32> -> vector<2x1024xf32>
    %344 = vector.extract_strided_slice %343 {offsets = [0, 0], sizes = [2, 512], strides = [1, 1]} : vector<2x1024xf32> to vector<2x512xf32>
    %345 = arith.index_cast %c6_i32 : i32 to index
    %c0_75 = arith.constant 0 : index
    %c0_76 = arith.constant 0 : index
    %346 = vector.load %arg9[%345, %c0_75, %c0_76] : memref<8x2x512xf32, #tpu.memory_space<vmem>>, vector<1x2x512xf32>
    %347 = vector.shape_cast %346 : vector<1x2x512xf32> to vector<2x512xf32>
    %348 = arith.addf %344, %347 : vector<2x512xf32>
    %349 = vector.extract_strided_slice %348 {offsets = [0, 0], sizes = [2, 128], strides = [1, 1]} : vector<2x512xf32> to vector<2x128xf32>
    %350 = arith.negf %349 : vector<2x128xf32>
    %351 = math.exp %350 : vector<2x128xf32>
    %cst_77 = arith.constant 1.000000e+00 : f32
    %352 = vector.broadcast %cst_77 : f32 to vector<2x128xf32>
    %353 = arith.addf %352, %351 : vector<2x128xf32>
    %354 = arith.divf %352, %353 : vector<2x128xf32>
    %355 = vector.extract_strided_slice %348 {offsets = [0, 128], sizes = [2, 128], strides = [1, 1]} : vector<2x512xf32> to vector<2x128xf32>
    %356 = arith.negf %355 : vector<2x128xf32>
    %357 = math.exp %356 : vector<2x128xf32>
    %cst_78 = arith.constant 1.000000e+00 : f32
    %358 = vector.broadcast %cst_78 : f32 to vector<2x128xf32>
    %359 = arith.addf %358, %357 : vector<2x128xf32>
    %360 = arith.divf %358, %359 : vector<2x128xf32>
    %361 = vector.extract_strided_slice %348 {offsets = [0, 256], sizes = [2, 128], strides = [1, 1]} : vector<2x512xf32> to vector<2x128xf32>
    %362 = math.tanh %361 : vector<2x128xf32>
    %363 = vector.extract_strided_slice %348 {offsets = [0, 384], sizes = [2, 128], strides = [1, 1]} : vector<2x512xf32> to vector<2x128xf32>
    %364 = arith.negf %363 : vector<2x128xf32>
    %365 = math.exp %364 : vector<2x128xf32>
    %cst_79 = arith.constant 1.000000e+00 : f32
    %366 = vector.broadcast %cst_79 : f32 to vector<2x128xf32>
    %367 = arith.addf %366, %365 : vector<2x128xf32>
    %368 = arith.divf %366, %367 : vector<2x128xf32>
    %369 = arith.mulf %360, %310 : vector<2x128xf32>
    %370 = arith.mulf %354, %362 : vector<2x128xf32>
    %371 = arith.addf %369, %370 : vector<2x128xf32>
    %372 = math.tanh %371 : vector<2x128xf32>
    %373 = arith.mulf %368, %372 : vector<2x128xf32>
    %374 = vector.extract_strided_slice %343 {offsets = [0, 512], sizes = [2, 512], strides = [1, 1]} : vector<2x1024xf32> to vector<2x512xf32>
    %375 = arith.addf %374, %13 : vector<2x512xf32>
    %376 = vector.extract_strided_slice %375 {offsets = [0, 0], sizes = [2, 128], strides = [1, 1]} : vector<2x512xf32> to vector<2x128xf32>
    %377 = arith.negf %376 : vector<2x128xf32>
    %378 = math.exp %377 : vector<2x128xf32>
    %cst_80 = arith.constant 1.000000e+00 : f32
    %379 = vector.broadcast %cst_80 : f32 to vector<2x128xf32>
    %380 = arith.addf %379, %378 : vector<2x128xf32>
    %381 = arith.divf %379, %380 : vector<2x128xf32>
    %382 = vector.extract_strided_slice %375 {offsets = [0, 128], sizes = [2, 128], strides = [1, 1]} : vector<2x512xf32> to vector<2x128xf32>
    %383 = arith.negf %382 : vector<2x128xf32>
    %384 = math.exp %383 : vector<2x128xf32>
    %cst_81 = arith.constant 1.000000e+00 : f32
    %385 = vector.broadcast %cst_81 : f32 to vector<2x128xf32>
    %386 = arith.addf %385, %384 : vector<2x128xf32>
    %387 = arith.divf %385, %386 : vector<2x128xf32>
    %388 = vector.extract_strided_slice %375 {offsets = [0, 256], sizes = [2, 128], strides = [1, 1]} : vector<2x512xf32> to vector<2x128xf32>
    %389 = math.tanh %388 : vector<2x128xf32>
    %390 = vector.extract_strided_slice %375 {offsets = [0, 384], sizes = [2, 128], strides = [1, 1]} : vector<2x512xf32> to vector<2x128xf32>
    %391 = arith.negf %390 : vector<2x128xf32>
    %392 = math.exp %391 : vector<2x128xf32>
    %cst_82 = arith.constant 1.000000e+00 : f32
    %393 = vector.broadcast %cst_82 : f32 to vector<2x128xf32>
    %394 = arith.addf %393, %392 : vector<2x128xf32>
    %395 = arith.divf %393, %394 : vector<2x128xf32>
    %396 = arith.mulf %387, %337 : vector<2x128xf32>
    %397 = arith.mulf %381, %389 : vector<2x128xf32>
    %398 = arith.addf %396, %397 : vector<2x128xf32>
    %399 = math.tanh %398 : vector<2x128xf32>
    %400 = arith.mulf %395, %399 : vector<2x128xf32>
    %c7_i32 = arith.constant 7 : i32
    %401 = tpu.concatenate %373, %400 in 1 : vector<2x128xf32>, vector<2x128xf32> -> vector<2x256xf32>
    %402 = arith.truncf %401 : vector<2x256xf32> to vector<2x256xbf16>
    %c0_83 = arith.constant 0 : index
    %c0_84 = arith.constant 0 : index
    %403 = vector.load %arg4[%c0_83, %c0_84] : memref<256x1024xbf16, #tpu.memory_space<vmem>>, vector<256x1024xbf16>
    %cst_85 = arith.constant dense<0.000000e+00> : vector<2x1024xf32>
    %404 = tpu.matmul %402, %403, %cst_85 {dimension_numbers = #tpu.dot_dimension_numbers<[1], [0], [0], [1], [0, 0, 1, 1], [], []>} : vector<2x256xbf16>, vector<256x1024xbf16>, vector<2x1024xf32> -> vector<2x1024xf32>
    %405 = vector.extract_strided_slice %404 {offsets = [0, 0], sizes = [2, 512], strides = [1, 1]} : vector<2x1024xf32> to vector<2x512xf32>
    %406 = arith.index_cast %c7_i32 : i32 to index
    %c0_86 = arith.constant 0 : index
    %c0_87 = arith.constant 0 : index
    %407 = vector.load %arg9[%406, %c0_86, %c0_87] : memref<8x2x512xf32, #tpu.memory_space<vmem>>, vector<1x2x512xf32>
    %408 = vector.shape_cast %407 : vector<1x2x512xf32> to vector<2x512xf32>
    %409 = arith.addf %405, %408 : vector<2x512xf32>
    %410 = vector.extract_strided_slice %409 {offsets = [0, 0], sizes = [2, 128], strides = [1, 1]} : vector<2x512xf32> to vector<2x128xf32>
    %411 = arith.negf %410 : vector<2x128xf32>
    %412 = math.exp %411 : vector<2x128xf32>
    %cst_88 = arith.constant 1.000000e+00 : f32
    %413 = vector.broadcast %cst_88 : f32 to vector<2x128xf32>
    %414 = arith.addf %413, %412 : vector<2x128xf32>
    %415 = arith.divf %413, %414 : vector<2x128xf32>
    %416 = vector.extract_strided_slice %409 {offsets = [0, 128], sizes = [2, 128], strides = [1, 1]} : vector<2x512xf32> to vector<2x128xf32>
    %417 = arith.negf %416 : vector<2x128xf32>
    %418 = math.exp %417 : vector<2x128xf32>
    %cst_89 = arith.constant 1.000000e+00 : f32
    %419 = vector.broadcast %cst_89 : f32 to vector<2x128xf32>
    %420 = arith.addf %419, %418 : vector<2x128xf32>
    %421 = arith.divf %419, %420 : vector<2x128xf32>
    %422 = vector.extract_strided_slice %409 {offsets = [0, 256], sizes = [2, 128], strides = [1, 1]} : vector<2x512xf32> to vector<2x128xf32>
    %423 = math.tanh %422 : vector<2x128xf32>
    %424 = vector.extract_strided_slice %409 {offsets = [0, 384], sizes = [2, 128], strides = [1, 1]} : vector<2x512xf32> to vector<2x128xf32>
    %425 = arith.negf %424 : vector<2x128xf32>
    %426 = math.exp %425 : vector<2x128xf32>
    %cst_90 = arith.constant 1.000000e+00 : f32
    %427 = vector.broadcast %cst_90 : f32 to vector<2x128xf32>
    %428 = arith.addf %427, %426 : vector<2x128xf32>
    %429 = arith.divf %427, %428 : vector<2x128xf32>
    %430 = arith.mulf %421, %371 : vector<2x128xf32>
    %431 = arith.mulf %415, %423 : vector<2x128xf32>
    %432 = arith.addf %430, %431 : vector<2x128xf32>
    %433 = math.tanh %432 : vector<2x128xf32>
    %434 = arith.mulf %429, %433 : vector<2x128xf32>
    %435 = vector.extract_strided_slice %404 {offsets = [0, 512], sizes = [2, 512], strides = [1, 1]} : vector<2x1024xf32> to vector<2x512xf32>
    %436 = arith.addf %435, %13 : vector<2x512xf32>
    %437 = vector.extract_strided_slice %436 {offsets = [0, 0], sizes = [2, 128], strides = [1, 1]} : vector<2x512xf32> to vector<2x128xf32>
    %438 = arith.negf %437 : vector<2x128xf32>
    %439 = math.exp %438 : vector<2x128xf32>
    %cst_91 = arith.constant 1.000000e+00 : f32
    %440 = vector.broadcast %cst_91 : f32 to vector<2x128xf32>
    %441 = arith.addf %440, %439 : vector<2x128xf32>
    %442 = arith.divf %440, %441 : vector<2x128xf32>
    %443 = vector.extract_strided_slice %436 {offsets = [0, 128], sizes = [2, 128], strides = [1, 1]} : vector<2x512xf32> to vector<2x128xf32>
    %444 = arith.negf %443 : vector<2x128xf32>
    %445 = math.exp %444 : vector<2x128xf32>
    %cst_92 = arith.constant 1.000000e+00 : f32
    %446 = vector.broadcast %cst_92 : f32 to vector<2x128xf32>
    %447 = arith.addf %446, %445 : vector<2x128xf32>
    %448 = arith.divf %446, %447 : vector<2x128xf32>
    %449 = vector.extract_strided_slice %436 {offsets = [0, 256], sizes = [2, 128], strides = [1, 1]} : vector<2x512xf32> to vector<2x128xf32>
    %450 = math.tanh %449 : vector<2x128xf32>
    %451 = vector.extract_strided_slice %436 {offsets = [0, 384], sizes = [2, 128], strides = [1, 1]} : vector<2x512xf32> to vector<2x128xf32>
    %452 = arith.negf %451 : vector<2x128xf32>
    %453 = math.exp %452 : vector<2x128xf32>
    %cst_93 = arith.constant 1.000000e+00 : f32
    %454 = vector.broadcast %cst_93 : f32 to vector<2x128xf32>
    %455 = arith.addf %454, %453 : vector<2x128xf32>
    %456 = arith.divf %454, %455 : vector<2x128xf32>
    %457 = arith.mulf %448, %398 : vector<2x128xf32>
    %458 = arith.mulf %442, %450 : vector<2x128xf32>
    %459 = arith.addf %457, %458 : vector<2x128xf32>
    %460 = math.tanh %459 : vector<2x128xf32>
    %461 = arith.mulf %456, %460 : vector<2x128xf32>
    %c7_i32_94 = arith.constant 7 : i32
    %462 = tpu.concatenate %434, %461 in 1 : vector<2x128xf32>, vector<2x128xf32> -> vector<2x256xf32>
    %463 = arith.truncf %462 : vector<2x256xf32> to vector<2x256xbf16>
    %c0_95 = arith.constant 0 : index
    %c512 = arith.constant 512 : index
    %464 = vector.load %arg4[%c0_95, %c512] : memref<256x1024xbf16, #tpu.memory_space<vmem>>, vector<256x512xbf16>
    %cst_96 = arith.constant dense<0.000000e+00> : vector<2x512xf32>
    %465 = tpu.matmul %463, %464, %cst_96 {dimension_numbers = #tpu.dot_dimension_numbers<[1], [0], [0], [1], [0, 0, 1, 1], [], []>} : vector<2x256xbf16>, vector<256x512xbf16>, vector<2x512xf32> -> vector<2x512xf32>
    %466 = arith.addf %465, %13 : vector<2x512xf32>
    %467 = vector.extract_strided_slice %466 {offsets = [0, 0], sizes = [2, 128], strides = [1, 1]} : vector<2x512xf32> to vector<2x128xf32>
    %468 = arith.negf %467 : vector<2x128xf32>
    %469 = math.exp %468 : vector<2x128xf32>
    %cst_97 = arith.constant 1.000000e+00 : f32
    %470 = vector.broadcast %cst_97 : f32 to vector<2x128xf32>
    %471 = arith.addf %470, %469 : vector<2x128xf32>
    %472 = arith.divf %470, %471 : vector<2x128xf32>
    %473 = vector.extract_strided_slice %466 {offsets = [0, 128], sizes = [2, 128], strides = [1, 1]} : vector<2x512xf32> to vector<2x128xf32>
    %474 = arith.negf %473 : vector<2x128xf32>
    %475 = math.exp %474 : vector<2x128xf32>
    %cst_98 = arith.constant 1.000000e+00 : f32
    %476 = vector.broadcast %cst_98 : f32 to vector<2x128xf32>
    %477 = arith.addf %476, %475 : vector<2x128xf32>
    %478 = arith.divf %476, %477 : vector<2x128xf32>
    %479 = vector.extract_strided_slice %466 {offsets = [0, 256], sizes = [2, 128], strides = [1, 1]} : vector<2x512xf32> to vector<2x128xf32>
    %480 = math.tanh %479 : vector<2x128xf32>
    %481 = vector.extract_strided_slice %466 {offsets = [0, 384], sizes = [2, 128], strides = [1, 1]} : vector<2x512xf32> to vector<2x128xf32>
    %482 = arith.negf %481 : vector<2x128xf32>
    %483 = math.exp %482 : vector<2x128xf32>
    %cst_99 = arith.constant 1.000000e+00 : f32
    %484 = vector.broadcast %cst_99 : f32 to vector<2x128xf32>
    %485 = arith.addf %484, %483 : vector<2x128xf32>
    %486 = arith.divf %484, %485 : vector<2x128xf32>
    %487 = arith.mulf %478, %459 : vector<2x128xf32>
    %488 = arith.mulf %472, %480 : vector<2x128xf32>
    %489 = arith.addf %487, %488 : vector<2x128xf32>
    %490 = math.tanh %489 : vector<2x128xf32>
    %491 = arith.mulf %486, %490 : vector<2x128xf32>
    %c0_100 = arith.constant 0 : index
    %c0_101 = arith.constant 0 : index
    %492 = vector.load %arg6[%c0_100, %c0_101] : memref<128x128xf32, #tpu.memory_space<vmem>>, vector<128x128xf32>
    %cst_102 = arith.constant dense<0.000000e+00> : vector<2x128xf32>
    %493 = tpu.matmul %491, %492, %cst_102 {dimension_numbers = #tpu.dot_dimension_numbers<[1], [0], [0], [1], [0, 0, 1, 1], [], []>} : vector<2x128xf32>, vector<128x128xf32>, vector<2x128xf32> -> vector<2x128xf32>
    %c0_103 = arith.constant 0 : index
    %c0_104 = arith.constant 0 : index
    %494 = vector.load %arg7[%c0_103, %c0_104] : memref<1x128xf32, #tpu.memory_space<vmem>>, vector<1x128xf32>
    %495 = vector.broadcast %494 : vector<1x128xf32> to vector<2x128xf32>
    %496 = arith.addf %493, %495 : vector<2x128xf32>
    %c0_105 = arith.constant 0 : index
    %c0_106 = arith.constant 0 : index
    %497 = vector.load %arg8[%c0_105, %c0_106] : memref<2x128xf32, #tpu.memory_space<vmem>>, vector<2x128xf32>
    tpu.vector_store %arg8[%c0_105, %c0_106], %496 {strides = array<i32>} : memref<2x128xf32, #tpu.memory_space<vmem>>, vector<2x128xf32>,
    return
  }
  func.func @transform_0(%arg0: i32) -> (i32, i32, i32) {
    %c0_i32 = arith.constant 0 : i32
    %c0_i32_0 = arith.constant 0 : i32
    %c0_i32_1 = arith.constant 0 : i32
    %c0_i32_2 = arith.constant 0 : i32
    return %c0_i32, %c0_i32_0, %c0_i32_1 : i32, i32, i32
  }
  func.func @transform_1(%arg0: i32) -> (i32, i32) {
    %c0_i32 = arith.constant 0 : i32
    %c0_i32_0 = arith.constant 0 : i32
    %c0_i32_1 = arith.constant 0 : i32
    return %c0_i32, %c0_i32_0 : i32, i32
  }
  func.func @transform_2(%arg0: i32) -> (i32, i32) {
    %c0_i32 = arith.constant 0 : i32
    %c0_i32_0 = arith.constant 0 : i32
    %c0_i32_1 = arith.constant 0 : i32
    return %c0_i32, %c0_i32_0 : i32, i32
  }
  func.func @transform_3(%arg0: i32) -> (i32, i32) {
    %c0_i32 = arith.constant 0 : i32
    %c0_i32_0 = arith.constant 0 : i32
    %c0_i32_1 = arith.constant 0 : i32
    return %c0_i32, %c0_i32_0 : i32, i32
  }
  func.func @transform_4(%arg0: i32) -> (i32, i32) {
    %c0_i32 = arith.constant 0 : i32
    %c0_i32_0 = arith.constant 0 : i32
    %c0_i32_1 = arith.constant 0 : i32
    return %c0_i32, %c0_i32_0 : i32, i32
  }
  func.func @transform_5(%arg0: i32) -> (i32, i32) {
    %c0_i32 = arith.constant 0 : i32
    %c0_i32_0 = arith.constant 0 : i32
    %c0_i32_1 = arith.constant 0 : i32
    return %c0_i32, %c0_i32_0 : i32, i32
  }
  func.func @transform_6(%arg0: i32) -> (i32, i32) {
    %c0_i32 = arith.constant 0 : i32
    %c0_i32_0 = arith.constant 0 : i32
    %c0_i32_1 = arith.constant 0 : i32
    return %c0_i32, %c0_i32_0 : i32, i32
  }
  func.func @transform_7(%arg0: i32) -> (i32, i32) {
    %c0_i32 = arith.constant 0 : i32
    %c0_i32_0 = arith.constant 0 : i32
    %c0_i32_1 = arith.constant 0 : i32
    return %c0_i32, %c0_i32_0 : i32, i32
  }
}

</mosaic_0001>

<llo_original>
// kernel: lstm_model_forward.1
$region0: #{lstm_model_forward.1}
  #allocation0 [shape = 'u32[]', space=smem, size = 0x4, offset = 0x4, fixed_abs, tag = 'smem constant byte address 0x4 - core index']
  #allocation1 [shape = 'u32[144,128]{1,0:T(1,128)}', space=vmem, size = 0x12000, scoped, tag = 'internal scratch']
  #allocation2 [shape = 'f32[8,2,512]{2,1,0:T(2,128)}', space=vmem, size = 0x8000, scoped, tag = 'scratch operand']
  %s0 = inlined_call_operand.vmem [shape: f32[8,2,1], index: 0, kind: input, shape index: {}]
  %s1 = inlined_call_operand.vmem [shape: f32[1,512], index: 1, kind: input, shape index: {}]
  %s2 = inlined_call_operand.vmem [shape: f32[1,512], index: 2, kind: input, shape index: {}]
  %s3 = inlined_call_operand.hbm [shape: bf16[256,1024], index: 3, kind: input, shape index: {}]
  %s4 = inlined_call_operand.vmem [shape: f32[1,512], index: 4, kind: input, shape index: {}]
  %s5 = inlined_call_operand.hbm [shape: f32[128,128], index: 5, kind: input, shape index: {}]
  %s6 = inlined_call_operand.vmem [shape: f32[1,128], index: 6, kind: input, shape index: {}]
  %s7 = inlined_call_operand.vmem [shape: f32[2,128], index: 7, kind: output, shape index: {}]
  %s8 = sld [smem:[#allocation0]]
  $region46: #{lstm_model_forward.1} parent=0
    _
  %s10 = ssub.s32 1, %s8
  %s11 = scalar_select 0, %s10, %s8
  $region1: #{lstm_model_forward.1} parent=0
    #allocation3 [shape = 'u8[524288]{0}', space=vmem, size = 0x80000, scoped, tag = 'input window, operand 3, single buffered']
    #allocation4 [shape = 's32[1]{0}', space=sflag, size = 0x4, scoped, tag = 'scoped memory for lstm_model_forward.1']
    #allocation5 [shape = 'u8[65536]{0}', space=vmem, size = 0x10000, scoped, tag = 'input window, operand 5, single buffered']
    #allocation6 [shape = 's32[1]{0}', space=sflag, size = 0x4, scoped, tag = 'scoped memory for lstm_model_forward.1']
    %12 = vsyncpa [#allocation4], 0
    %13 = vsyncpa [#allocation6], 0
    // Predicated region
    $region2: #{lstm_model_forward.1} parent=1 // pred_check
      _
    $region3: #{lstm_model_forward.1} parent=1 // pred_check_branch
      %15 = sbr.rel (0) target = $region5
    $region4: #{lstm_model_forward.1} parent=1 // pred_region
      _
    $region5: #{lstm_model_forward.1} parent=1 // pred_fallthru
      _
    // Predicated region
    $region6: #{lstm_model_forward.1} parent=1 // pred_check
      _
    $region7: #{lstm_model_forward.1} parent=1 // pred_check_branch
      %17 = sbr.rel (0) target = $region9
    $region8: #{lstm_model_forward.1} parent=1 // pred_region
      _
    $region9: #{lstm_model_forward.1} parent=1 // pred_fallthru
      _
    // Predicated region
    $region10: #{lstm_model_forward.1} parent=1 // pred_check
      _
    $region11: #{lstm_model_forward.1} parent=1 // pred_check_branch
      %19 = sbr.rel (0) target = $region13
    $region12: #{lstm_model_forward.1} parent=1 // pred_region
      _
    $region13: #{lstm_model_forward.1} parent=1 // pred_fallthru
      _
    // Predicated region
    $region14: #{lstm_model_forward.1} parent=1 // pred_check
      _
    $region15: #{lstm_model_forward.1} parent=1 // pred_check_branch
      %21 = sbr.rel (0) target = $region17
    $region16: #{lstm_model_forward.1} parent=1 // pred_region
      %s23 = ssub.s32 16384, 16384
      %24 = vsyncadd [#allocation4], %s23
      %s25 = sshll.u32 [#allocation3], 4
      %s26 = int_to_ptr.vmem [resolvable:$true] %s25
      %31 = dma.hbm_to_vmem [thread:$0]  %s3, 16384, %s26, [#allocation4], 512, 512, 32
    $region17: #{lstm_model_forward.1} parent=1 // pred_fallthru
      _
    // Predicated region
    $region18: #{lstm_model_forward.1} parent=1 // pred_check
      _
    $region19: #{lstm_model_forward.1} parent=1 // pred_check_branch
      %33 = sbr.rel (0) target = $region21
    $region20: #{lstm_model_forward.1} parent=1 // pred_region
      _
    $region21: #{lstm_model_forward.1} parent=1 // pred_fallthru
      _
    // Predicated region
    $region22: #{lstm_model_forward.1} parent=1 // pred_check
      _
    $region23: #{lstm_model_forward.1} parent=1 // pred_check_branch
      %35 = sbr.rel (0) target = $region25
    $region24: #{lstm_model_forward.1} parent=1 // pred_region
      %s37 = ssub.s32 2048, 2048
      %38 = vsyncadd [#allocation6], %s37
      %s39 = sshll.u32 [#allocation5], 4
      %s40 = int_to_ptr.vmem [resolvable:$true] %s39
      %45 = dma.hbm_to_vmem [thread:$0]  %s5, 2048, %s40, [#allocation6], 128, 128, 8
    $region25: #{lstm_model_forward.1} parent=1 // pred_fallthru
      _
    // Predicated region
    $region26: #{lstm_model_forward.1} parent=1 // pred_check
      _
    $region27: #{lstm_model_forward.1} parent=1 // pred_check_branch
      %47 = sbr.rel (0) target = $region29
    $region28: #{lstm_model_forward.1} parent=1 // pred_region
      _
    $region29: #{lstm_model_forward.1} parent=1 // pred_fallthru
      _
    // Predicated region
    $region30: #{lstm_model_forward.1} parent=1 // pred_check
      _
    $region31: #{lstm_model_forward.1} parent=1 // pred_check_branch
      %49 = sbr.rel (0) target = $region33
    $region32: #{lstm_model_forward.1} parent=1 // pred_region
      %50 = dma.done [#allocation4], 16384
    $region33: #{lstm_model_forward.1} parent=1 // pred_fallthru
      _
    // Predicated region
    $region34: #{lstm_model_forward.1} parent=1 // pred_check
      _
    $region35: #{lstm_model_forward.1} parent=1 // pred_check_branch
      %52 = sbr.rel (0) target = $region37
    $region36: #{lstm_model_forward.1} parent=1 // pred_region
      %53 = dma.done [#allocation6], 2048
    $region37: #{lstm_model_forward.1} parent=1 // pred_fallthru
      _
    %v54 = vld [vmem:[%s0] sm:$0x3]
    %v55 = vld [vmem:[%s0 + $0x2] sm:$0x3]
    %v56 = vld [vmem:[%s0 + $0x4] sm:$0x3]
    %v57 = vld [vmem:[%s0 + $0x6] sm:$0x3]
    %v58 = vld [vmem:[%s0 + $0x8] sm:$0x3]
    %v59 = vld [vmem:[%s0 + $0xa] sm:$0x3]
    %v60 = vld [vmem:[%s0 + $0xc] sm:$0x3]
    %v61 = vld [vmem:[%s0 + $0xe] sm:$0x3]
    %v62 = vld [vmem:[%s1] sm:$0xf]
    %64 = vset.pattern.permute.xlu0 0
    %65 = vperm.xlu0 %64, %v54
    %v66 = vpop.permute.xlu0 %65
    %69 = vset.pattern.permute.xlu0 0
    %70 = vperm.xlu0 %69, %v55
    %v71 = vpop.permute.xlu0 %70
    %74 = vset.pattern.permute.xlu0 0
    %75 = vperm.xlu0 %74, %v56
    %v76 = vpop.permute.xlu0 %75
    %79 = vset.pattern.permute.xlu0 0
    %80 = vperm.xlu0 %79, %v57
    %v81 = vpop.permute.xlu0 %80
    %84 = vset.pattern.permute.xlu0 0
    %85 = vperm.xlu0 %84, %v58
    %v86 = vpop.permute.xlu0 %85
    %89 = vset.pattern.permute.xlu0 0
    %90 = vperm.xlu0 %89, %v59
    %v91 = vpop.permute.xlu0 %90
    %94 = vset.pattern.permute.xlu0 0
    %95 = vperm.xlu0 %94, %v60
    %v96 = vpop.permute.xlu0 %95
    %99 = vset.pattern.permute.xlu0 0
    %100 = vperm.xlu0 %99, %v61
    %v101 = vpop.permute.xlu0 %100
    %v104 = vlaneseq
    %v105 = vshrl.u32 %v104, 7
    %v106 = vsub.s32 0, %v105
    %v107 = vrot.slane %v62, %v106
    %v108 = vlaneseq
    %v109 = vshrl.u32 %v108, 7
    %v110 = vsub.s32 1, %v109
    %v111 = vrot.slane %v62, %v110
    %v112 = vlaneseq
    %v113 = vshrl.u32 %v112, 7
    %v114 = vsub.s32 2, %v113
    %v115 = vrot.slane %v62, %v114
    %v116 = vlaneseq
    %v117 = vshrl.u32 %v116, 7
    %v118 = vsub.s32 3, %v117
    %v119 = vrot.slane %v62, %v118
    %v124 = vmul.f32 %v66, %v107
    %v125 = vmul.f32 %v66, %v111
    %v126 = vmul.f32 %v66, %v115
    %v127 = vmul.f32 %v66, %v119
    %v128 = vmul.f32 %v71, %v107
    %v129 = vmul.f32 %v71, %v111
    %v130 = vmul.f32 %v71, %v115
    %v131 = vmul.f32 %v71, %v119
    %v132 = vmul.f32 %v76, %v107
    %v133 = vmul.f32 %v76, %v111
    %v134 = vmul.f32 %v76, %v115
    %v135 = vmul.f32 %v76, %v119
    %v136 = vmul.f32 %v81, %v107
    %v137 = vmul.f32 %v81, %v111
    %v138 = vmul.f32 %v81, %v115
    %v139 = vmul.f32 %v81, %v119
    %v140 = vmul.f32 %v86, %v107
    %v141 = vmul.f32 %v86, %v111
    %v142 = vmul.f32 %v86, %v115
    %v143 = vmul.f32 %v86, %v119
    %v144 = vmul.f32 %v91, %v107
    %v145 = vmul.f32 %v91, %v111
    %v146 = vmul.f32 %v91, %v115
    %v147 = vmul.f32 %v91, %v119
    %v148 = vmul.f32 %v96, %v107
    %v149 = vmul.f32 %v96, %v111
    %v150 = vmul.f32 %v96, %v115
    %v151 = vmul.f32 %v96, %v119
    %v152 = vmul.f32 %v101, %v107
    %v153 = vmul.f32 %v101, %v111
    %v154 = vmul.f32 %v101, %v115
    %v155 = vmul.f32 %v101, %v119
    %v156 = vld [vmem:[%s2] sm:$0xf]
    %v158 = vlaneseq
    %v159 = vshrl.u32 %v158, 7
    %v160 = vsub.s32 0, %v159
    %v161 = vrot.slane %v156, %v160
    %v162 = vlaneseq
    %v163 = vshrl.u32 %v162, 7
    %v164 = vsub.s32 1, %v163
    %v165 = vrot.slane %v156, %v164
    %v166 = vlaneseq
    %v167 = vshrl.u32 %v166, 7
    %v168 = vsub.s32 2, %v167
    %v169 = vrot.slane %v156, %v168
    %v170 = vlaneseq
    %v171 = vshrl.u32 %v170, 7
    %v172 = vsub.s32 3, %v171
    %v173 = vrot.slane %v156, %v172
    %v178 = vadd.f32 %v124, %v161
    %v179 = vadd.f32 %v125, %v165
    %v180 = vadd.f32 %v126, %v169
    %v181 = vadd.f32 %v127, %v173
    %v182 = vadd.f32 %v128, %v161
    %v183 = vadd.f32 %v129, %v165
    %v184 = vadd.f32 %v130, %v169
    %v185 = vadd.f32 %v131, %v173
    %v186 = vadd.f32 %v132, %v161
    %v187 = vadd.f32 %v133, %v165
    %v188 = vadd.f32 %v134, %v169
    %v189 = vadd.f32 %v135, %v173
    %v190 = vadd.f32 %v136, %v161
    %v191 = vadd.f32 %v137, %v165
    %v192 = vadd.f32 %v138, %v169
    %v193 = vadd.f32 %v139, %v173
    %v194 = vadd.f32 %v140, %v161
    %v195 = vadd.f32 %v141, %v165
    %v196 = vadd.f32 %v142, %v169
    %v197 = vadd.f32 %v143, %v173
    %v198 = vadd.f32 %v144, %v161
    %v199 = vadd.f32 %v145, %v165
    %v200 = vadd.f32 %v146, %v169
    %v201 = vadd.f32 %v147, %v173
    %v202 = vadd.f32 %v148, %v161
    %v203 = vadd.f32 %v149, %v165
    %v204 = vadd.f32 %v150, %v169
    %v205 = vadd.f32 %v151, %v173
    %v206 = vadd.f32 %v152, %v161
    %v207 = vadd.f32 %v153, %v165
    %v208 = vadd.f32 %v154, %v169
    %v209 = vadd.f32 %v155, %v173
    %v242 = vcombine.low %v178, %v179
    %v243 = vcombine.low %v180, %v181
    %v245 = vunpack.c.l.s4 1983009808
    %v246 = vunpack.c.0.s8 %v245
    %v247 = vlaneseq
    %v248 = vshrl.u32 %v247, 7
    %v249 = vsub.s32 %v246, %v248
    %v250 = vrot.slane %v242, %v249
    %v252 = vunpack.c.l.s4 1983009808
    %v253 = vunpack.c.0.s8 %v252
    %v254 = vlaneseq
    %v255 = vshrl.u32 %v254, 7
    %v256 = vsub.s32 %v253, %v255
    %v257 = vrot.slane %v243, %v256
    %v258 = vcombine.low %v250, %v257
    %v259 = vcombine.low %v182, %v183
    %v260 = vcombine.low %v184, %v185
    %v262 = vunpack.c.l.s4 1983009808
    %v263 = vunpack.c.0.s8 %v262
    %v264 = vlaneseq
    %v265 = vshrl.u32 %v264, 7
    %v266 = vsub.s32 %v263, %v265
    %v267 = vrot.slane %v259, %v266
    %v269 = vunpack.c.l.s4 1983009808
    %v270 = vunpack.c.0.s8 %v269
    %v271 = vlaneseq
    %v272 = vshrl.u32 %v271, 7
    %v273 = vsub.s32 %v270, %v272
    %v274 = vrot.slane %v260, %v273
    %v275 = vcombine.low %v267, %v274
    %v276 = vcombine.low %v186, %v187
    %v277 = vcombine.low %v188, %v189
    %v279 = vunpack.c.l.s4 1983009808
    %v280 = vunpack.c.0.s8 %v279
    %v281 = vlaneseq
    %v282 = vshrl.u32 %v281, 7
    %v283 = vsub.s32 %v280, %v282
    %v284 = vrot.slane %v276, %v283
    %v286 = vunpack.c.l.s4 1983009808
    %v287 = vunpack.c.0.s8 %v286
    %v288 = vlaneseq
    %v289 = vshrl.u32 %v288, 7
    %v290 = vsub.s32 %v287, %v289
    %v291 = vrot.slane %v277, %v290
    %v292 = vcombine.low %v284, %v291
    %v293 = vcombine.low %v190, %v191
    %v294 = vcombine.low %v192, %v193
    %v296 = vunpack.c.l.s4 1983009808
    %v297 = vunpack.c.0.s8 %v296
    %v298 = vlaneseq
    %v299 = vshrl.u32 %v298, 7
    %v300 = vsub.s32 %v297, %v299
    %v301 = vrot.slane %v293, %v300
    %v303 = vunpack.c.l.s4 1983009808
    %v304 = vunpack.c.0.s8 %v303
    %v305 = vlaneseq
    %v306 = vshrl.u32 %v305, 7
    %v307 = vsub.s32 %v304, %v306
    %v308 = vrot.slane %v294, %v307
    %v309 = vcombine.low %v301, %v308
    %v310 = vcombine.low %v194, %v195
    %v311 = vcombine.low %v196, %v197
    %v313 = vunpack.c.l.s4 1983009808
    %v314 = vunpack.c.0.s8 %v313
    %v315 = vlaneseq
    %v316 = vshrl.u32 %v315, 7
    %v317 = vsub.s32 %v314, %v316
    %v318 = vrot.slane %v310, %v317
    %v320 = vunpack.c.l.s4 1983009808
    %v321 = vunpack.c.0.s8 %v320
    %v322 = vlaneseq
    %v323 = vshrl.u32 %v322, 7
    %v324 = vsub.s32 %v321, %v323
    %v325 = vrot.slane %v311, %v324
    %v326 = vcombine.low %v318, %v325
    %v327 = vcombine.low %v198, %v199
    %v328 = vcombine.low %v200, %v201
    %v330 = vunpack.c.l.s4 1983009808
    %v331 = vunpack.c.0.s8 %v330
    %v332 = vlaneseq
    %v333 = vshrl.u32 %v332, 7
    %v334 = vsub.s32 %v331, %v333
    %v335 = vrot.slane %v327, %v334
    %v337 = vunpack.c.l.s4 1983009808
    %v338 = vunpack.c.0.s8 %v337
    %v339 = vlaneseq
    %v340 = vshrl.u32 %v339, 7
    %v341 = vsub.s32 %v338, %v340
    %v342 = vrot.slane %v328, %v341
    %v343 = vcombine.low %v335, %v342
    %v344 = vcombine.low %v202, %v203
    %v345 = vcombine.low %v204, %v205
    %v347 = vunpack.c.l.s4 1983009808
    %v348 = vunpack.c.0.s8 %v347
    %v349 = vlaneseq
    %v350 = vshrl.u32 %v349, 7
    %v351 = vsub.s32 %v348, %v350
    %v352 = vrot.slane %v344, %v351
    %v354 = vunpack.c.l.s4 1983009808
    %v355 = vunpack.c.0.s8 %v354
    %v356 = vlaneseq
    %v357 = vshrl.u32 %v356, 7
    %v358 = vsub.s32 %v355, %v357
    %v359 = vrot.slane %v345, %v358
    %v360 = vcombine.low %v352, %v359
    %v361 = vcombine.low %v206, %v207
    %v362 = vcombine.low %v208, %v209
    %v364 = vunpack.c.l.s4 1983009808
    %v365 = vunpack.c.0.s8 %v364
    %v366 = vlaneseq
    %v367 = vshrl.u32 %v366, 7
    %v368 = vsub.s32 %v365, %v367
    %v369 = vrot.slane %v361, %v368
    %v371 = vunpack.c.l.s4 1983009808
    %v372 = vunpack.c.0.s8 %v371
    %v373 = vlaneseq
    %v374 = vshrl.u32 %v373, 7
    %v375 = vsub.s32 %v372, %v374
    %v376 = vrot.slane %v362, %v375
    %v377 = vcombine.low %v369, %v376
    %386 = vst [vmem:[#allocation2] sm:$0xff] %v258
    %387 = vst [vmem:[#allocation2 + $0x8] sm:$0xff] %v275
    %388 = vst [vmem:[#allocation2 + $0x10] sm:$0xff] %v292
    %389 = vst [vmem:[#allocation2 + $0x18] sm:$0xff] %v309
    %390 = vst [vmem:[#allocation2 + $0x20] sm:$0xff] %v326
    %391 = vst [vmem:[#allocation2 + $0x28] sm:$0xff] %v343
    %392 = vst [vmem:[#allocation2 + $0x30] sm:$0xff] %v360
    %393 = vst [vmem:[#allocation2 + $0x38] sm:$0xff] %v377
    %v394 = vld [vmem:[%s4] sm:$0xf]
    %v396 = vlaneseq
    %v397 = vshrl.u32 %v396, 7
    %v398 = vsub.s32 0, %v397
    %v399 = vrot.slane %v394, %v398
    %v400 = vlaneseq
    %v401 = vshrl.u32 %v400, 7
    %v402 = vsub.s32 1, %v401
    %v403 = vrot.slane %v394, %v402
    %v404 = vlaneseq
    %v405 = vshrl.u32 %v404, 7
    %v406 = vsub.s32 2, %v405
    %v407 = vrot.slane %v394, %v406
    %v408 = vlaneseq
    %v409 = vshrl.u32 %v408, 7
    %v410 = vsub.s32 3, %v409
    %v411 = vrot.slane %v394, %v410
    %v416 = vld [vmem:[#allocation2] sm:$0xff]
    %v417 = vxor.u32 %v416, 2147483648
    %v418 = vmul.f32 %v417, 1.442695
    %v419 = vpow.pop %v418
    %v420 = vadd.f32 %v419, 1.0
    %v421 = vrcp.pop %v420
    %v422 = vmul.f32 1.0, %v421
    %v424 = vrot.slane %v416, 4
    %v426 = vtanh.pop %v424
    %v427 = vrot.slane %v416, 6
    %v429 = vxor.u32 %v427, 2147483648
    %v430 = vmul.f32 %v429, 1.442695
    %v431 = vpow.pop %v430
    %v432 = vadd.f32 %v431, 1.0
    %v433 = vrcp.pop %v432
    %v434 = vmul.f32 1.0, %v433
    %v435 = vmul.f32 %v422, %v426
    %v436 = vtanh.pop %v435
    %v437 = vmul.f32 %v434, %v436
    %v438 = vpack.c.bf16 %v437, %v437
    %v439 = vpack.c.bf16 0.0, 0.0
    %v440 = vld [vmem:[#allocation3] sm:$0xff]
    %v441 = vld [vmem:[#allocation3 + $0x8] sm:$0xff]
    %v442 = vld [vmem:[#allocation3 + $0x10] sm:$0xff]
    %v443 = vld [vmem:[#allocation3 + $0x18] sm:$0xff]
    %v444 = vld [vmem:[#allocation3 + $0x20] sm:$0xff]
    %v445 = vld [vmem:[#allocation3 + $0x28] sm:$0xff]
    %v446 = vld [vmem:[#allocation3 + $0x30] sm:$0xff]
    %v447 = vld [vmem:[#allocation3 + $0x38] sm:$0xff]
    %v448 = vld [vmem:[#allocation3 + $0x40] sm:$0xff]
    %v449 = vld [vmem:[#allocation3 + $0x48] sm:$0xff]
    %v450 = vld [vmem:[#allocation3 + $0x50] sm:$0xff]
    %v451 = vld [vmem:[#allocation3 + $0x58] sm:$0xff]
    %v452 = vld [vmem:[#allocation3 + $0x60] sm:$0xff]
    %v453 = vld [vmem:[#allocation3 + $0x68] sm:$0xff]
    %v454 = vld [vmem:[#allocation3 + $0x70] sm:$0xff]
    %v455 = vld [vmem:[#allocation3 + $0x78] sm:$0xff]
    %v456 = vld [vmem:[#allocation3 + $0x80] sm:$0xff]
    %v457 = vld [vmem:[#allocation3 + $0x88] sm:$0xff]
    %v458 = vld [vmem:[#allocation3 + $0x90] sm:$0xff]
    %v459 = vld [vmem:[#allocation3 + $0x98] sm:$0xff]
    %v460 = vld [vmem:[#allocation3 + $0xa0] sm:$0xff]
    %v461 = vld [vmem:[#allocation3 + $0xa8] sm:$0xff]
    %v462 = vld [vmem:[#allocation3 + $0xb0] sm:$0xff]
    %v463 = vld [vmem:[#allocation3 + $0xb8] sm:$0xff]
    %v464 = vld [vmem:[#allocation3 + $0xc0] sm:$0xff]
    %v465 = vld [vmem:[#allocation3 + $0xc8] sm:$0xff]
    %v466 = vld [vmem:[#allocation3 + $0xd0] sm:$0xff]
    %v467 = vld [vmem:[#allocation3 + $0xd8] sm:$0xff]
    %v468 = vld [vmem:[#allocation3 + $0xe0] sm:$0xff]
    %v469 = vld [vmem:[#allocation3 + $0xe8] sm:$0xff]
    %v470 = vld [vmem:[#allocation3 + $0xf0] sm:$0xff]
    %v471 = vld [vmem:[#allocation3 + $0xf8] sm:$0xff]
    %v472 = vld [vmem:[#allocation3 + $0x100] sm:$0xff]
    %v473 = vld [vmem:[#allocation3 + $0x108] sm:$0xff]
    %v474 = vld [vmem:[#allocation3 + $0x110] sm:$0xff]
    %v475 = vld [vmem:[#allocation3 + $0x118] sm:$0xff]
    %v476 = vld [vmem:[#allocation3 + $0x120] sm:$0xff]
    %v477 = vld [vmem:[#allocation3 + $0x128] sm:$0xff]
    %v478 = vld [vmem:[#allocation3 + $0x130] sm:$0xff]
    %v479 = vld [vmem:[#allocation3 + $0x138] sm:$0xff]
    %v480 = vld [vmem:[#allocation3 + $0x140] sm:$0xff]
    %v481 = vld [vmem:[#allocation3 + $0x148] sm:$0xff]
    %v482 = vld [vmem:[#allocation3 + $0x150] sm:$0xff]
    %v483 = vld [vmem:[#allocation3 + $0x158] sm:$0xff]
    %v484 = vld [vmem:[#allocation3 + $0x160] sm:$0xff]
    %v485 = vld [vmem:[#allocation3 + $0x168] sm:$0xff]
    %v486 = vld [vmem:[#allocation3 + $0x170] sm:$0xff]
    %v487 = vld [vmem:[#allocation3 + $0x178] sm:$0xff]
    %v488 = vld [vmem:[#allocation3 + $0x180] sm:$0xff]
    %v489 = vld [vmem:[#allocation3 + $0x188] sm:$0xff]
    %v490 = vld [vmem:[#allocation3 + $0x190] sm:$0xff]
    %v491 = vld [vmem:[#allocation3 + $0x198] sm:$0xff]
    %v492 = vld [vmem:[#allocation3 + $0x1a0] sm:$0xff]
    %v493 = vld [vmem:[#allocation3 + $0x1a8] sm:$0xff]
    %v494 = vld [vmem:[#allocation3 + $0x1b0] sm:$0xff]
    %v495 = vld [vmem:[#allocation3 + $0x1b8] sm:$0xff]
    %v496 = vld [vmem:[#allocation3 + $0x1c0] sm:$0xff]
    %v497 = vld [vmem:[#allocation3 + $0x1c8] sm:$0xff]
    %v498 = vld [vmem:[#allocation3 + $0x1d0] sm:$0xff]
    %v499 = vld [vmem:[#allocation3 + $0x1d8] sm:$0xff]
    %v500 = vld [vmem:[#allocation3 + $0x1e0] sm:$0xff]
    %v501 = vld [vmem:[#allocation3 + $0x1e8] sm:$0xff]
    %v502 = vld [vmem:[#allocation3 + $0x1f0] sm:$0xff]
    %v503 = vld [vmem:[#allocation3 + $0x1f8] sm:$0xff]
    %v504 = vld [vmem:[#allocation3 + $0x200] sm:$0xff]
    %v505 = vld [vmem:[#allocation3 + $0x208] sm:$0xff]
    %v506 = vld [vmem:[#allocation3 + $0x210] sm:$0xff]
    %v507 = vld [vmem:[#allocation3 + $0x218] sm:$0xff]
    %v508 = vld [vmem:[#allocation3 + $0x220] sm:$0xff]
    %v509 = vld [vmem:[#allocation3 + $0x228] sm:$0xff]
    %v510 = vld [vmem:[#allocation3 + $0x230] sm:$0xff]
    %v511 = vld [vmem:[#allocation3 + $0x238] sm:$0xff]
    %v512 = vld [vmem:[#allocation3 + $0x240] sm:$0xff]
    %v513 = vld [vmem:[#allocation3 + $0x248] sm:$0xff]
    %v514 = vld [vmem:[#allocation3 + $0x250] sm:$0xff]
    %v515 = vld [vmem:[#allocation3 + $0x258] sm:$0xff]
    %v516 = vld [vmem:[#allocation3 + $0x260] sm:$0xff]
    %v517 = vld [vmem:[#allocation3 + $0x268] sm:$0xff]
    %v518 = vld [vmem:[#allocation3 + $0x270] sm:$0xff]
    %v519 = vld [vmem:[#allocation3 + $0x278] sm:$0xff]
    %v520 = vld [vmem:[#allocation3 + $0x280] sm:$0xff]
    %v521 = vld [vmem:[#allocation3 + $0x288] sm:$0xff]
    %v522 = vld [vmem:[#allocation3 + $0x290] sm:$0xff]
    %v523 = vld [vmem:[#allocation3 + $0x298] sm:$0xff]
    %v524 = vld [vmem:[#allocation3 + $0x2a0] sm:$0xff]
    %v525 = vld [vmem:[#allocation3 + $0x2a8] sm:$0xff]
    %v526 = vld [vmem:[#allocation3 + $0x2b0] sm:$0xff]
    %v527 = vld [vmem:[#allocation3 + $0x2b8] sm:$0xff]
    %v528 = vld [vmem:[#allocation3 + $0x2c0] sm:$0xff]
    %v529 = vld [vmem:[#allocation3 + $0x2c8] sm:$0xff]
    %v530 = vld [vmem:[#allocation3 + $0x2d0] sm:$0xff]
    %v531 = vld [vmem:[#allocation3 + $0x2d8] sm:$0xff]
    %v532 = vld [vmem:[#allocation3 + $0x2e0] sm:$0xff]
    %v533 = vld [vmem:[#allocation3 + $0x2e8] sm:$0xff]
    %v534 = vld [vmem:[#allocation3 + $0x2f0] sm:$0xff]
    %v535 = vld [vmem:[#allocation3 + $0x2f8] sm:$0xff]
    %v536 = vld [vmem:[#allocation3 + $0x300] sm:$0xff]
    %v537 = vld [vmem:[#allocation3 + $0x308] sm:$0xff]
    %v538 = vld [vmem:[#allocation3 + $0x310] sm:$0xff]
    %v539 = vld [vmem:[#allocation3 + $0x318] sm:$0xff]
    %v540 = vld [vmem:[#allocation3 + $0x320] sm:$0xff]
    %v541 = vld [vmem:[#allocation3 + $0x328] sm:$0xff]
    %v542 = vld [vmem:[#allocation3 + $0x330] sm:$0xff]
    %v543 = vld [vmem:[#allocation3 + $0x338] sm:$0xff]
    %v544 = vld [vmem:[#allocation3 + $0x340] sm:$0xff]
    %v545 = vld [vmem:[#allocation3 + $0x348] sm:$0xff]
    %v546 = vld [vmem:[#allocation3 + $0x350] sm:$0xff]
    %v547 = vld [vmem:[#allocation3 + $0x358] sm:$0xff]
    %v548 = vld [vmem:[#allocation3 + $0x360] sm:$0xff]
    %v549 = vld [vmem:[#allocation3 + $0x368] sm:$0xff]
    %v550 = vld [vmem:[#allocation3 + $0x370] sm:$0xff]
    %v551 = vld [vmem:[#allocation3 + $0x378] sm:$0xff]
    %v552 = vld [vmem:[#allocation3 + $0x380] sm:$0xff]
    %v553 = vld [vmem:[#allocation3 + $0x388] sm:$0xff]
    %v554 = vld [vmem:[#allocation3 + $0x390] sm:$0xff]
    %v555 = vld [vmem:[#allocation3 + $0x398] sm:$0xff]
    %v556 = vld [vmem:[#allocation3 + $0x3a0] sm:$0xff]
    %v557 = vld [vmem:[#allocation3 + $0x3a8] sm:$0xff]
    %v558 = vld [vmem:[#allocation3 + $0x3b0] sm:$0xff]
    %v559 = vld [vmem:[#allocation3 + $0x3b8] sm:$0xff]
    %v560 = vld [vmem:[#allocation3 + $0x3c0] sm:$0xff]
    %v561 = vld [vmem:[#allocation3 + $0x3c8] sm:$0xff]
    %v562 = vld [vmem:[#allocation3 + $0x3d0] sm:$0xff]
    %v563 = vld [vmem:[#allocation3 + $0x3d8] sm:$0xff]
    %v564 = vld [vmem:[#allocation3 + $0x3e0] sm:$0xff]
    %v565 = vld [vmem:[#allocation3 + $0x3e8] sm:$0xff]
    %v566 = vld [vmem:[#allocation3 + $0x3f0] sm:$0xff]
    %v567 = vld [vmem:[#allocation3 + $0x3f8] sm:$0xff]
    %v696 = vunpack.c.l.b16 %v440
    %v697 = vunpack.c.h.b16 %v440
    %v698 = vunpack.c.l.b16 %v441
    %v699 = vunpack.c.h.b16 %v441
    %v700 = vunpack.c.l.b16 %v442
    %v701 = vunpack.c.h.b16 %v442
    %v702 = vunpack.c.l.b16 %v443
    %v703 = vunpack.c.h.b16 %v443
    %v704 = vunpack.c.l.b16 %v444
    %v705 = vunpack.c.h.b16 %v444
    %v706 = vunpack.c.l.b16 %v445
    %v707 = vunpack.c.h.b16 %v445
    %v708 = vunpack.c.l.b16 %v446
    %v709 = vunpack.c.h.b16 %v446
    %v710 = vunpack.c.l.b16 %v447
    %v711 = vunpack.c.h.b16 %v447
    %v712 = vunpack.c.l.b16 %v448
    %v713 = vunpack.c.h.b16 %v448
    %v714 = vunpack.c.l.b16 %v449
    %v715 = vunpack.c.h.b16 %v449
    %v716 = vunpack.c.l.b16 %v450
    %v717 = vunpack.c.h.b16 %v450
    %v718 = vunpack.c.l.b16 %v451
    %v719 = vunpack.c.h.b16 %v451
    %v720 = vunpack.c.l.b16 %v452
    %v721 = vunpack.c.h.b16 %v452
    %v722 = vunpack.c.l.b16 %v453
    %v723 = vunpack.c.h.b16 %v453
    %v724 = vunpack.c.l.b16 %v454
    %v725 = vunpack.c.h.b16 %v454
    %v726 = vunpack.c.l.b16 %v455
    %v727 = vunpack.c.h.b16 %v455
    %v728 = vunpack.c.l.b16 %v456
    %v729 = vunpack.c.h.b16 %v456
    %v730 = vunpack.c.l.b16 %v457
    %v731 = vunpack.c.h.b16 %v457
    %v732 = vunpack.c.l.b16 %v458
    %v733 = vunpack.c.h.b16 %v458
    %v734 = vunpack.c.l.b16 %v459
    %v735 = vunpack.c.h.b16 %v459
    %v736 = vunpack.c.l.b16 %v460
    %v737 = vunpack.c.h.b16 %v460
    %v738 = vunpack.c.l.b16 %v461
    %v739 = vunpack.c.h.b16 %v461
    %v740 = vunpack.c.l.b16 %v462
    %v741 = vunpack.c.h.b16 %v462
    %v742 = vunpack.c.l.b16 %v463
    %v743 = vunpack.c.h.b16 %v463
    %v744 = vunpack.c.l.b16 %v464
    %v745 = vunpack.c.h.b16 %v464
    %v746 = vunpack.c.l.b16 %v465
    %v747 = vunpack.c.h.b16 %v465
    %v748 = vunpack.c.l.b16 %v466
    %v749 = vunpack.c.h.b16 %v466
    %v750 = vunpack.c.l.b16 %v467
    %v751 = vunpack.c.h.b16 %v467
    %v752 = vunpack.c.l.b16 %v468
    %v753 = vunpack.c.h.b16 %v468
    %v754 = vunpack.c.l.b16 %v469
    %v755 = vunpack.c.h.b16 %v469
    %v756 = vunpack.c.l.b16 %v470
    %v757 = vunpack.c.h.b16 %v470
    %v758 = vunpack.c.l.b16 %v471
    %v759 = vunpack.c.h.b16 %v471
    %v760 = vunpack.c.l.b16 %v472
    %v761 = vunpack.c.h.b16 %v472
    %v762 = vunpack.c.l.b16 %v473
    %v763 = vunpack.c.h.b16 %v473
    %v764 = vunpack.c.l.b16 %v474
    %v765 = vunpack.c.h.b16 %v474
    %v766 = vunpack.c.l.b16 %v475
    %v767 = vunpack.c.h.b16 %v475
    %v768 = vunpack.c.l.b16 %v476
    %v769 = vunpack.c.h.b16 %v476
    %v770 = vunpack.c.l.b16 %v477
    %v771 = vunpack.c.h.b16 %v477
    %v772 = vunpack.c.l.b16 %v478
    %v773 = vunpack.c.h.b16 %v478
    %v774 = vunpack.c.l.b16 %v479
    %v775 = vunpack.c.h.b16 %v479
    %v776 = vunpack.c.l.b16 %v480
    %v777 = vunpack.c.h.b16 %v480
    %v778 = vunpack.c.l.b16 %v481
    %v779 = vunpack.c.h.b16 %v481
    %v780 = vunpack.c.l.b16 %v482
    %v781 = vunpack.c.h.b16 %v482
    %v782 = vunpack.c.l.b16 %v483
    %v783 = vunpack.c.h.b16 %v483
    %v784 = vunpack.c.l.b16 %v484
    %v785 = vunpack.c.h.b16 %v484
    %v786 = vunpack.c.l.b16 %v485
    %v787 = vunpack.c.h.b16 %v485
    %v788 = vunpack.c.l.b16 %v486
    %v789 = vunpack.c.h.b16 %v486
    %v790 = vunpack.c.l.b16 %v487
    %v791 = vunpack.c.h.b16 %v487
    %v792 = vunpack.c.l.b16 %v488
    %v793 = vunpack.c.h.b16 %v488
    %v794 = vunpack.c.l.b16 %v489
    %v795 = vunpack.c.h.b16 %v489
    %v796 = vunpack.c.l.b16 %v490
    %v797 = vunpack.c.h.b16 %v490
    %v798 = vunpack.c.l.b16 %v491
    %v799 = vunpack.c.h.b16 %v491
    %v800 = vunpack.c.l.b16 %v492
    %v801 = vunpack.c.h.b16 %v492
    %v802 = vunpack.c.l.b16 %v493
    %v803 = vunpack.c.h.b16 %v493
    %v804 = vunpack.c.l.b16 %v494
    %v805 = vunpack.c.h.b16 %v494
    %v806 = vunpack.c.l.b16 %v495
    %v807 = vunpack.c.h.b16 %v495
    %v808 = vunpack.c.l.b16 %v496
    %v809 = vunpack.c.h.b16 %v496
    %v810 = vunpack.c.l.b16 %v497
    %v811 = vunpack.c.h.b16 %v497
    %v812 = vunpack.c.l.b16 %v498
    %v813 = vunpack.c.h.b16 %v498
    %v814 = vunpack.c.l.b16 %v499
    %v815 = vunpack.c.h.b16 %v499
    %v816 = vunpack.c.l.b16 %v500
    %v817 = vunpack.c.h.b16 %v500
    %v818 = vunpack.c.l.b16 %v501
    %v819 = vunpack.c.h.b16 %v501
    %v820 = vunpack.c.l.b16 %v502
    %v821 = vunpack.c.h.b16 %v502
    %v822 = vunpack.c.l.b16 %v503
    %v823 = vunpack.c.h.b16 %v503
    %v824 = vunpack.c.l.b16 %v504
    %v825 = vunpack.c.h.b16 %v504
    %v826 = vunpack.c.l.b16 %v505
    %v827 = vunpack.c.h.b16 %v505
    %v828 = vunpack.c.l.b16 %v506
    %v829 = vunpack.c.h.b16 %v506
    %v830 = vunpack.c.l.b16 %v507
    %v831 = vunpack.c.h.b16 %v507
    %v832 = vunpack.c.l.b16 %v508
    %v833 = vunpack.c.h.b16 %v508
    %v834 = vunpack.c.l.b16 %v509
    %v835 = vunpack.c.h.b16 %v509
    %v836 = vunpack.c.l.b16 %v510
    %v837 = vunpack.c.h.b16 %v510
    %v838 = vunpack.c.l.b16 %v511
    %v839 = vunpack.c.h.b16 %v511
    %v840 = vunpack.c.l.b16 %v512
    %v841 = vunpack.c.h.b16 %v512
    %v842 = vunpack.c.l.b16 %v513
    %v843 = vunpack.c.h.b16 %v513
    %v844 = vunpack.c.l.b16 %v514
    %v845 = vunpack.c.h.b16 %v514
    %v846 = vunpack.c.l.b16 %v515
    %v847 = vunpack.c.h.b16 %v515
    %v848 = vunpack.c.l.b16 %v516
    %v849 = vunpack.c.h.b16 %v516
    %v850 = vunpack.c.l.b16 %v517
    %v851 = vunpack.c.h.b16 %v517
    %v852 = vunpack.c.l.b16 %v518
    %v853 = vunpack.c.h.b16 %v518
    %v854 = vunpack.c.l.b16 %v519
    %v855 = vunpack.c.h.b16 %v519
    %v856 = vunpack.c.l.b16 %v520
    %v857 = vunpack.c.h.b16 %v520
    %v858 = vunpack.c.l.b16 %v521
    %v859 = vunpack.c.h.b16 %v521
    %v860 = vunpack.c.l.b16 %v522
    %v861 = vunpack.c.h.b16 %v522
    %v862 = vunpack.c.l.b16 %v523
    %v863 = vunpack.c.h.b16 %v523
    %v864 = vunpack.c.l.b16 %v524
    %v865 = vunpack.c.h.b16 %v524
    %v866 = vunpack.c.l.b16 %v525
    %v867 = vunpack.c.h.b16 %v525
    %v868 = vunpack.c.l.b16 %v526
    %v869 = vunpack.c.h.b16 %v526
    %v870 = vunpack.c.l.b16 %v527
    %v871 = vunpack.c.h.b16 %v527
    %v872 = vunpack.c.l.b16 %v528
    %v873 = vunpack.c.h.b16 %v528
    %v874 = vunpack.c.l.b16 %v529
    %v875 = vunpack.c.h.b16 %v529
    %v876 = vunpack.c.l.b16 %v530
    %v877 = vunpack.c.h.b16 %v530
    %v878 = vunpack.c.l.b16 %v531
    %v879 = vunpack.c.h.b16 %v531
    %v880 = vunpack.c.l.b16 %v532
    %v881 = vunpack.c.h.b16 %v532
    %v882 = vunpack.c.l.b16 %v533
    %v883 = vunpack.c.h.b16 %v533
    %v884 = vunpack.c.l.b16 %v534
    %v885 = vunpack.c.h.b16 %v534
    %v886 = vunpack.c.l.b16 %v535
    %v887 = vunpack.c.h.b16 %v535
    %v888 = vunpack.c.l.b16 %v536
    %v889 = vunpack.c.h.b16 %v536
    %v890 = vunpack.c.l.b16 %v537
    %v891 = vunpack.c.h.b16 %v537
    %v892 = vunpack.c.l.b16 %v538
    %v893 = vunpack.c.h.b16 %v538
    %v894 = vunpack.c.l.b16 %v539
    %v895 = vunpack.c.h.b16 %v539
    %v896 = vunpack.c.l.b16 %v540
    %v897 = vunpack.c.h.b16 %v540
    %v898 = vunpack.c.l.b16 %v541
    %v899 = vunpack.c.h.b16 %v541
    %v900 = vunpack.c.l.b16 %v542
    %v901 = vunpack.c.h.b16 %v542
    %v902 = vunpack.c.l.b16 %v543
    %v903 = vunpack.c.h.b16 %v543
    %v904 = vunpack.c.l.b16 %v544
    %v905 = vunpack.c.h.b16 %v544
    %v906 = vunpack.c.l.b16 %v545
    %v907 = vunpack.c.h.b16 %v545
    %v908 = vunpack.c.l.b16 %v546
    %v909 = vunpack.c.h.b16 %v546
    %v910 = vunpack.c.l.b16 %v547
    %v911 = vunpack.c.h.b16 %v547
    %v912 = vunpack.c.l.b16 %v548
    %v913 = vunpack.c.h.b16 %v548
    %v914 = vunpack.c.l.b16 %v549
    %v915 = vunpack.c.h.b16 %v549
    %v916 = vunpack.c.l.b16 %v550
    %v917 = vunpack.c.h.b16 %v550
    %v918 = vunpack.c.l.b16 %v551
    %v919 = vunpack.c.h.b16 %v551
    %v920 = vunpack.c.l.b16 %v552
    %v921 = vunpack.c.h.b16 %v552
    %v922 = vunpack.c.l.b16 %v553
    %v923 = vunpack.c.h.b16 %v553
    %v924 = vunpack.c.l.b16 %v554
    %v925 = vunpack.c.h.b16 %v554
    %v926 = vunpack.c.l.b16 %v555
    %v927 = vunpack.c.h.b16 %v555
    %v928 = vunpack.c.l.b16 %v556
    %v929 = vunpack.c.h.b16 %v556
    %v930 = vunpack.c.l.b16 %v557
    %v931 = vunpack.c.h.b16 %v557
    %v932 = vunpack.c.l.b16 %v558
    %v933 = vunpack.c.h.b16 %v558
    %v934 = vunpack.c.l.b16 %v559
    %v935 = vunpack.c.h.b16 %v559
    %v936 = vunpack.c.l.b16 %v560
    %v937 = vunpack.c.h.b16 %v560
    %v938 = vunpack.c.l.b16 %v561
    %v939 = vunpack.c.h.b16 %v561
    %v940 = vunpack.c.l.b16 %v562
    %v941 = vunpack.c.h.b16 %v562
    %v942 = vunpack.c.l.b16 %v563
    %v943 = vunpack.c.h.b16 %v563
    %v944 = vunpack.c.l.b16 %v564
    %v945 = vunpack.c.h.b16 %v564
    %v946 = vunpack.c.l.b16 %v565
    %v947 = vunpack.c.h.b16 %v565
    %v948 = vunpack.c.l.b16 %v566
    %v949 = vunpack.c.h.b16 %v566
    %v950 = vunpack.c.l.b16 %v567
    %v951 = vunpack.c.h.b16 %v567
    %v952 = vpack.c.b16 %v704, %v696
    %v953 = vpack.c.b16 %v705, %v697
    %v954 = vpack.c.b16 %v706, %v698
    %v955 = vpack.c.b16 %v707, %v699
    %v956 = vpack.c.b16 %v708, %v700
    %v957 = vpack.c.b16 %v709, %v701
    %v958 = vpack.c.b16 %v710, %v702
    %v959 = vpack.c.b16 %v711, %v703
    %v960 = vpack.c.b16 %v720, %v712
    %v961 = vpack.c.b16 %v721, %v713
    %v962 = vpack.c.b16 %v722, %v714
    %v963 = vpack.c.b16 %v723, %v715
    %v964 = vpack.c.b16 %v724, %v716
    %v965 = vpack.c.b16 %v725, %v717
    %v966 = vpack.c.b16 %v726, %v718
    %v967 = vpack.c.b16 %v727, %v719
    %v968 = vpack.c.b16 %v736, %v728
    %v969 = vpack.c.b16 %v737, %v729
    %v970 = vpack.c.b16 %v738, %v730
    %v971 = vpack.c.b16 %v739, %v731
    %v972 = vpack.c.b16 %v740, %v732
    %v973 = vpack.c.b16 %v741, %v733
    %v974 = vpack.c.b16 %v742, %v734
    %v975 = vpack.c.b16 %v743, %v735
    %v976 = vpack.c.b16 %v752, %v744
    %v977 = vpack.c.b16 %v753, %v745
    %v978 = vpack.c.b16 %v754, %v746
    %v979 = vpack.c.b16 %v755, %v747
    %v980 = vpack.c.b16 %v756, %v748
    %v981 = vpack.c.b16 %v757, %v749
    %v982 = vpack.c.b16 %v758, %v750
    %v983 = vpack.c.b16 %v759, %v751
    %v984 = vpack.c.b16 %v768, %v760
    %v985 = vpack.c.b16 %v769, %v761
    %v986 = vpack.c.b16 %v770, %v762
    %v987 = vpack.c.b16 %v771, %v763
    %v988 = vpack.c.b16 %v772, %v764
    %v989 = vpack.c.b16 %v773, %v765
    %v990 = vpack.c.b16 %v774, %v766
    %v991 = vpack.c.b16 %v775, %v767
    %v992 = vpack.c.b16 %v784, %v776
    %v993 = vpack.c.b16 %v785, %v777
    %v994 = vpack.c.b16 %v786, %v778
    %v995 = vpack.c.b16 %v787, %v779
    %v996 = vpack.c.b16 %v788, %v780
    %v997 = vpack.c.b16 %v789, %v781
    %v998 = vpack.c.b16 %v790, %v782
    %v999 = vpack.c.b16 %v791, %v783
    %v1000 = vpack.c.b16 %v800, %v792
    %v1001 = vpack.c.b16 %v801, %v793
    %v1002 = vpack.c.b16 %v802, %v794
    %v1003 = vpack.c.b16 %v803, %v795
    %v1004 = vpack.c.b16 %v804, %v796
    %v1005 = vpack.c.b16 %v805, %v797
    %v1006 = vpack.c.b16 %v806, %v798
    %v1007 = vpack.c.b16 %v807, %v799
    %v1008 = vpack.c.b16 %v816, %v808
    %v1009 = vpack.c.b16 %v817, %v809
    %v1010 = vpack.c.b16 %v818, %v810
    %v1011 = vpack.c.b16 %v819, %v811
    %v1012 = vpack.c.b16 %v820, %v812
    %v1013 = vpack.c.b16 %v821, %v813
    %v1014 = vpack.c.b16 %v822, %v814
    %v1015 = vpack.c.b16 %v823, %v815
    %v1016 = vpack.c.b16 %v832, %v824
    %v1017 = vpack.c.b16 %v833, %v825
    %v1018 = vpack.c.b16 %v834, %v826
    %v1019 = vpack.c.b16 %v835, %v827
    %v1020 = vpack.c.b16 %v836, %v828
    %v1021 = vpack.c.b16 %v837, %v829
    %v1022 = vpack.c.b16 %v838, %v830
    %v1023 = vpack.c.b16 %v839, %v831
    %v1024 = vpack.c.b16 %v848, %v840
    %v1025 = vpack.c.b16 %v849, %v841
    %v1026 = vpack.c.b16 %v850, %v842
    %v1027 = vpack.c.b16 %v851, %v843
    %v1028 = vpack.c.b16 %v852, %v844
    %v1029 = vpack.c.b16 %v853, %v845
    %v1030 = vpack.c.b16 %v854, %v846
    %v1031 = vpack.c.b16 %v855, %v847
    %v1032 = vpack.c.b16 %v864, %v856
    %v1033 = vpack.c.b16 %v865, %v857
    %v1034 = vpack.c.b16 %v866, %v858
    %v1035 = vpack.c.b16 %v867, %v859
    %v1036 = vpack.c.b16 %v868, %v860
    %v1037 = vpack.c.b16 %v869, %v861
    %v1038 = vpack.c.b16 %v870, %v862
    %v1039 = vpack.c.b16 %v871, %v863
    %v1040 = vpack.c.b16 %v880, %v872
    %v1041 = vpack.c.b16 %v881, %v873
    %v1042 = vpack.c.b16 %v882, %v874
    %v1043 = vpack.c.b16 %v883, %v875
    %v1044 = vpack.c.b16 %v884, %v876
    %v1045 = vpack.c.b16 %v885, %v877
    %v1046 = vpack.c.b16 %v886, %v878
    %v1047 = vpack.c.b16 %v887, %v879
    %v1048 = vpack.c.b16 %v896, %v888
    %v1049 = vpack.c.b16 %v897, %v889
    %v1050 = vpack.c.b16 %v898, %v890
    %v1051 = vpack.c.b16 %v899, %v891
    %v1052 = vpack.c.b16 %v900, %v892
    %v1053 = vpack.c.b16 %v901, %v893
    %v1054 = vpack.c.b16 %v902, %v894
    %v1055 = vpack.c.b16 %v903, %v895
    %v1056 = vpack.c.b16 %v912, %v904
    %v1057 = vpack.c.b16 %v913, %v905
    %v1058 = vpack.c.b16 %v914, %v906
    %v1059 = vpack.c.b16 %v915, %v907
    %v1060 = vpack.c.b16 %v916, %v908
    %v1061 = vpack.c.b16 %v917, %v909
    %v1062 = vpack.c.b16 %v918, %v910
    %v1063 = vpack.c.b16 %v919, %v911
    %v1064 = vpack.c.b16 %v928, %v920
    %v1065 = vpack.c.b16 %v929, %v921
    %v1066 = vpack.c.b16 %v930, %v922
    %v1067 = vpack.c.b16 %v931, %v923
    %v1068 = vpack.c.b16 %v932, %v924
    %v1069 = vpack.c.b16 %v933, %v925
    %v1070 = vpack.c.b16 %v934, %v926
    %v1071 = vpack.c.b16 %v935, %v927
    %v1072 = vpack.c.b16 %v944, %v936
    %v1073 = vpack.c.b16 %v945, %v937
    %v1074 = vpack.c.b16 %v946, %v938
    %v1075 = vpack.c.b16 %v947, %v939
    %v1076 = vpack.c.b16 %v948, %v940
    %v1077 = vpack.c.b16 %v949, %v941
    %v1078 = vpack.c.b16 %v950, %v942
    %v1079 = vpack.c.b16 %v951, %v943
    %1208 = vmatprep.subr.bf16.mxu0 %v953
    %1209 = vmatpush1.bf16.msra.mxu0 %v952
    %1210 = vmatprep.subr.bf16.mxu0 %v961
    %1211 = vmatpush1.bf16.msra.mxu0 %v960
    %1212 = vmatprep.subr.bf16.mxu0 %v969
    %1213 = vmatpush1.bf16.msra.mxu0 %v968
    %1214 = vmatprep.subr.bf16.mxu0 %v977
    %1215 = vmatpush1.bf16.msra.mxu0 %v976
    %1216 = vmatprep.subr.bf16.mxu0 %v985
    %1217 = vmatpush1.bf16.msra.mxu0 %v984
    %1218 = vmatprep.subr.bf16.mxu0 %v993
    %1219 = vmatpush1.bf16.msra.mxu0 %v992
    %1220 = vmatprep.subr.bf16.mxu0 %v1001
    %1221 = vmatpush1.bf16.msra.mxu0 %v1000
    %1222 = vmatprep.subr.bf16.mxu0 %v1009
    %1223 = vmatpush1.bf16.msra.mxu0 %v1008
    %1224 = vmatprep.subr.bf16.mxu0 %v1017
    %1225 = vmatpush1.bf16.msra.mxu0 %v1016
    %1226 = vmatprep.subr.bf16.mxu0 %v1025
    %1227 = vmatpush1.bf16.msra.mxu0 %v1024
    %1228 = vmatprep.subr.bf16.mxu0 %v1033
    %1229 = vmatpush1.bf16.msra.mxu0 %v1032
    %1230 = vmatprep.subr.bf16.mxu0 %v1041
    %1231 = vmatpush1.bf16.msra.mxu0 %v1040
    %1232 = vmatprep.subr.bf16.mxu0 %v1049
    %1233 = vmatpush1.bf16.msra.mxu0 %v1048
    %1234 = vmatprep.subr.bf16.mxu0 %v1057
    %1235 = vmatpush1.bf16.msra.mxu0 %v1056
    %1236 = vmatprep.subr.bf16.mxu0 %v1065
    %1237 = vmatpush1.bf16.msra.mxu0 %v1064
    %1238 = vmatprep.subr.bf16.mxu0 %v1073
    %1239 = vmatpush1.bf16.msra.mxu0 %v1072
    %1240 = vmatprep.mubr.bf16.mxu0 %v439
    %1241 = vmatmul.mubr.bf16.gmra.mrb[0].mxu0 %v438
    %v1242 = vpop.f32.mrb[0].mxu0
    %v1243 = vadd.f32 0.0, %v1242
    %v1244 = vpop.f32.mrb[0].mxu0
    %v1245 = vadd.f32 0.0, %v1244
    %v1246 = vpop.f32.mrb[0].mxu0
    %v1247 = vpop.f32.mrb[0].mxu0
    %1248 = vdwg.mxu0
    %1249 = vmatprep.subr.bf16.mxu0 %v955
    %1250 = vmatpush1.bf16.msra.mxu0 %v954
    %1251 = vmatprep.subr.bf16.mxu0 %v963
    %1252 = vmatpush1.bf16.msra.mxu0 %v962
    %1253 = vmatprep.subr.bf16.mxu0 %v971
    %1254 = vmatpush1.bf16.msra.mxu0 %v970
    %1255 = vmatprep.subr.bf16.mxu0 %v979
    %1256 = vmatpush1.bf16.msra.mxu0 %v978
    %1257 = vmatprep.subr.bf16.mxu0 %v987
    %1258 = vmatpush1.bf16.msra.mxu0 %v986
    %1259 = vmatprep.subr.bf16.mxu0 %v995
    %1260 = vmatpush1.bf16.msra.mxu0 %v994
    %1261 = vmatprep.subr.bf16.mxu0 %v1003
    %1262 = vmatpush1.bf16.msra.mxu0 %v1002
    %1263 = vmatprep.subr.bf16.mxu0 %v1011
    %1264 = vmatpush1.bf16.msra.mxu0 %v1010
    %1265 = vmatprep.subr.bf16.mxu0 %v1019
    %1266 = vmatpush1.bf16.msra.mxu0 %v1018
    %1267 = vmatprep.subr.bf16.mxu0 %v1027
    %1268 = vmatpush1.bf16.msra.mxu0 %v1026
    %1269 = vmatprep.subr.bf16.mxu0 %v1035
    %1270 = vmatpush1.bf16.msra.mxu0 %v1034
    %1271 = vmatprep.subr.bf16.mxu0 %v1043
    %1272 = vmatpush1.bf16.msra.mxu0 %v1042
    %1273 = vmatprep.subr.bf16.mxu0 %v1051
    %1274 = vmatpush1.bf16.msra.mxu0 %v1050
    %1275 = vmatprep.subr.bf16.mxu0 %v1059
    %1276 = vmatpush1.bf16.msra.mxu0 %v1058
    %1277 = vmatprep.subr.bf16.mxu0 %v1067
    %1278 = vmatpush1.bf16.msra.mxu0 %v1066
    %1279 = vmatprep.subr.bf16.mxu0 %v1075
    %1280 = vmatpush1.bf16.msra.mxu0 %v1074
    %1281 = vmatprep.mubr.bf16.mxu0 %v439
    %1282 = vmatmul.mubr.bf16.gmra.mrb[0].mxu0 %v438
    %v1283 = vpop.f32.mrb[0].mxu0
    %v1284 = vadd.f32 0.0, %v1283
    %v1285 = vpop.f32.mrb[0].mxu0
    %v1286 = vadd.f32 0.0, %v1285
    %v1287 = vpop.f32.mrb[0].mxu0
    %v1288 = vpop.f32.mrb[0].mxu0
    %1289 = vdwg.mxu0
    %1290 = vmatprep.subr.bf16.mxu0 %v957
    %1291 = vmatpush1.bf16.msra.mxu0 %v956
    %1292 = vmatprep.subr.bf16.mxu0 %v965
    %1293 = vmatpush1.bf16.msra.mxu0 %v964
    %1294 = vmatprep.subr.bf16.mxu0 %v973
    %1295 = vmatpush1.bf16.msra.mxu0 %v972
    %1296 = vmatprep.subr.bf16.mxu0 %v981
    %1297 = vmatpush1.bf16.msra.mxu0 %v980
    %1298 = vmatprep.subr.bf16.mxu0 %v989
    %1299 = vmatpush1.bf16.msra.mxu0 %v988
    %1300 = vmatprep.subr.bf16.mxu0 %v997
    %1301 = vmatpush1.bf16.msra.mxu0 %v996
    %1302 = vmatprep.subr.bf16.mxu0 %v1005
    %1303 = vmatpush1.bf16.msra.mxu0 %v1004
    %1304 = vmatprep.subr.bf16.mxu0 %v1013
    %1305 = vmatpush1.bf16.msra.mxu0 %v1012
    %1306 = vmatprep.subr.bf16.mxu0 %v1021
    %1307 = vmatpush1.bf16.msra.mxu0 %v1020
    %1308 = vmatprep.subr.bf16.mxu0 %v1029
    %1309 = vmatpush1.bf16.msra.mxu0 %v1028
    %1310 = vmatprep.subr.bf16.mxu0 %v1037
    %1311 = vmatpush1.bf16.msra.mxu0 %v1036
    %1312 = vmatprep.subr.bf16.mxu0 %v1045
    %1313 = vmatpush1.bf16.msra.mxu0 %v1044
    %1314 = vmatprep.subr.bf16.mxu0 %v1053
    %1315 = vmatpush1.bf16.msra.mxu0 %v1052
    %1316 = vmatprep.subr.bf16.mxu0 %v1061
    %1317 = vmatpush1.bf16.msra.mxu0 %v1060
    %1318 = vmatprep.subr.bf16.mxu0 %v1069
    %1319 = vmatpush1.bf16.msra.mxu0 %v1068
    %1320 = vmatprep.subr.bf16.mxu0 %v1077
    %1321 = vmatpush1.bf16.msra.mxu0 %v1076
    %1322 = vmatprep.mubr.bf16.mxu0 %v439
    %1323 = vmatmul.mubr.bf16.gmra.mrb[0].mxu0 %v438
    %v1324 = vpop.f32.mrb[0].mxu0
    %v1325 = vadd.f32 0.0, %v1324
    %v1326 = vpop.f32.mrb[0].mxu0
    %v1327 = vadd.f32 0.0, %v1326
    %v1328 = vpop.f32.mrb[0].mxu0
    %v1329 = vpop.f32.mrb[0].mxu0
    %1330 = vdwg.mxu0
    %1331 = vmatprep.subr.bf16.mxu0 %v959
    %1332 = vmatpush1.bf16.msra.mxu0 %v958
    %1333 = vmatprep.subr.bf16.mxu0 %v967
    %1334 = vmatpush1.bf16.msra.mxu0 %v966
    %1335 = vmatprep.subr.bf16.mxu0 %v975
    %1336 = vmatpush1.bf16.msra.mxu0 %v974
    %1337 = vmatprep.subr.bf16.mxu0 %v983
    %1338 = vmatpush1.bf16.msra.mxu0 %v982
    %1339 = vmatprep.subr.bf16.mxu0 %v991
    %1340 = vmatpush1.bf16.msra.mxu0 %v990
    %1341 = vmatprep.subr.bf16.mxu0 %v999
    %1342 = vmatpush1.bf16.msra.mxu0 %v998
    %1343 = vmatprep.subr.bf16.mxu0 %v1007
    %1344 = vmatpush1.bf16.msra.mxu0 %v1006
    %1345 = vmatprep.subr.bf16.mxu0 %v1015
    %1346 = vmatpush1.bf16.msra.mxu0 %v1014
    %1347 = vmatprep.subr.bf16.mxu0 %v1023
    %1348 = vmatpush1.bf16.msra.mxu0 %v1022
    %1349 = vmatprep.subr.bf16.mxu0 %v1031
    %1350 = vmatpush1.bf16.msra.mxu0 %v1030
    %1351 = vmatprep.subr.bf16.mxu0 %v1039
    %1352 = vmatpush1.bf16.msra.mxu0 %v1038
    %1353 = vmatprep.subr.bf16.mxu0 %v1047
    %1354 = vmatpush1.bf16.msra.mxu0 %v1046
    %1355 = vmatprep.subr.bf16.mxu0 %v1055
    %1356 = vmatpush1.bf16.msra.mxu0 %v1054
    %1357 = vmatprep.subr.bf16.mxu0 %v1063
    %1358 = vmatpush1.bf16.msra.mxu0 %v1062
    %1359 = vmatprep.subr.bf16.mxu0 %v1071
    %1360 = vmatpush1.bf16.msra.mxu0 %v1070
    %1361 = vmatprep.subr.bf16.mxu0 %v1079
    %1362 = vmatpush1.bf16.msra.mxu0 %v1078
    %1363 = vmatprep.mubr.bf16.mxu0 %v439
    %1364 = vmatmul.mubr.bf16.gmra.mrb[0].mxu0 %v438
    %v1365 = vpop.f32.mrb[0].mxu0
    %v1366 = vadd.f32 0.0, %v1365
    %v1367 = vpop.f32.mrb[0].mxu0
    %v1368 = vadd.f32 0.0, %v1367
    %v1369 = vpop.f32.mrb[0].mxu0
    %v1370 = vpop.f32.mrb[0].mxu0
    %1371 = vdwg.mxu0
    %s1372 = scalar_lea.vmem [#allocation2], 8
    %v1373 = vld [vmem:[%s1372] sm:$0xff]
    %v1375 = vcombine.high %v1373, %v1373
    %v1377 = vunpack.c.l.s4 1983009808
    %v1378 = vunpack.c.0.s8 %v1377
    %v1379 = vlaneseq
    %v1380 = vshrl.u32 %v1379, 7
    %v1381 = vsub.s32 %v1378, %v1380
    %v1382 = vrot.slane %v1373, %v1381
    %v1384 = vunpack.c.l.s4 1983009808
    %v1385 = vunpack.c.0.s8 %v1384
    %v1386 = vlaneseq
    %v1387 = vshrl.u32 %v1386, 7
    %v1388 = vsub.s32 %v1385, %v1387
    %v1389 = vrot.slane %v1375, %v1388
    %v1390 = vcombine.high %v1382, %v1382
    %v1391 = vcombine.high %v1389, %v1389
    %v1396 = vadd.f32 %v1243, %v1382
    %v1397 = vadd.f32 %v1245, %v1390
    %v1398 = vadd.f32 %v1284, %v1389
    %v1399 = vadd.f32 %v1286, %v1391
    %v1400 = vxor.u32 %v1396, 2147483648
    %v1401 = vmul.f32 %v1400, 1.442695
    %v1402 = vpow.pop %v1401
    %v1403 = vadd.f32 %v1402, 1.0
    %v1404 = vrcp.pop %v1403
    %v1405 = vmul.f32 1.0, %v1404
    %v1406 = vxor.u32 %v1397, 2147483648
    %v1407 = vmul.f32 %v1406, 1.442695
    %v1408 = vpow.pop %v1407
    %v1409 = vadd.f32 %v1408, 1.0
    %v1410 = vrcp.pop %v1409
    %v1411 = vmul.f32 1.0, %v1410
    %v1412 = vtanh.pop %v1398
    %v1413 = vxor.u32 %v1399, 2147483648
    %v1414 = vmul.f32 %v1413, 1.442695
    %v1415 = vpow.pop %v1414
    %v1416 = vadd.f32 %v1415, 1.0
    %v1417 = vrcp.pop %v1416
    %v1418 = vmul.f32 1.0, %v1417
    %v1419 = vmul.f32 %v1411, %v435
    %v1420 = vmul.f32 %v1405, %v1412
    %v1421 = vadd.f32 %v1419, %v1420
    %v1422 = vtanh.pop %v1421
    %v1423 = vmul.f32 %v1418, %v1422
    %v1424 = vadd.f32 %v1325, %v399
    %v1425 = vadd.f32 %v1327, %v403
    %v1426 = vadd.f32 %v1366, %v407
    %v1427 = vadd.f32 %v1368, %v411
    %v1428 = vxor.u32 %v1424, 2147483648
    %v1429 = vmul.f32 %v1428, 1.442695
    %v1430 = vpow.pop %v1429
    %v1431 = vadd.f32 %v1430, 1.0
    %v1432 = vrcp.pop %v1431
    %v1433 = vmul.f32 1.0, %v1432
    %v1434 = vxor.u32 %v1425, 2147483648
    %v1435 = vmul.f32 %v1434, 1.442695
    %v1436 = vpow.pop %v1435
    %v1437 = vadd.f32 %v1436, 1.0
    %v1438 = vrcp.pop %v1437
    %v1439 = vmul.f32 1.0, %v1438
    %v1440 = vtanh.pop %v1426
    %v1441 = vxor.u32 %v1427, 2147483648
    %v1442 = vmul.f32 %v1441, 1.442695
    %v1443 = vpow.pop %v1442
    %v1444 = vadd.f32 %v1443, 1.0
    %v1445 = vrcp.pop %v1444
    %v1446 = vmul.f32 1.0, %v1445
    %v1447 = vmul.f32 %v1439, 0.0
    %v1448 = vmul.f32 %v1433, %v1440
    %v1449 = vadd.f32 %v1447, %v1448
    %v1450 = vtanh.pop %v1449
    %v1451 = vmul.f32 %v1446, %v1450
    %v1452 = vpack.c.bf16 %v1423, %v1423
    %v1453 = vpack.c.bf16 %v1451, %v1451
    %1454 = vmatprep.subr.bf16.mxu0 %v953
    %1455 = vmatpush1.bf16.msra.mxu0 %v952
    %1456 = vmatprep.subr.bf16.mxu0 %v961
    %1457 = vmatpush1.bf16.msra.mxu0 %v960
    %1458 = vmatprep.subr.bf16.mxu0 %v969
    %1459 = vmatpush1.bf16.msra.mxu0 %v968
    %1460 = vmatprep.subr.bf16.mxu0 %v977
    %1461 = vmatpush1.bf16.msra.mxu0 %v976
    %1462 = vmatprep.subr.bf16.mxu0 %v985
    %1463 = vmatpush1.bf16.msra.mxu0 %v984
    %1464 = vmatprep.subr.bf16.mxu0 %v993
    %1465 = vmatpush1.bf16.msra.mxu0 %v992
    %1466 = vmatprep.subr.bf16.mxu0 %v1001
    %1467 = vmatpush1.bf16.msra.mxu0 %v1000
    %1468 = vmatprep.subr.bf16.mxu0 %v1009
    %1469 = vmatpush1.bf16.msra.mxu0 %v1008
    %1470 = vmatprep.subr.bf16.mxu0 %v1017
    %1471 = vmatpush1.bf16.msra.mxu0 %v1016
    %1472 = vmatprep.subr.bf16.mxu0 %v1025
    %1473 = vmatpush1.bf16.msra.mxu0 %v1024
    %1474 = vmatprep.subr.bf16.mxu0 %v1033
    %1475 = vmatpush1.bf16.msra.mxu0 %v1032
    %1476 = vmatprep.subr.bf16.mxu0 %v1041
    %1477 = vmatpush1.bf16.msra.mxu0 %v1040
    %1478 = vmatprep.subr.bf16.mxu0 %v1049
    %1479 = vmatpush1.bf16.msra.mxu0 %v1048
    %1480 = vmatprep.subr.bf16.mxu0 %v1057
    %1481 = vmatpush1.bf16.msra.mxu0 %v1056
    %1482 = vmatprep.subr.bf16.mxu0 %v1065
    %1483 = vmatpush1.bf16.msra.mxu0 %v1064
    %1484 = vmatprep.subr.bf16.mxu0 %v1073
    %1485 = vmatpush1.bf16.msra.mxu0 %v1072
    %1486 = vmatprep.mubr.bf16.mxu0 %v1453
    %1487 = vmatmul.mubr.bf16.gmra.mrb[0].mxu0 %v1452
    %v1488 = vpop.f32.mrb[0].mxu0
    %v1489 = vadd.f32 0.0, %v1488
    %v1490 = vpop.f32.mrb[0].mxu0
    %v1491 = vadd.f32 0.0, %v1490
    %v1492 = vpop.f32.mrb[0].mxu0
    %v1493 = vpop.f32.mrb[0].mxu0
    %1494 = vdwg.mxu0
    %1495 = vmatprep.subr.bf16.mxu0 %v955
    %1496 = vmatpush1.bf16.msra.mxu0 %v954
    %1497 = vmatprep.subr.bf16.mxu0 %v963
    %1498 = vmatpush1.bf16.msra.mxu0 %v962
    %1499 = vmatprep.subr.bf16.mxu0 %v971
    %1500 = vmatpush1.bf16.msra.mxu0 %v970
    %1501 = vmatprep.subr.bf16.mxu0 %v979
    %1502 = vmatpush1.bf16.msra.mxu0 %v978
    %1503 = vmatprep.subr.bf16.mxu0 %v987
    %1504 = vmatpush1.bf16.msra.mxu0 %v986
    %1505 = vmatprep.subr.bf16.mxu0 %v995
    %1506 = vmatpush1.bf16.msra.mxu0 %v994
    %1507 = vmatprep.subr.bf16.mxu0 %v1003
    %1508 = vmatpush1.bf16.msra.mxu0 %v1002
    %1509 = vmatprep.subr.bf16.mxu0 %v1011
    %1510 = vmatpush1.bf16.msra.mxu0 %v1010
    %1511 = vmatprep.subr.bf16.mxu0 %v1019
    %1512 = vmatpush1.bf16.msra.mxu0 %v1018
    %1513 = vmatprep.subr.bf16.mxu0 %v1027
    %1514 = vmatpush1.bf16.msra.mxu0 %v1026
    %1515 = vmatprep.subr.bf16.mxu0 %v1035
    %1516 = vmatpush1.bf16.msra.mxu0 %v1034
    %1517 = vmatprep.subr.bf16.mxu0 %v1043
    %1518 = vmatpush1.bf16.msra.mxu0 %v1042
    %1519 = vmatprep.subr.bf16.mxu0 %v1051
    %1520 = vmatpush1.bf16.msra.mxu0 %v1050
    %1521 = vmatprep.subr.bf16.mxu0 %v1059
    %1522 = vmatpush1.bf16.msra.mxu0 %v1058
    %1523 = vmatprep.subr.bf16.mxu0 %v1067
    %1524 = vmatpush1.bf16.msra.mxu0 %v1066
    %1525 = vmatprep.subr.bf16.mxu0 %v1075
    %1526 = vmatpush1.bf16.msra.mxu0 %v1074
    %1527 = vmatprep.mubr.bf16.mxu0 %v1453
    %1528 = vmatmul.mubr.bf16.gmra.mrb[0].mxu0 %v1452
    %v1529 = vpop.f32.mrb[0].mxu0
    %v1530 = vadd.f32 0.0, %v1529
    %v1531 = vpop.f32.mrb[0].mxu0
    %v1532 = vadd.f32 0.0, %v1531
    %v1533 = vpop.f32.mrb[0].mxu0
    %v1534 = vpop.f32.mrb[0].mxu0
    %1535 = vdwg.mxu0
    %1536 = vmatprep.subr.bf16.mxu0 %v957
    %1537 = vmatpush1.bf16.msra.mxu0 %v956
    %1538 = vmatprep.subr.bf16.mxu0 %v965
    %1539 = vmatpush1.bf16.msra.mxu0 %v964
    %1540 = vmatprep.subr.bf16.mxu0 %v973
    %1541 = vmatpush1.bf16.msra.mxu0 %v972
    %1542 = vmatprep.subr.bf16.mxu0 %v981
    %1543 = vmatpush1.bf16.msra.mxu0 %v980
    %1544 = vmatprep.subr.bf16.mxu0 %v989
    %1545 = vmatpush1.bf16.msra.mxu0 %v988
    %1546 = vmatprep.subr.bf16.mxu0 %v997
    %1547 = vmatpush1.bf16.msra.mxu0 %v996
    %1548 = vmatprep.subr.bf16.mxu0 %v1005
    %1549 = vmatpush1.bf16.msra.mxu0 %v1004
    %1550 = vmatprep.subr.bf16.mxu0 %v1013
    %1551 = vmatpush1.bf16.msra.mxu0 %v1012
    %1552 = vmatprep.subr.bf16.mxu0 %v1021
    %1553 = vmatpush1.bf16.msra.mxu0 %v1020
    %1554 = vmatprep.subr.bf16.mxu0 %v1029
    %1555 = vmatpush1.bf16.msra.mxu0 %v1028
    %1556 = vmatprep.subr.bf16.mxu0 %v1037
    %1557 = vmatpush1.bf16.msra.mxu0 %v1036
    %1558 = vmatprep.subr.bf16.mxu0 %v1045
    %1559 = vmatpush1.bf16.msra.mxu0 %v1044
    %1560 = vmatprep.subr.bf16.mxu0 %v1053
    %1561 = vmatpush1.bf16.msra.mxu0 %v1052
    %1562 = vmatprep.subr.bf16.mxu0 %v1061
    %1563 = vmatpush1.bf16.msra.mxu0 %v1060
    %1564 = vmatprep.subr.bf16.mxu0 %v1069
    %1565 = vmatpush1.bf16.msra.mxu0 %v1068
    %1566 = vmatprep.subr.bf16.mxu0 %v1077
    %1567 = vmatpush1.bf16.msra.mxu0 %v1076
    %1568 = vmatprep.mubr.bf16.mxu0 %v1453
    %1569 = vmatmul.mubr.bf16.gmra.mrb[0].mxu0 %v1452
    %v1570 = vpop.f32.mrb[0].mxu0
    %v1571 = vadd.f32 0.0, %v1570
    %v1572 = vpop.f32.mrb[0].mxu0
    %v1573 = vadd.f32 0.0, %v1572
    %v1574 = vpop.f32.mrb[0].mxu0
    %v1575 = vpop.f32.mrb[0].mxu0
    %1576 = vdwg.mxu0
    %1577 = vmatprep.subr.bf16.mxu0 %v959
    %1578 = vmatpush1.bf16.msra.mxu0 %v958
    %1579 = vmatprep.subr.bf16.mxu0 %v967
    %1580 = vmatpush1.bf16.msra.mxu0 %v966
    %1581 = vmatprep.subr.bf16.mxu0 %v975
    %1582 = vmatpush1.bf16.msra.mxu0 %v974
    %1583 = vmatprep.subr.bf16.mxu0 %v983
    %1584 = vmatpush1.bf16.msra.mxu0 %v982
    %1585 = vmatprep.subr.bf16.mxu0 %v991
    %1586 = vmatpush1.bf16.msra.mxu0 %v990
    %1587 = vmatprep.subr.bf16.mxu0 %v999
    %1588 = vmatpush1.bf16.msra.mxu0 %v998
    %1589 = vmatprep.subr.bf16.mxu0 %v1007
    %1590 = vmatpush1.bf16.msra.mxu0 %v1006
    %1591 = vmatprep.subr.bf16.mxu0 %v1015
    %1592 = vmatpush1.bf16.msra.mxu0 %v1014
    %1593 = vmatprep.subr.bf16.mxu0 %v1023
    %1594 = vmatpush1.bf16.msra.mxu0 %v1022
    %1595 = vmatprep.subr.bf16.mxu0 %v1031
    %1596 = vmatpush1.bf16.msra.mxu0 %v1030
    %1597 = vmatprep.subr.bf16.mxu0 %v1039
    %1598 = vmatpush1.bf16.msra.mxu0 %v1038
    %1599 = vmatprep.subr.bf16.mxu0 %v1047
    %1600 = vmatpush1.bf16.msra.mxu0 %v1046
    %1601 = vmatprep.subr.bf16.mxu0 %v1055
    %1602 = vmatpush1.bf16.msra.mxu0 %v1054
    %1603 = vmatprep.subr.bf16.mxu0 %v1063
    %1604 = vmatpush1.bf16.msra.mxu0 %v1062
    %1605 = vmatprep.subr.bf16.mxu0 %v1071
    %1606 = vmatpush1.bf16.msra.mxu0 %v1070
    %1607 = vmatprep.subr.bf16.mxu0 %v1079
    %1608 = vmatpush1.bf16.msra.mxu0 %v1078
    %1609 = vmatprep.mubr.bf16.mxu0 %v1453
    %1610 = vmatmul.mubr.bf16.gmra.mrb[0].mxu0 %v1452
    %v1611 = vpop.f32.mrb[0].mxu0
    %v1612 = vadd.f32 0.0, %v1611
    %v1613 = vpop.f32.mrb[0].mxu0
    %v1614 = vadd.f32 0.0, %v1613
    %v1615 = vpop.f32.mrb[0].mxu0
    %v1616 = vpop.f32.mrb[0].mxu0
    %1617 = vdwg.mxu0
    %s1618 = scalar_lea.vmem [#allocation2], 16
    %v1619 = vld [vmem:[%s1618] sm:$0xff]
    %v1621 = vcombine.high %v1619, %v1619
    %v1623 = vunpack.c.l.s4 1983009808
    %v1624 = vunpack.c.0.s8 %v1623
    %v1625 = vlaneseq
    %v1626 = vshrl.u32 %v1625, 7
    %v1627 = vsub.s32 %v1624, %v1626
    %v1628 = vrot.slane %v1619, %v1627
    %v1630 = vunpack.c.l.s4 1983009808
    %v1631 = vunpack.c.0.s8 %v1630
    %v1632 = vlaneseq
    %v1633 = vshrl.u32 %v1632, 7
    %v1634 = vsub.s32 %v1631, %v1633
    %v1635 = vrot.slane %v1621, %v1634
    %v1636 = vcombine.high %v1628, %v1628
    %v1637 = vcombine.high %v1635, %v1635
    %v1642 = vadd.f32 %v1489, %v1628
    %v1643 = vadd.f32 %v1491, %v1636
    %v1644 = vadd.f32 %v1530, %v1635
    %v1645 = vadd.f32 %v1532, %v1637
    %v1646 = vxor.u32 %v1642, 2147483648
    %v1647 = vmul.f32 %v1646, 1.442695
    %v1648 = vpow.pop %v1647
    %v1649 = vadd.f32 %v1648, 1.0
    %v1650 = vrcp.pop %v1649
    %v1651 = vmul.f32 1.0, %v1650
    %v1652 = vxor.u32 %v1643, 2147483648
    %v1653 = vmul.f32 %v1652, 1.442695
    %v1654 = vpow.pop %v1653
    %v1655 = vadd.f32 %v1654, 1.0
    %v1656 = vrcp.pop %v1655
    %v1657 = vmul.f32 1.0, %v1656
    %v1658 = vtanh.pop %v1644
    %v1659 = vxor.u32 %v1645, 2147483648
    %v1660 = vmul.f32 %v1659, 1.442695
    %v1661 = vpow.pop %v1660
    %v1662 = vadd.f32 %v1661, 1.0
    %v1663 = vrcp.pop %v1662
    %v1664 = vmul.f32 1.0, %v1663
    %v1665 = vmul.f32 %v1657, %v1421
    %v1666 = vmul.f32 %v1651, %v1658
    %v1667 = vadd.f32 %v1665, %v1666
    %v1668 = vtanh.pop %v1667
    %v1669 = vmul.f32 %v1664, %v1668
    %v1670 = vadd.f32 %v1571, %v399
    %v1671 = vadd.f32 %v1573, %v403
    %v1672 = vadd.f32 %v1612, %v407
    %v1673 = vadd.f32 %v1614, %v411
    %v1674 = vxor.u32 %v1670, 2147483648
    %v1675 = vmul.f32 %v1674, 1.442695
    %v1676 = vpow.pop %v1675
    %v1677 = vadd.f32 %v1676, 1.0
    %v1678 = vrcp.pop %v1677
    %v1679 = vmul.f32 1.0, %v1678
    %v1680 = vxor.u32 %v1671, 2147483648
    %v1681 = vmul.f32 %v1680, 1.442695
    %v1682 = vpow.pop %v1681
    %v1683 = vadd.f32 %v1682, 1.0
    %v1684 = vrcp.pop %v1683
    %v1685 = vmul.f32 1.0, %v1684
    %v1686 = vtanh.pop %v1672
    %v1687 = vxor.u32 %v1673, 2147483648
    %v1688 = vmul.f32 %v1687, 1.442695
    %v1689 = vpow.pop %v1688
    %v1690 = vadd.f32 %v1689, 1.0
    %v1691 = vrcp.pop %v1690
    %v1692 = vmul.f32 1.0, %v1691
    %v1693 = vmul.f32 %v1685, %v1449
    %v1694 = vmul.f32 %v1679, %v1686
    %v1695 = vadd.f32 %v1693, %v1694
    %v1696 = vtanh.pop %v1695
    %v1697 = vmul.f32 %v1692, %v1696
    %v1698 = vpack.c.bf16 %v1669, %v1669
    %v1699 = vpack.c.bf16 %v1697, %v1697
    %1700 = vmatprep.subr.bf16.mxu0 %v953
    %1701 = vmatpush1.bf16.msra.mxu0 %v952
    %1702 = vmatprep.subr.bf16.mxu0 %v961
    %1703 = vmatpush1.bf16.msra.mxu0 %v960
    %1704 = vmatprep.subr.bf16.mxu0 %v969
    %1705 = vmatpush1.bf16.msra.mxu0 %v968
    %1706 = vmatprep.subr.bf16.mxu0 %v977
    %1707 = vmatpush1.bf16.msra.mxu0 %v976
    %1708 = vmatprep.subr.bf16.mxu0 %v985
    %1709 = vmatpush1.bf16.msra.mxu0 %v984
    %1710 = vmatprep.subr.bf16.mxu0 %v993
    %1711 = vmatpush1.bf16.msra.mxu0 %v992
    %1712 = vmatprep.subr.bf16.mxu0 %v1001
    %1713 = vmatpush1.bf16.msra.mxu0 %v1000
    %1714 = vmatprep.subr.bf16.mxu0 %v1009
    %1715 = vmatpush1.bf16.msra.mxu0 %v1008
    %1716 = vmatprep.subr.bf16.mxu0 %v1017
    %1717 = vmatpush1.bf16.msra.mxu0 %v1016
    %1718 = vmatprep.subr.bf16.mxu0 %v1025
    %1719 = vmatpush1.bf16.msra.mxu0 %v1024
    %1720 = vmatprep.subr.bf16.mxu0 %v1033
    %1721 = vmatpush1.bf16.msra.mxu0 %v1032
    %1722 = vmatprep.subr.bf16.mxu0 %v1041
    %1723 = vmatpush1.bf16.msra.mxu0 %v1040
    %1724 = vmatprep.subr.bf16.mxu0 %v1049
    %1725 = vmatpush1.bf16.msra.mxu0 %v1048
    %1726 = vmatprep.subr.bf16.mxu0 %v1057
    %1727 = vmatpush1.bf16.msra.mxu0 %v1056
    %1728 = vmatprep.subr.bf16.mxu0 %v1065
    %1729 = vmatpush1.bf16.msra.mxu0 %v1064
    %1730 = vmatprep.subr.bf16.mxu0 %v1073
    %1731 = vmatpush1.bf16.msra.mxu0 %v1072
    %1732 = vmatprep.mubr.bf16.mxu0 %v1699
    %1733 = vmatmul.mubr.bf16.gmra.mrb[0].mxu0 %v1698
    %v1734 = vpop.f32.mrb[0].mxu0
    %v1735 = vadd.f32 0.0, %v1734
    %v1736 = vpop.f32.mrb[0].mxu0
    %v1737 = vadd.f32 0.0, %v1736
    %v1738 = vpop.f32.mrb[0].mxu0
    %v1739 = vpop.f32.mrb[0].mxu0
    %1740 = vdwg.mxu0
    %1741 = vmatprep.subr.bf16.mxu0 %v955
    %1742 = vmatpush1.bf16.msra.mxu0 %v954
    %1743 = vmatprep.subr.bf16.mxu0 %v963
    %1744 = vmatpush1.bf16.msra.mxu0 %v962
    %1745 = vmatprep.subr.bf16.mxu0 %v971
    %1746 = vmatpush1.bf16.msra.mxu0 %v970
    %1747 = vmatprep.subr.bf16.mxu0 %v979
    %1748 = vmatpush1.bf16.msra.mxu0 %v978
    %1749 = vmatprep.subr.bf16.mxu0 %v987
    %1750 = vmatpush1.bf16.msra.mxu0 %v986
    %1751 = vmatprep.subr.bf16.mxu0 %v995
    %1752 = vmatpush1.bf16.msra.mxu0 %v994
    %1753 = vmatprep.subr.bf16.mxu0 %v1003
    %1754 = vmatpush1.bf16.msra.mxu0 %v1002
    %1755 = vmatprep.subr.bf16.mxu0 %v1011
    %1756 = vmatpush1.bf16.msra.mxu0 %v1010
    %1757 = vmatprep.subr.bf16.mxu0 %v1019
    %1758 = vmatpush1.bf16.msra.mxu0 %v1018
    %1759 = vmatprep.subr.bf16.mxu0 %v1027
    %1760 = vmatpush1.bf16.msra.mxu0 %v1026
    %1761 = vmatprep.subr.bf16.mxu0 %v1035
    %1762 = vmatpush1.bf16.msra.mxu0 %v1034
    %1763 = vmatprep.subr.bf16.mxu0 %v1043
    %1764 = vmatpush1.bf16.msra.mxu0 %v1042
    %1765 = vmatprep.subr.bf16.mxu0 %v1051
    %1766 = vmatpush1.bf16.msra.mxu0 %v1050
    %1767 = vmatprep.subr.bf16.mxu0 %v1059
    %1768 = vmatpush1.bf16.msra.mxu0 %v1058
    %1769 = vmatprep.subr.bf16.mxu0 %v1067
    %1770 = vmatpush1.bf16.msra.mxu0 %v1066
    %1771 = vmatprep.subr.bf16.mxu0 %v1075
    %1772 = vmatpush1.bf16.msra.mxu0 %v1074
    %1773 = vmatprep.mubr.bf16.mxu0 %v1699
    %1774 = vmatmul.mubr.bf16.gmra.mrb[0].mxu0 %v1698
    %v1775 = vpop.f32.mrb[0].mxu0
    %v1776 = vadd.f32 0.0, %v1775
    %v1777 = vpop.f32.mrb[0].mxu0
    %v1778 = vadd.f32 0.0, %v1777
    %v1779 = vpop.f32.mrb[0].mxu0
    %v1780 = vpop.f32.mrb[0].mxu0
    %1781 = vdwg.mxu0
    %1782 = vmatprep.subr.bf16.mxu0 %v957
    %1783 = vmatpush1.bf16.msra.mxu0 %v956
    %1784 = vmatprep.subr.bf16.mxu0 %v965
    %1785 = vmatpush1.bf16.msra.mxu0 %v964
    %1786 = vmatprep.subr.bf16.mxu0 %v973
    %1787 = vmatpush1.bf16.msra.mxu0 %v972
    %1788 = vmatprep.subr.bf16.mxu0 %v981
    %1789 = vmatpush1.bf16.msra.mxu0 %v980
    %1790 = vmatprep.subr.bf16.mxu0 %v989
    %1791 = vmatpush1.bf16.msra.mxu0 %v988
    %1792 = vmatprep.subr.bf16.mxu0 %v997
    %1793 = vmatpush1.bf16.msra.mxu0 %v996
    %1794 = vmatprep.subr.bf16.mxu0 %v1005
    %1795 = vmatpush1.bf16.msra.mxu0 %v1004
    %1796 = vmatprep.subr.bf16.mxu0 %v1013
    %1797 = vmatpush1.bf16.msra.mxu0 %v1012
    %1798 = vmatprep.subr.bf16.mxu0 %v1021
    %1799 = vmatpush1.bf16.msra.mxu0 %v1020
    %1800 = vmatprep.subr.bf16.mxu0 %v1029
    %1801 = vmatpush1.bf16.msra.mxu0 %v1028
    %1802 = vmatprep.subr.bf16.mxu0 %v1037
    %1803 = vmatpush1.bf16.msra.mxu0 %v1036
    %1804 = vmatprep.subr.bf16.mxu0 %v1045
    %1805 = vmatpush1.bf16.msra.mxu0 %v1044
    %1806 = vmatprep.subr.bf16.mxu0 %v1053
    %1807 = vmatpush1.bf16.msra.mxu0 %v1052
    %1808 = vmatprep.subr.bf16.mxu0 %v1061
    %1809 = vmatpush1.bf16.msra.mxu0 %v1060
    %1810 = vmatprep.subr.bf16.mxu0 %v1069
    %1811 = vmatpush1.bf16.msra.mxu0 %v1068
    %1812 = vmatprep.subr.bf16.mxu0 %v1077
    %1813 = vmatpush1.bf16.msra.mxu0 %v1076
    %1814 = vmatprep.mubr.bf16.mxu0 %v1699
    %1815 = vmatmul.mubr.bf16.gmra.mrb[0].mxu0 %v1698
    %v1816 = vpop.f32.mrb[0].mxu0
    %v1817 = vadd.f32 0.0, %v1816
    %v1818 = vpop.f32.mrb[0].mxu0
    %v1819 = vadd.f32 0.0, %v1818
    %v1820 = vpop.f32.mrb[0].mxu0
    %v1821 = vpop.f32.mrb[0].mxu0
    %1822 = vdwg.mxu0
    %1823 = vmatprep.subr.bf16.mxu0 %v959
    %1824 = vmatpush1.bf16.msra.mxu0 %v958
    %1825 = vmatprep.subr.bf16.mxu0 %v967
    %1826 = vmatpush1.bf16.msra.mxu0 %v966
    %1827 = vmatprep.subr.bf16.mxu0 %v975
    %1828 = vmatpush1.bf16.msra.mxu0 %v974
    %1829 = vmatprep.subr.bf16.mxu0 %v983
    %1830 = vmatpush1.bf16.msra.mxu0 %v982
    %1831 = vmatprep.subr.bf16.mxu0 %v991
    %1832 = vmatpush1.bf16.msra.mxu0 %v990
    %1833 = vmatprep.subr.bf16.mxu0 %v999
    %1834 = vmatpush1.bf16.msra.mxu0 %v998
    %1835 = vmatprep.subr.bf16.mxu0 %v1007
    %1836 = vmatpush1.bf16.msra.mxu0 %v1006
    %1837 = vmatprep.subr.bf16.mxu0 %v1015
    %1838 = vmatpush1.bf16.msra.mxu0 %v1014
    %1839 = vmatprep.subr.bf16.mxu0 %v1023
    %1840 = vmatpush1.bf16.msra.mxu0 %v1022
    %1841 = vmatprep.subr.bf16.mxu0 %v1031
    %1842 = vmatpush1.bf16.msra.mxu0 %v1030
    %1843 = vmatprep.subr.bf16.mxu0 %v1039
    %1844 = vmatpush1.bf16.msra.mxu0 %v1038
    %1845 = vmatprep.subr.bf16.mxu0 %v1047
    %1846 = vmatpush1.bf16.msra.mxu0 %v1046
    %1847 = vmatprep.subr.bf16.mxu0 %v1055
    %1848 = vmatpush1.bf16.msra.mxu0 %v1054
    %1849 = vmatprep.subr.bf16.mxu0 %v1063
    %1850 = vmatpush1.bf16.msra.mxu0 %v1062
    %1851 = vmatprep.subr.bf16.mxu0 %v1071
    %1852 = vmatpush1.bf16.msra.mxu0 %v1070
    %1853 = vmatprep.subr.bf16.mxu0 %v1079
    %1854 = vmatpush1.bf16.msra.mxu0 %v1078
    %1855 = vmatprep.mubr.bf16.mxu0 %v1699
    %1856 = vmatmul.mubr.bf16.gmra.mrb[0].mxu0 %v1698
    %v1857 = vpop.f32.mrb[0].mxu0
    %v1858 = vadd.f32 0.0, %v1857
    %v1859 = vpop.f32.mrb[0].mxu0
    %v1860 = vadd.f32 0.0, %v1859
    %v1861 = vpop.f32.mrb[0].mxu0
    %v1862 = vpop.f32.mrb[0].mxu0
    %1863 = vdwg.mxu0
    %s1864 = scalar_lea.vmem [#allocation2], 24
    %v1865 = vld [vmem:[%s1864] sm:$0xff]
    %v1867 = vcombine.high %v1865, %v1865
    %v1869 = vunpack.c.l.s4 1983009808
    %v1870 = vunpack.c.0.s8 %v1869
    %v1871 = vlaneseq
    %v1872 = vshrl.u32 %v1871, 7
    %v1873 = vsub.s32 %v1870, %v1872
    %v1874 = vrot.slane %v1865, %v1873
    %v1876 = vunpack.c.l.s4 1983009808
    %v1877 = vunpack.c.0.s8 %v1876
    %v1878 = vlaneseq
    %v1879 = vshrl.u32 %v1878, 7
    %v1880 = vsub.s32 %v1877, %v1879
    %v1881 = vrot.slane %v1867, %v1880
    %v1882 = vcombine.high %v1874, %v1874
    %v1883 = vcombine.high %v1881, %v1881
    %v1888 = vadd.f32 %v1735, %v1874
    %v1889 = vadd.f32 %v1737, %v1882
    %v1890 = vadd.f32 %v1776, %v1881
    %v1891 = vadd.f32 %v1778, %v1883
    %v1892 = vxor.u32 %v1888, 2147483648
    %v1893 = vmul.f32 %v1892, 1.442695
    %v1894 = vpow.pop %v1893
    %v1895 = vadd.f32 %v1894, 1.0
    %v1896 = vrcp.pop %v1895
    %v1897 = vmul.f32 1.0, %v1896
    %v1898 = vxor.u32 %v1889, 2147483648
    %v1899 = vmul.f32 %v1898, 1.442695
    %v1900 = vpow.pop %v1899
    %v1901 = vadd.f32 %v1900, 1.0
    %v1902 = vrcp.pop %v1901
    %v1903 = vmul.f32 1.0, %v1902
    %v1904 = vtanh.pop %v1890
    %v1905 = vxor.u32 %v1891, 2147483648
    %v1906 = vmul.f32 %v1905, 1.442695
    %v1907 = vpow.pop %v1906
    %v1908 = vadd.f32 %v1907, 1.0
    %v1909 = vrcp.pop %v1908
    %v1910 = vmul.f32 1.0, %v1909
    %v1911 = vmul.f32 %v1903, %v1667
    %v1912 = vmul.f32 %v1897, %v1904
    %v1913 = vadd.f32 %v1911, %v1912
    %v1914 = vtanh.pop %v1913
    %v1915 = vmul.f32 %v1910, %v1914
    %v1916 = vadd.f32 %v1817, %v399
    %v1917 = vadd.f32 %v1819, %v403
    %v1918 = vadd.f32 %v1858, %v407
    %v1919 = vadd.f32 %v1860, %v411
    %v1920 = vxor.u32 %v1916, 2147483648
    %v1921 = vmul.f32 %v1920, 1.442695
    %v1922 = vpow.pop %v1921
    %v1923 = vadd.f32 %v1922, 1.0
    %v1924 = vrcp.pop %v1923
    %v1925 = vmul.f32 1.0, %v1924
    %v1926 = vxor.u32 %v1917, 2147483648
    %v1927 = vmul.f32 %v1926, 1.442695
    %v1928 = vpow.pop %v1927
    %v1929 = vadd.f32 %v1928, 1.0
    %v1930 = vrcp.pop %v1929
    %v1931 = vmul.f32 1.0, %v1930
    %v1932 = vtanh.pop %v1918
    %v1933 = vxor.u32 %v1919, 2147483648
    %v1934 = vmul.f32 %v1933, 1.442695
    %v1935 = vpow.pop %v1934
    %v1936 = vadd.f32 %v1935, 1.0
    %v1937 = vrcp.pop %v1936
    %v1938 = vmul.f32 1.0, %v1937
    %v1939 = vmul.f32 %v1931, %v1695
    %v1940 = vmul.f32 %v1925, %v1932
    %v1941 = vadd.f32 %v1939, %v1940
    %v1942 = vtanh.pop %v1941
    %v1943 = vmul.f32 %v1938, %v1942
    %v1944 = vpack.c.bf16 %v1915, %v1915
    %v1945 = vpack.c.bf16 %v1943, %v1943
    %1946 = vmatprep.subr.bf16.mxu0 %v953
    %1947 = vmatpush1.bf16.msra.mxu0 %v952
    %1948 = vmatprep.subr.bf16.mxu0 %v961
    %1949 = vmatpush1.bf16.msra.mxu0 %v960
    %1950 = vmatprep.subr.bf16.mxu0 %v969
    %1951 = vmatpush1.bf16.msra.mxu0 %v968
    %1952 = vmatprep.subr.bf16.mxu0 %v977
    %1953 = vmatpush1.bf16.msra.mxu0 %v976
    %1954 = vmatprep.subr.bf16.mxu0 %v985
    %1955 = vmatpush1.bf16.msra.mxu0 %v984
    %1956 = vmatprep.subr.bf16.mxu0 %v993
    %1957 = vmatpush1.bf16.msra.mxu0 %v992
    %1958 = vmatprep.subr.bf16.mxu0 %v1001
    %1959 = vmatpush1.bf16.msra.mxu0 %v1000
    %1960 = vmatprep.subr.bf16.mxu0 %v1009
    %1961 = vmatpush1.bf16.msra.mxu0 %v1008
    %1962 = vmatprep.subr.bf16.mxu0 %v1017
    %1963 = vmatpush1.bf16.msra.mxu0 %v1016
    %1964 = vmatprep.subr.bf16.mxu0 %v1025
    %1965 = vmatpush1.bf16.msra.mxu0 %v1024
    %1966 = vmatprep.subr.bf16.mxu0 %v1033
    %1967 = vmatpush1.bf16.msra.mxu0 %v1032
    %1968 = vmatprep.subr.bf16.mxu0 %v1041
    %1969 = vmatpush1.bf16.msra.mxu0 %v1040
    %1970 = vmatprep.subr.bf16.mxu0 %v1049
    %1971 = vmatpush1.bf16.msra.mxu0 %v1048
    %1972 = vmatprep.subr.bf16.mxu0 %v1057
    %1973 = vmatpush1.bf16.msra.mxu0 %v1056
    %1974 = vmatprep.subr.bf16.mxu0 %v1065
    %1975 = vmatpush1.bf16.msra.mxu0 %v1064
    %1976 = vmatprep.subr.bf16.mxu0 %v1073
    %1977 = vmatpush1.bf16.msra.mxu0 %v1072
    %1978 = vmatprep.mubr.bf16.mxu0 %v1945
    %1979 = vmatmul.mubr.bf16.gmra.mrb[0].mxu0 %v1944
    %v1980 = vpop.f32.mrb[0].mxu0
    %v1981 = vadd.f32 0.0, %v1980
    %v1982 = vpop.f32.mrb[0].mxu0
    %v1983 = vadd.f32 0.0, %v1982
    %v1984 = vpop.f32.mrb[0].mxu0
    %v1985 = vpop.f32.mrb[0].mxu0
    %1986 = vdwg.mxu0
    %1987 = vmatprep.subr.bf16.mxu0 %v955
    %1988 = vmatpush1.bf16.msra.mxu0 %v954
    %1989 = vmatprep.subr.bf16.mxu0 %v963
    %1990 = vmatpush1.bf16.msra.mxu0 %v962
    %1991 = vmatprep.subr.bf16.mxu0 %v971
    %1992 = vmatpush1.bf16.msra.mxu0 %v970
    %1993 = vmatprep.subr.bf16.mxu0 %v979
    %1994 = vmatpush1.bf16.msra.mxu0 %v978
    %1995 = vmatprep.subr.bf16.mxu0 %v987
    %1996 = vmatpush1.bf16.msra.mxu0 %v986
    %1997 = vmatprep.subr.bf16.mxu0 %v995
    %1998 = vmatpush1.bf16.msra.mxu0 %v994
    %1999 = vmatprep.subr.bf16.mxu0 %v1003
    %2000 = vmatpush1.bf16.msra.mxu0 %v1002
    %2001 = vmatprep.subr.bf16.mxu0 %v1011
    %2002 = vmatpush1.bf16.msra.mxu0 %v1010
    %2003 = vmatprep.subr.bf16.mxu0 %v1019
    %2004 = vmatpush1.bf16.msra.mxu0 %v1018
    %2005 = vmatprep.subr.bf16.mxu0 %v1027
    %2006 = vmatpush1.bf16.msra.mxu0 %v1026
    %2007 = vmatprep.subr.bf16.mxu0 %v1035
    %2008 = vmatpush1.bf16.msra.mxu0 %v1034
    %2009 = vmatprep.subr.bf16.mxu0 %v1043
    %2010 = vmatpush1.bf16.msra.mxu0 %v1042
    %2011 = vmatprep.subr.bf16.mxu0 %v1051
    %2012 = vmatpush1.bf16.msra.mxu0 %v1050
    %2013 = vmatprep.subr.bf16.mxu0 %v1059
    %2014 = vmatpush1.bf16.msra.mxu0 %v1058
    %2015 = vmatprep.subr.bf16.mxu0 %v1067
    %2016 = vmatpush1.bf16.msra.mxu0 %v1066
    %2017 = vmatprep.subr.bf16.mxu0 %v1075
    %2018 = vmatpush1.bf16.msra.mxu0 %v1074
    %2019 = vmatprep.mubr.bf16.mxu0 %v1945
    %2020 = vmatmul.mubr.bf16.gmra.mrb[0].mxu0 %v1944
    %v2021 = vpop.f32.mrb[0].mxu0
    %v2022 = vadd.f32 0.0, %v2021
    %v2023 = vpop.f32.mrb[0].mxu0
    %v2024 = vadd.f32 0.0, %v2023
    %v2025 = vpop.f32.mrb[0].mxu0
    %v2026 = vpop.f32.mrb[0].mxu0
    %2027 = vdwg.mxu0
    %2028 = vmatprep.subr.bf16.mxu0 %v957
    %2029 = vmatpush1.bf16.msra.mxu0 %v956
    %2030 = vmatprep.subr.bf16.mxu0 %v965
    %2031 = vmatpush1.bf16.msra.mxu0 %v964
    %2032 = vmatprep.subr.bf16.mxu0 %v973
    %2033 = vmatpush1.bf16.msra.mxu0 %v972
    %2034 = vmatprep.subr.bf16.mxu0 %v981
    %2035 = vmatpush1.bf16.msra.mxu0 %v980
    %2036 = vmatprep.subr.bf16.mxu0 %v989
    %2037 = vmatpush1.bf16.msra.mxu0 %v988
    %2038 = vmatprep.subr.bf16.mxu0 %v997
    %2039 = vmatpush1.bf16.msra.mxu0 %v996
    %2040 = vmatprep.subr.bf16.mxu0 %v1005
    %2041 = vmatpush1.bf16.msra.mxu0 %v1004
    %2042 = vmatprep.subr.bf16.mxu0 %v1013
    %2043 = vmatpush1.bf16.msra.mxu0 %v1012
    %2044 = vmatprep.subr.bf16.mxu0 %v1021
    %2045 = vmatpush1.bf16.msra.mxu0 %v1020
    %2046 = vmatprep.subr.bf16.mxu0 %v1029
    %2047 = vmatpush1.bf16.msra.mxu0 %v1028
    %2048 = vmatprep.subr.bf16.mxu0 %v1037
    %2049 = vmatpush1.bf16.msra.mxu0 %v1036
    %2050 = vmatprep.subr.bf16.mxu0 %v1045
    %2051 = vmatpush1.bf16.msra.mxu0 %v1044
    %2052 = vmatprep.subr.bf16.mxu0 %v1053
    %2053 = vmatpush1.bf16.msra.mxu0 %v1052
    %2054 = vmatprep.subr.bf16.mxu0 %v1061
    %2055 = vmatpush1.bf16.msra.mxu0 %v1060
    %2056 = vmatprep.subr.bf16.mxu0 %v1069
    %2057 = vmatpush1.bf16.msra.mxu0 %v1068
    %2058 = vmatprep.subr.bf16.mxu0 %v1077
    %2059 = vmatpush1.bf16.msra.mxu0 %v1076
    %2060 = vmatprep.mubr.bf16.mxu0 %v1945
    %2061 = vmatmul.mubr.bf16.gmra.mrb[0].mxu0 %v1944
    %v2062 = vpop.f32.mrb[0].mxu0
    %v2063 = vadd.f32 0.0, %v2062
    %v2064 = vpop.f32.mrb[0].mxu0
    %v2065 = vadd.f32 0.0, %v2064
    %v2066 = vpop.f32.mrb[0].mxu0
    %v2067 = vpop.f32.mrb[0].mxu0
    %2068 = vdwg.mxu0
    %2069 = vmatprep.subr.bf16.mxu0 %v959
    %2070 = vmatpush1.bf16.msra.mxu0 %v958
    %2071 = vmatprep.subr.bf16.mxu0 %v967
    %2072 = vmatpush1.bf16.msra.mxu0 %v966
    %2073 = vmatprep.subr.bf16.mxu0 %v975
    %2074 = vmatpush1.bf16.msra.mxu0 %v974
    %2075 = vmatprep.subr.bf16.mxu0 %v983
    %2076 = vmatpush1.bf16.msra.mxu0 %v982
    %2077 = vmatprep.subr.bf16.mxu0 %v991
    %2078 = vmatpush1.bf16.msra.mxu0 %v990
    %2079 = vmatprep.subr.bf16.mxu0 %v999
    %2080 = vmatpush1.bf16.msra.mxu0 %v998
    %2081 = vmatprep.subr.bf16.mxu0 %v1007
    %2082 = vmatpush1.bf16.msra.mxu0 %v1006
    %2083 = vmatprep.subr.bf16.mxu0 %v1015
    %2084 = vmatpush1.bf16.msra.mxu0 %v1014
    %2085 = vmatprep.subr.bf16.mxu0 %v1023
    %2086 = vmatpush1.bf16.msra.mxu0 %v1022
    %2087 = vmatprep.subr.bf16.mxu0 %v1031
    %2088 = vmatpush1.bf16.msra.mxu0 %v1030
    %2089 = vmatprep.subr.bf16.mxu0 %v1039
    %2090 = vmatpush1.bf16.msra.mxu0 %v1038
    %2091 = vmatprep.subr.bf16.mxu0 %v1047
    %2092 = vmatpush1.bf16.msra.mxu0 %v1046
    %2093 = vmatprep.subr.bf16.mxu0 %v1055
    %2094 = vmatpush1.bf16.msra.mxu0 %v1054
    %2095 = vmatprep.subr.bf16.mxu0 %v1063
    %2096 = vmatpush1.bf16.msra.mxu0 %v1062
    %2097 = vmatprep.subr.bf16.mxu0 %v1071
    %2098 = vmatpush1.bf16.msra.mxu0 %v1070
    %2099 = vmatprep.subr.bf16.mxu0 %v1079
    %2100 = vmatpush1.bf16.msra.mxu0 %v1078
    %2101 = vmatprep.mubr.bf16.mxu0 %v1945
    %2102 = vmatmul.mubr.bf16.gmra.mrb[0].mxu0 %v1944
    %v2103 = vpop.f32.mrb[0].mxu0
    %v2104 = vadd.f32 0.0, %v2103
    %v2105 = vpop.f32.mrb[0].mxu0
    %v2106 = vadd.f32 0.0, %v2105
    %v2107 = vpop.f32.mrb[0].mxu0
    %v2108 = vpop.f32.mrb[0].mxu0
    %2109 = vdwg.mxu0
    %s2110 = scalar_lea.vmem [#allocation2], 32
    %v2111 = vld [vmem:[%s2110] sm:$0xff]
    %v2113 = vcombine.high %v2111, %v2111
    %v2115 = vunpack.c.l.s4 1983009808
    %v2116 = vunpack.c.0.s8 %v2115
    %v2117 = vlaneseq
    %v2118 = vshrl.u32 %v2117, 7
    %v2119 = vsub.s32 %v2116, %v2118
    %v2120 = vrot.slane %v2111, %v2119
    %v2122 = vunpack.c.l.s4 1983009808
    %v2123 = vunpack.c.0.s8 %v2122
    %v2124 = vlaneseq
    %v2125 = vshrl.u32 %v2124, 7
    %v2126 = vsub.s32 %v2123, %v2125
    %v2127 = vrot.slane %v2113, %v2126
    %v2128 = vcombine.high %v2120, %v2120
    %v2129 = vcombine.high %v2127, %v2127
    %v2134 = vadd.f32 %v1981, %v2120
    %v2135 = vadd.f32 %v1983, %v2128
    %v2136 = vadd.f32 %v2022, %v2127
    %v2137 = vadd.f32 %v2024, %v2129
    %v2138 = vxor.u32 %v2134, 2147483648
    %v2139 = vmul.f32 %v2138, 1.442695
    %v2140 = vpow.pop %v2139
    %v2141 = vadd.f32 %v2140, 1.0
    %v2142 = vrcp.pop %v2141
    %v2143 = vmul.f32 1.0, %v2142
    %v2144 = vxor.u32 %v2135, 2147483648
    %v2145 = vmul.f32 %v2144, 1.442695
    %v2146 = vpow.pop %v2145
    %v2147 = vadd.f32 %v2146, 1.0
    %v2148 = vrcp.pop %v2147
    %v2149 = vmul.f32 1.0, %v2148
    %v2150 = vtanh.pop %v2136
    %v2151 = vxor.u32 %v2137, 2147483648
    %v2152 = vmul.f32 %v2151, 1.442695
    %v2153 = vpow.pop %v2152
    %v2154 = vadd.f32 %v2153, 1.0
    %v2155 = vrcp.pop %v2154
    %v2156 = vmul.f32 1.0, %v2155
    %v2157 = vmul.f32 %v2149, %v1913
    %v2158 = vmul.f32 %v2143, %v2150
    %v2159 = vadd.f32 %v2157, %v2158
    %v2160 = vtanh.pop %v2159
    %v2161 = vmul.f32 %v2156, %v2160
    %v2162 = vadd.f32 %v2063, %v399
    %v2163 = vadd.f32 %v2065, %v403
    %v2164 = vadd.f32 %v2104, %v407
    %v2165 = vadd.f32 %v2106, %v411
    %v2166 = vxor.u32 %v2162, 2147483648
    %v2167 = vmul.f32 %v2166, 1.442695
    %v2168 = vpow.pop %v2167
    %v2169 = vadd.f32 %v2168, 1.0
    %v2170 = vrcp.pop %v2169
    %v2171 = vmul.f32 1.0, %v2170
    %v2172 = vxor.u32 %v2163, 2147483648
    %v2173 = vmul.f32 %v2172, 1.442695
    %v2174 = vpow.pop %v2173
    %v2175 = vadd.f32 %v2174, 1.0
    %v2176 = vrcp.pop %v2175
    %v2177 = vmul.f32 1.0, %v2176
    %v2178 = vtanh.pop %v2164
    %v2179 = vxor.u32 %v2165, 2147483648
    %v2180 = vmul.f32 %v2179, 1.442695
    %v2181 = vpow.pop %v2180
    %v2182 = vadd.f32 %v2181, 1.0
    %v2183 = vrcp.pop %v2182
    %v2184 = vmul.f32 1.0, %v2183
    %v2185 = vmul.f32 %v2177, %v1941
    %v2186 = vmul.f32 %v2171, %v2178
    %v2187 = vadd.f32 %v2185, %v2186
    %v2188 = vtanh.pop %v2187
    %v2189 = vmul.f32 %v2184, %v2188
    %v2190 = vpack.c.bf16 %v2161, %v2161
    %v2191 = vpack.c.bf16 %v2189, %v2189
    %2192 = vmatprep.subr.bf16.mxu0 %v953
    %2193 = vmatpush1.bf16.msra.mxu0 %v952
    %2194 = vmatprep.subr.bf16.mxu0 %v961
    %2195 = vmatpush1.bf16.msra.mxu0 %v960
    %2196 = vmatprep.subr.bf16.mxu0 %v969
    %2197 = vmatpush1.bf16.msra.mxu0 %v968
    %2198 = vmatprep.subr.bf16.mxu0 %v977
    %2199 = vmatpush1.bf16.msra.mxu0 %v976
    %2200 = vmatprep.subr.bf16.mxu0 %v985
    %2201 = vmatpush1.bf16.msra.mxu0 %v984
    %2202 = vmatprep.subr.bf16.mxu0 %v993
    %2203 = vmatpush1.bf16.msra.mxu0 %v992
    %2204 = vmatprep.subr.bf16.mxu0 %v1001
    %2205 = vmatpush1.bf16.msra.mxu0 %v1000
    %2206 = vmatprep.subr.bf16.mxu0 %v1009
    %2207 = vmatpush1.bf16.msra.mxu0 %v1008
    %2208 = vmatprep.subr.bf16.mxu0 %v1017
    %2209 = vmatpush1.bf16.msra.mxu0 %v1016
    %2210 = vmatprep.subr.bf16.mxu0 %v1025
    %2211 = vmatpush1.bf16.msra.mxu0 %v1024
    %2212 = vmatprep.subr.bf16.mxu0 %v1033
    %2213 = vmatpush1.bf16.msra.mxu0 %v1032
    %2214 = vmatprep.subr.bf16.mxu0 %v1041
    %2215 = vmatpush1.bf16.msra.mxu0 %v1040
    %2216 = vmatprep.subr.bf16.mxu0 %v1049
    %2217 = vmatpush1.bf16.msra.mxu0 %v1048
    %2218 = vmatprep.subr.bf16.mxu0 %v1057
    %2219 = vmatpush1.bf16.msra.mxu0 %v1056
    %2220 = vmatprep.subr.bf16.mxu0 %v1065
    %2221 = vmatpush1.bf16.msra.mxu0 %v1064
    %2222 = vmatprep.subr.bf16.mxu0 %v1073
    %2223 = vmatpush1.bf16.msra.mxu0 %v1072
    %2224 = vmatprep.mubr.bf16.mxu0 %v2191
    %2225 = vmatmul.mubr.bf16.gmra.mrb[0].mxu0 %v2190
    %v2226 = vpop.f32.mrb[0].mxu0
    %v2227 = vadd.f32 0.0, %v2226
    %v2228 = vpop.f32.mrb[0].mxu0
    %v2229 = vadd.f32 0.0, %v2228
    %v2230 = vpop.f32.mrb[0].mxu0
    %v2231 = vpop.f32.mrb[0].mxu0
    %2232 = vdwg.mxu0
    %2233 = vmatprep.subr.bf16.mxu0 %v955
    %2234 = vmatpush1.bf16.msra.mxu0 %v954
    %2235 = vmatprep.subr.bf16.mxu0 %v963
    %2236 = vmatpush1.bf16.msra.mxu0 %v962
    %2237 = vmatprep.subr.bf16.mxu0 %v971
    %2238 = vmatpush1.bf16.msra.mxu0 %v970
    %2239 = vmatprep.subr.bf16.mxu0 %v979
    %2240 = vmatpush1.bf16.msra.mxu0 %v978
    %2241 = vmatprep.subr.bf16.mxu0 %v987
    %2242 = vmatpush1.bf16.msra.mxu0 %v986
    %2243 = vmatprep.subr.bf16.mxu0 %v995
    %2244 = vmatpush1.bf16.msra.mxu0 %v994
    %2245 = vmatprep.subr.bf16.mxu0 %v1003
    %2246 = vmatpush1.bf16.msra.mxu0 %v1002
    %2247 = vmatprep.subr.bf16.mxu0 %v1011
    %2248 = vmatpush1.bf16.msra.mxu0 %v1010
    %2249 = vmatprep.subr.bf16.mxu0 %v1019
    %2250 = vmatpush1.bf16.msra.mxu0 %v1018
    %2251 = vmatprep.subr.bf16.mxu0 %v1027
    %2252 = vmatpush1.bf16.msra.mxu0 %v1026
    %2253 = vmatprep.subr.bf16.mxu0 %v1035
    %2254 = vmatpush1.bf16.msra.mxu0 %v1034
    %2255 = vmatprep.subr.bf16.mxu0 %v1043
    %2256 = vmatpush1.bf16.msra.mxu0 %v1042
    %2257 = vmatprep.subr.bf16.mxu0 %v1051
    %2258 = vmatpush1.bf16.msra.mxu0 %v1050
    %2259 = vmatprep.subr.bf16.mxu0 %v1059
    %2260 = vmatpush1.bf16.msra.mxu0 %v1058
    %2261 = vmatprep.subr.bf16.mxu0 %v1067
    %2262 = vmatpush1.bf16.msra.mxu0 %v1066
    %2263 = vmatprep.subr.bf16.mxu0 %v1075
    %2264 = vmatpush1.bf16.msra.mxu0 %v1074
    %2265 = vmatprep.mubr.bf16.mxu0 %v2191
    %2266 = vmatmul.mubr.bf16.gmra.mrb[0].mxu0 %v2190
    %v2267 = vpop.f32.mrb[0].mxu0
    %v2268 = vadd.f32 0.0, %v2267
    %v2269 = vpop.f32.mrb[0].mxu0
    %v2270 = vadd.f32 0.0, %v2269
    %v2271 = vpop.f32.mrb[0].mxu0
    %v2272 = vpop.f32.mrb[0].mxu0
    %2273 = vdwg.mxu0
    %2274 = vmatprep.subr.bf16.mxu0 %v957
    %2275 = vmatpush1.bf16.msra.mxu0 %v956
    %2276 = vmatprep.subr.bf16.mxu0 %v965
    %2277 = vmatpush1.bf16.msra.mxu0 %v964
    %2278 = vmatprep.subr.bf16.mxu0 %v973
    %2279 = vmatpush1.bf16.msra.mxu0 %v972
    %2280 = vmatprep.subr.bf16.mxu0 %v981
    %2281 = vmatpush1.bf16.msra.mxu0 %v980
    %2282 = vmatprep.subr.bf16.mxu0 %v989
    %2283 = vmatpush1.bf16.msra.mxu0 %v988
    %2284 = vmatprep.subr.bf16.mxu0 %v997
    %2285 = vmatpush1.bf16.msra.mxu0 %v996
    %2286 = vmatprep.subr.bf16.mxu0 %v1005
    %2287 = vmatpush1.bf16.msra.mxu0 %v1004
    %2288 = vmatprep.subr.bf16.mxu0 %v1013
    %2289 = vmatpush1.bf16.msra.mxu0 %v1012
    %2290 = vmatprep.subr.bf16.mxu0 %v1021
    %2291 = vmatpush1.bf16.msra.mxu0 %v1020
    %2292 = vmatprep.subr.bf16.mxu0 %v1029
    %2293 = vmatpush1.bf16.msra.mxu0 %v1028
    %2294 = vmatprep.subr.bf16.mxu0 %v1037
    %2295 = vmatpush1.bf16.msra.mxu0 %v1036
    %2296 = vmatprep.subr.bf16.mxu0 %v1045
    %2297 = vmatpush1.bf16.msra.mxu0 %v1044
    %2298 = vmatprep.subr.bf16.mxu0 %v1053
    %2299 = vmatpush1.bf16.msra.mxu0 %v1052
    %2300 = vmatprep.subr.bf16.mxu0 %v1061
    %2301 = vmatpush1.bf16.msra.mxu0 %v1060
    %2302 = vmatprep.subr.bf16.mxu0 %v1069
    %2303 = vmatpush1.bf16.msra.mxu0 %v1068
    %2304 = vmatprep.subr.bf16.mxu0 %v1077
    %2305 = vmatpush1.bf16.msra.mxu0 %v1076
    %2306 = vmatprep.mubr.bf16.mxu0 %v2191
    %2307 = vmatmul.mubr.bf16.gmra.mrb[0].mxu0 %v2190
    %v2308 = vpop.f32.mrb[0].mxu0
    %v2309 = vadd.f32 0.0, %v2308
    %v2310 = vpop.f32.mrb[0].mxu0
    %v2311 = vadd.f32 0.0, %v2310
    %v2312 = vpop.f32.mrb[0].mxu0
    %v2313 = vpop.f32.mrb[0].mxu0
    %2314 = vdwg.mxu0
    %2315 = vmatprep.subr.bf16.mxu0 %v959
    %2316 = vmatpush1.bf16.msra.mxu0 %v958
    %2317 = vmatprep.subr.bf16.mxu0 %v967
    %2318 = vmatpush1.bf16.msra.mxu0 %v966
    %2319 = vmatprep.subr.bf16.mxu0 %v975
    %2320 = vmatpush1.bf16.msra.mxu0 %v974
    %2321 = vmatprep.subr.bf16.mxu0 %v983
    %2322 = vmatpush1.bf16.msra.mxu0 %v982
    %2323 = vmatprep.subr.bf16.mxu0 %v991
    %2324 = vmatpush1.bf16.msra.mxu0 %v990
    %2325 = vmatprep.subr.bf16.mxu0 %v999
    %2326 = vmatpush1.bf16.msra.mxu0 %v998
    %2327 = vmatprep.subr.bf16.mxu0 %v1007
    %2328 = vmatpush1.bf16.msra.mxu0 %v1006
    %2329 = vmatprep.subr.bf16.mxu0 %v1015
    %2330 = vmatpush1.bf16.msra.mxu0 %v1014
    %2331 = vmatprep.subr.bf16.mxu0 %v1023
    %2332 = vmatpush1.bf16.msra.mxu0 %v1022
    %2333 = vmatprep.subr.bf16.mxu0 %v1031
    %2334 = vmatpush1.bf16.msra.mxu0 %v1030
    %2335 = vmatprep.subr.bf16.mxu0 %v1039
    %2336 = vmatpush1.bf16.msra.mxu0 %v1038
    %2337 = vmatprep.subr.bf16.mxu0 %v1047
    %2338 = vmatpush1.bf16.msra.mxu0 %v1046
    %2339 = vmatprep.subr.bf16.mxu0 %v1055
    %2340 = vmatpush1.bf16.msra.mxu0 %v1054
    %2341 = vmatprep.subr.bf16.mxu0 %v1063
    %2342 = vmatpush1.bf16.msra.mxu0 %v1062
    %2343 = vmatprep.subr.bf16.mxu0 %v1071
    %2344 = vmatpush1.bf16.msra.mxu0 %v1070
    %2345 = vmatprep.subr.bf16.mxu0 %v1079
    %2346 = vmatpush1.bf16.msra.mxu0 %v1078
    %2347 = vmatprep.mubr.bf16.mxu0 %v2191
    %2348 = vmatmul.mubr.bf16.gmra.mrb[0].mxu0 %v2190
    %v2349 = vpop.f32.mrb[0].mxu0
    %v2350 = vadd.f32 0.0, %v2349
    %v2351 = vpop.f32.mrb[0].mxu0
    %v2352 = vadd.f32 0.0, %v2351
    %v2353 = vpop.f32.mrb[0].mxu0
    %v2354 = vpop.f32.mrb[0].mxu0
    %2355 = vdwg.mxu0
    %s2356 = scalar_lea.vmem [#allocation2], 40
    %v2357 = vld [vmem:[%s2356] sm:$0xff]
    %v2359 = vcombine.high %v2357, %v2357
    %v2361 = vunpack.c.l.s4 1983009808
    %v2362 = vunpack.c.0.s8 %v2361
    %v2363 = vlaneseq
    %v2364 = vshrl.u32 %v2363, 7
    %v2365 = vsub.s32 %v2362, %v2364
    %v2366 = vrot.slane %v2357, %v2365
    %v2368 = vunpack.c.l.s4 1983009808
    %v2369 = vunpack.c.0.s8 %v2368
    %v2370 = vlaneseq
    %v2371 = vshrl.u32 %v2370, 7
    %v2372 = vsub.s32 %v2369, %v2371
    %v2373 = vrot.slane %v2359, %v2372
    %v2374 = vcombine.high %v2366, %v2366
    %v2375 = vcombine.high %v2373, %v2373
    %v2380 = vadd.f32 %v2227, %v2366
    %v2381 = vadd.f32 %v2229, %v2374
    %v2382 = vadd.f32 %v2268, %v2373
    %v2383 = vadd.f32 %v2270, %v2375
    %v2384 = vxor.u32 %v2380, 2147483648
    %v2385 = vmul.f32 %v2384, 1.442695
    %v2386 = vpow.pop %v2385
    %v2387 = vadd.f32 %v2386, 1.0
    %v2388 = vrcp.pop %v2387
    %v2389 = vmul.f32 1.0, %v2388
    %v2390 = vxor.u32 %v2381, 2147483648
    %v2391 = vmul.f32 %v2390, 1.442695
    %v2392 = vpow.pop %v2391
    %v2393 = vadd.f32 %v2392, 1.0
    %v2394 = vrcp.pop %v2393
    %v2395 = vmul.f32 1.0, %v2394
    %v2396 = vtanh.pop %v2382
    %v2397 = vxor.u32 %v2383, 2147483648
    %v2398 = vmul.f32 %v2397, 1.442695
    %v2399 = vpow.pop %v2398
    %v2400 = vadd.f32 %v2399, 1.0
    %v2401 = vrcp.pop %v2400
    %v2402 = vmul.f32 1.0, %v2401
    %v2403 = vmul.f32 %v2395, %v2159
    %v2404 = vmul.f32 %v2389, %v2396
    %v2405 = vadd.f32 %v2403, %v2404
    %v2406 = vtanh.pop %v2405
    %v2407 = vmul.f32 %v2402, %v2406
    %v2408 = vadd.f32 %v2309, %v399
    %v2409 = vadd.f32 %v2311, %v403
    %v2410 = vadd.f32 %v2350, %v407
    %v2411 = vadd.f32 %v2352, %v411
    %v2412 = vxor.u32 %v2408, 2147483648
    %v2413 = vmul.f32 %v2412, 1.442695
    %v2414 = vpow.pop %v2413
    %v2415 = vadd.f32 %v2414, 1.0
    %v2416 = vrcp.pop %v2415
    %v2417 = vmul.f32 1.0, %v2416
    %v2418 = vxor.u32 %v2409, 2147483648
    %v2419 = vmul.f32 %v2418, 1.442695
    %v2420 = vpow.pop %v2419
    %v2421 = vadd.f32 %v2420, 1.0
    %v2422 = vrcp.pop %v2421
    %v2423 = vmul.f32 1.0, %v2422
    %v2424 = vtanh.pop %v2410
    %v2425 = vxor.u32 %v2411, 2147483648
    %v2426 = vmul.f32 %v2425, 1.442695
    %v2427 = vpow.pop %v2426
    %v2428 = vadd.f32 %v2427, 1.0
    %v2429 = vrcp.pop %v2428
    %v2430 = vmul.f32 1.0, %v2429
    %v2431 = vmul.f32 %v2423, %v2187
    %v2432 = vmul.f32 %v2417, %v2424
    %v2433 = vadd.f32 %v2431, %v2432
    %v2434 = vtanh.pop %v2433
    %v2435 = vmul.f32 %v2430, %v2434
    %v2436 = vpack.c.bf16 %v2407, %v2407
    %v2437 = vpack.c.bf16 %v2435, %v2435
    %2438 = vmatprep.subr.bf16.mxu0 %v953
    %2439 = vmatpush1.bf16.msra.mxu0 %v952
    %2440 = vmatprep.subr.bf16.mxu0 %v961
    %2441 = vmatpush1.bf16.msra.mxu0 %v960
    %2442 = vmatprep.subr.bf16.mxu0 %v969
    %2443 = vmatpush1.bf16.msra.mxu0 %v968
    %2444 = vmatprep.subr.bf16.mxu0 %v977
    %2445 = vmatpush1.bf16.msra.mxu0 %v976
    %2446 = vmatprep.subr.bf16.mxu0 %v985
    %2447 = vmatpush1.bf16.msra.mxu0 %v984
    %2448 = vmatprep.subr.bf16.mxu0 %v993
    %2449 = vmatpush1.bf16.msra.mxu0 %v992
    %2450 = vmatprep.subr.bf16.mxu0 %v1001
    %2451 = vmatpush1.bf16.msra.mxu0 %v1000
    %2452 = vmatprep.subr.bf16.mxu0 %v1009
    %2453 = vmatpush1.bf16.msra.mxu0 %v1008
    %2454 = vmatprep.subr.bf16.mxu0 %v1017
    %2455 = vmatpush1.bf16.msra.mxu0 %v1016
    %2456 = vmatprep.subr.bf16.mxu0 %v1025
    %2457 = vmatpush1.bf16.msra.mxu0 %v1024
    %2458 = vmatprep.subr.bf16.mxu0 %v1033
    %2459 = vmatpush1.bf16.msra.mxu0 %v1032
    %2460 = vmatprep.subr.bf16.mxu0 %v1041
    %2461 = vmatpush1.bf16.msra.mxu0 %v1040
    %2462 = vmatprep.subr.bf16.mxu0 %v1049
    %2463 = vmatpush1.bf16.msra.mxu0 %v1048
    %2464 = vmatprep.subr.bf16.mxu0 %v1057
    %2465 = vmatpush1.bf16.msra.mxu0 %v1056
    %2466 = vmatprep.subr.bf16.mxu0 %v1065
    %2467 = vmatpush1.bf16.msra.mxu0 %v1064
    %2468 = vmatprep.subr.bf16.mxu0 %v1073
    %2469 = vmatpush1.bf16.msra.mxu0 %v1072
    %2470 = vmatprep.mubr.bf16.mxu0 %v2437
    %2471 = vmatmul.mubr.bf16.gmra.mrb[0].mxu0 %v2436
    %v2472 = vpop.f32.mrb[0].mxu0
    %v2473 = vadd.f32 0.0, %v2472
    %v2474 = vpop.f32.mrb[0].mxu0
    %v2475 = vadd.f32 0.0, %v2474
    %v2476 = vpop.f32.mrb[0].mxu0
    %v2477 = vpop.f32.mrb[0].mxu0
    %2478 = vdwg.mxu0
    %2479 = vmatprep.subr.bf16.mxu0 %v955
    %2480 = vmatpush1.bf16.msra.mxu0 %v954
    %2481 = vmatprep.subr.bf16.mxu0 %v963
    %2482 = vmatpush1.bf16.msra.mxu0 %v962
    %2483 = vmatprep.subr.bf16.mxu0 %v971
    %2484 = vmatpush1.bf16.msra.mxu0 %v970
    %2485 = vmatprep.subr.bf16.mxu0 %v979
    %2486 = vmatpush1.bf16.msra.mxu0 %v978
    %2487 = vmatprep.subr.bf16.mxu0 %v987
    %2488 = vmatpush1.bf16.msra.mxu0 %v986
    %2489 = vmatprep.subr.bf16.mxu0 %v995
    %2490 = vmatpush1.bf16.msra.mxu0 %v994
    %2491 = vmatprep.subr.bf16.mxu0 %v1003
    %2492 = vmatpush1.bf16.msra.mxu0 %v1002
    %2493 = vmatprep.subr.bf16.mxu0 %v1011
    %2494 = vmatpush1.bf16.msra.mxu0 %v1010
    %2495 = vmatprep.subr.bf16.mxu0 %v1019
    %2496 = vmatpush1.bf16.msra.mxu0 %v1018
    %2497 = vmatprep.subr.bf16.mxu0 %v1027
    %2498 = vmatpush1.bf16.msra.mxu0 %v1026
    %2499 = vmatprep.subr.bf16.mxu0 %v1035
    %2500 = vmatpush1.bf16.msra.mxu0 %v1034
    %2501 = vmatprep.subr.bf16.mxu0 %v1043
    %2502 = vmatpush1.bf16.msra.mxu0 %v1042
    %2503 = vmatprep.subr.bf16.mxu0 %v1051
    %2504 = vmatpush1.bf16.msra.mxu0 %v1050
    %2505 = vmatprep.subr.bf16.mxu0 %v1059
    %2506 = vmatpush1.bf16.msra.mxu0 %v1058
    %2507 = vmatprep.subr.bf16.mxu0 %v1067
    %2508 = vmatpush1.bf16.msra.mxu0 %v1066
    %2509 = vmatprep.subr.bf16.mxu0 %v1075
    %2510 = vmatpush1.bf16.msra.mxu0 %v1074
    %2511 = vmatprep.mubr.bf16.mxu0 %v2437
    %2512 = vmatmul.mubr.bf16.gmra.mrb[0].mxu0 %v2436
    %v2513 = vpop.f32.mrb[0].mxu0
    %v2514 = vadd.f32 0.0, %v2513
    %v2515 = vpop.f32.mrb[0].mxu0
    %v2516 = vadd.f32 0.0, %v2515
    %v2517 = vpop.f32.mrb[0].mxu0
    %v2518 = vpop.f32.mrb[0].mxu0
    %2519 = vdwg.mxu0
    %2520 = vmatprep.subr.bf16.mxu0 %v957
    %2521 = vmatpush1.bf16.msra.mxu0 %v956
    %2522 = vmatprep.subr.bf16.mxu0 %v965
    %2523 = vmatpush1.bf16.msra.mxu0 %v964
    %2524 = vmatprep.subr.bf16.mxu0 %v973
    %2525 = vmatpush1.bf16.msra.mxu0 %v972
    %2526 = vmatprep.subr.bf16.mxu0 %v981
    %2527 = vmatpush1.bf16.msra.mxu0 %v980
    %2528 = vmatprep.subr.bf16.mxu0 %v989
    %2529 = vmatpush1.bf16.msra.mxu0 %v988
    %2530 = vmatprep.subr.bf16.mxu0 %v997
    %2531 = vmatpush1.bf16.msra.mxu0 %v996
    %2532 = vmatprep.subr.bf16.mxu0 %v1005
    %2533 = vmatpush1.bf16.msra.mxu0 %v1004
    %2534 = vmatprep.subr.bf16.mxu0 %v1013
    %2535 = vmatpush1.bf16.msra.mxu0 %v1012
    %2536 = vmatprep.subr.bf16.mxu0 %v1021
    %2537 = vmatpush1.bf16.msra.mxu0 %v1020
    %2538 = vmatprep.subr.bf16.mxu0 %v1029
    %2539 = vmatpush1.bf16.msra.mxu0 %v1028
    %2540 = vmatprep.subr.bf16.mxu0 %v1037
    %2541 = vmatpush1.bf16.msra.mxu0 %v1036
    %2542 = vmatprep.subr.bf16.mxu0 %v1045
    %2543 = vmatpush1.bf16.msra.mxu0 %v1044
    %2544 = vmatprep.subr.bf16.mxu0 %v1053
    %2545 = vmatpush1.bf16.msra.mxu0 %v1052
    %2546 = vmatprep.subr.bf16.mxu0 %v1061
    %2547 = vmatpush1.bf16.msra.mxu0 %v1060
    %2548 = vmatprep.subr.bf16.mxu0 %v1069
    %2549 = vmatpush1.bf16.msra.mxu0 %v1068
    %2550 = vmatprep.subr.bf16.mxu0 %v1077
    %2551 = vmatpush1.bf16.msra.mxu0 %v1076
    %2552 = vmatprep.mubr.bf16.mxu0 %v2437
    %2553 = vmatmul.mubr.bf16.gmra.mrb[0].mxu0 %v2436
    %v2554 = vpop.f32.mrb[0].mxu0
    %v2555 = vadd.f32 0.0, %v2554
    %v2556 = vpop.f32.mrb[0].mxu0
    %v2557 = vadd.f32 0.0, %v2556
    %v2558 = vpop.f32.mrb[0].mxu0
    %v2559 = vpop.f32.mrb[0].mxu0
    %2560 = vdwg.mxu0
    %2561 = vmatprep.subr.bf16.mxu0 %v959
    %2562 = vmatpush1.bf16.msra.mxu0 %v958
    %2563 = vmatprep.subr.bf16.mxu0 %v967
    %2564 = vmatpush1.bf16.msra.mxu0 %v966
    %2565 = vmatprep.subr.bf16.mxu0 %v975
    %2566 = vmatpush1.bf16.msra.mxu0 %v974
    %2567 = vmatprep.subr.bf16.mxu0 %v983
    %2568 = vmatpush1.bf16.msra.mxu0 %v982
    %2569 = vmatprep.subr.bf16.mxu0 %v991
    %2570 = vmatpush1.bf16.msra.mxu0 %v990
    %2571 = vmatprep.subr.bf16.mxu0 %v999
    %2572 = vmatpush1.bf16.msra.mxu0 %v998
    %2573 = vmatprep.subr.bf16.mxu0 %v1007
    %2574 = vmatpush1.bf16.msra.mxu0 %v1006
    %2575 = vmatprep.subr.bf16.mxu0 %v1015
    %2576 = vmatpush1.bf16.msra.mxu0 %v1014
    %2577 = vmatprep.subr.bf16.mxu0 %v1023
    %2578 = vmatpush1.bf16.msra.mxu0 %v1022
    %2579 = vmatprep.subr.bf16.mxu0 %v1031
    %2580 = vmatpush1.bf16.msra.mxu0 %v1030
    %2581 = vmatprep.subr.bf16.mxu0 %v1039
    %2582 = vmatpush1.bf16.msra.mxu0 %v1038
    %2583 = vmatprep.subr.bf16.mxu0 %v1047
    %2584 = vmatpush1.bf16.msra.mxu0 %v1046
    %2585 = vmatprep.subr.bf16.mxu0 %v1055
    %2586 = vmatpush1.bf16.msra.mxu0 %v1054
    %2587 = vmatprep.subr.bf16.mxu0 %v1063
    %2588 = vmatpush1.bf16.msra.mxu0 %v1062
    %2589 = vmatprep.subr.bf16.mxu0 %v1071
    %2590 = vmatpush1.bf16.msra.mxu0 %v1070
    %2591 = vmatprep.subr.bf16.mxu0 %v1079
    %2592 = vmatpush1.bf16.msra.mxu0 %v1078
    %2593 = vmatprep.mubr.bf16.mxu0 %v2437
    %2594 = vmatmul.mubr.bf16.gmra.mrb[0].mxu0 %v2436
    %v2595 = vpop.f32.mrb[0].mxu0
    %v2596 = vadd.f32 0.0, %v2595
    %v2597 = vpop.f32.mrb[0].mxu0
    %v2598 = vadd.f32 0.0, %v2597
    %v2599 = vpop.f32.mrb[0].mxu0
    %v2600 = vpop.f32.mrb[0].mxu0
    %2601 = vdwg.mxu0
    %s2602 = scalar_lea.vmem [#allocation2], 48
    %v2603 = vld [vmem:[%s2602] sm:$0xff]
    %v2605 = vcombine.high %v2603, %v2603
    %v2607 = vunpack.c.l.s4 1983009808
    %v2608 = vunpack.c.0.s8 %v2607
    %v2609 = vlaneseq
    %v2610 = vshrl.u32 %v2609, 7
    %v2611 = vsub.s32 %v2608, %v2610
    %v2612 = vrot.slane %v2603, %v2611
    %v2614 = vunpack.c.l.s4 1983009808
    %v2615 = vunpack.c.0.s8 %v2614
    %v2616 = vlaneseq
    %v2617 = vshrl.u32 %v2616, 7
    %v2618 = vsub.s32 %v2615, %v2617
    %v2619 = vrot.slane %v2605, %v2618
    %v2620 = vcombine.high %v2612, %v2612
    %v2621 = vcombine.high %v2619, %v2619
    %v2626 = vadd.f32 %v2473, %v2612
    %v2627 = vadd.f32 %v2475, %v2620
    %v2628 = vadd.f32 %v2514, %v2619
    %v2629 = vadd.f32 %v2516, %v2621
    %v2630 = vxor.u32 %v2626, 2147483648
    %v2631 = vmul.f32 %v2630, 1.442695
    %v2632 = vpow.pop %v2631
    %v2633 = vadd.f32 %v2632, 1.0
    %v2634 = vrcp.pop %v2633
    %v2635 = vmul.f32 1.0, %v2634
    %v2636 = vxor.u32 %v2627, 2147483648
    %v2637 = vmul.f32 %v2636, 1.442695
    %v2638 = vpow.pop %v2637
    %v2639 = vadd.f32 %v2638, 1.0
    %v2640 = vrcp.pop %v2639
    %v2641 = vmul.f32 1.0, %v2640
    %v2642 = vtanh.pop %v2628
    %v2643 = vxor.u32 %v2629, 2147483648
    %v2644 = vmul.f32 %v2643, 1.442695
    %v2645 = vpow.pop %v2644
    %v2646 = vadd.f32 %v2645, 1.0
    %v2647 = vrcp.pop %v2646
    %v2648 = vmul.f32 1.0, %v2647
    %v2649 = vmul.f32 %v2641, %v2405
    %v2650 = vmul.f32 %v2635, %v2642
    %v2651 = vadd.f32 %v2649, %v2650
    %v2652 = vtanh.pop %v2651
    %v2653 = vmul.f32 %v2648, %v2652
    %v2654 = vadd.f32 %v2555, %v399
    %v2655 = vadd.f32 %v2557, %v403
    %v2656 = vadd.f32 %v2596, %v407
    %v2657 = vadd.f32 %v2598, %v411
    %v2658 = vxor.u32 %v2654, 2147483648
    %v2659 = vmul.f32 %v2658, 1.442695
    %v2660 = vpow.pop %v2659
    %v2661 = vadd.f32 %v2660, 1.0
    %v2662 = vrcp.pop %v2661
    %v2663 = vmul.f32 1.0, %v2662
    %v2664 = vxor.u32 %v2655, 2147483648
    %v2665 = vmul.f32 %v2664, 1.442695
    %v2666 = vpow.pop %v2665
    %v2667 = vadd.f32 %v2666, 1.0
    %v2668 = vrcp.pop %v2667
    %v2669 = vmul.f32 1.0, %v2668
    %v2670 = vtanh.pop %v2656
    %v2671 = vxor.u32 %v2657, 2147483648
    %v2672 = vmul.f32 %v2671, 1.442695
    %v2673 = vpow.pop %v2672
    %v2674 = vadd.f32 %v2673, 1.0
    %v2675 = vrcp.pop %v2674
    %v2676 = vmul.f32 1.0, %v2675
    %v2677 = vmul.f32 %v2669, %v2433
    %v2678 = vmul.f32 %v2663, %v2670
    %v2679 = vadd.f32 %v2677, %v2678
    %v2680 = vtanh.pop %v2679
    %v2681 = vmul.f32 %v2676, %v2680
    %v2682 = vpack.c.bf16 %v2653, %v2653
    %v2683 = vpack.c.bf16 %v2681, %v2681
    %2684 = vmatprep.subr.bf16.mxu0 %v953
    %2685 = vmatpush1.bf16.msra.mxu0 %v952
    %2686 = vmatprep.subr.bf16.mxu0 %v961
    %2687 = vmatpush1.bf16.msra.mxu0 %v960
    %2688 = vmatprep.subr.bf16.mxu0 %v969
    %2689 = vmatpush1.bf16.msra.mxu0 %v968
    %2690 = vmatprep.subr.bf16.mxu0 %v977
    %2691 = vmatpush1.bf16.msra.mxu0 %v976
    %2692 = vmatprep.subr.bf16.mxu0 %v985
    %2693 = vmatpush1.bf16.msra.mxu0 %v984
    %2694 = vmatprep.subr.bf16.mxu0 %v993
    %2695 = vmatpush1.bf16.msra.mxu0 %v992
    %2696 = vmatprep.subr.bf16.mxu0 %v1001
    %2697 = vmatpush1.bf16.msra.mxu0 %v1000
    %2698 = vmatprep.subr.bf16.mxu0 %v1009
    %2699 = vmatpush1.bf16.msra.mxu0 %v1008
    %2700 = vmatprep.subr.bf16.mxu0 %v1017
    %2701 = vmatpush1.bf16.msra.mxu0 %v1016
    %2702 = vmatprep.subr.bf16.mxu0 %v1025
    %2703 = vmatpush1.bf16.msra.mxu0 %v1024
    %2704 = vmatprep.subr.bf16.mxu0 %v1033
    %2705 = vmatpush1.bf16.msra.mxu0 %v1032
    %2706 = vmatprep.subr.bf16.mxu0 %v1041
    %2707 = vmatpush1.bf16.msra.mxu0 %v1040
    %2708 = vmatprep.subr.bf16.mxu0 %v1049
    %2709 = vmatpush1.bf16.msra.mxu0 %v1048
    %2710 = vmatprep.subr.bf16.mxu0 %v1057
    %2711 = vmatpush1.bf16.msra.mxu0 %v1056
    %2712 = vmatprep.subr.bf16.mxu0 %v1065
    %2713 = vmatpush1.bf16.msra.mxu0 %v1064
    %2714 = vmatprep.subr.bf16.mxu0 %v1073
    %2715 = vmatpush1.bf16.msra.mxu0 %v1072
    %2716 = vmatprep.mubr.bf16.mxu0 %v2683
    %2717 = vmatmul.mubr.bf16.gmra.mrb[0].mxu0 %v2682
    %v2718 = vpop.f32.mrb[0].mxu0
    %v2719 = vadd.f32 0.0, %v2718
    %v2720 = vpop.f32.mrb[0].mxu0
    %v2721 = vadd.f32 0.0, %v2720
    %v2722 = vpop.f32.mrb[0].mxu0
    %v2723 = vpop.f32.mrb[0].mxu0
    %2724 = vdwg.mxu0
    %2725 = vmatprep.subr.bf16.mxu0 %v955
    %2726 = vmatpush1.bf16.msra.mxu0 %v954
    %2727 = vmatprep.subr.bf16.mxu0 %v963
    %2728 = vmatpush1.bf16.msra.mxu0 %v962
    %2729 = vmatprep.subr.bf16.mxu0 %v971
    %2730 = vmatpush1.bf16.msra.mxu0 %v970
    %2731 = vmatprep.subr.bf16.mxu0 %v979
    %2732 = vmatpush1.bf16.msra.mxu0 %v978
    %2733 = vmatprep.subr.bf16.mxu0 %v987
    %2734 = vmatpush1.bf16.msra.mxu0 %v986
    %2735 = vmatprep.subr.bf16.mxu0 %v995
    %2736 = vmatpush1.bf16.msra.mxu0 %v994
    %2737 = vmatprep.subr.bf16.mxu0 %v1003
    %2738 = vmatpush1.bf16.msra.mxu0 %v1002
    %2739 = vmatprep.subr.bf16.mxu0 %v1011
    %2740 = vmatpush1.bf16.msra.mxu0 %v1010
    %2741 = vmatprep.subr.bf16.mxu0 %v1019
    %2742 = vmatpush1.bf16.msra.mxu0 %v1018
    %2743 = vmatprep.subr.bf16.mxu0 %v1027
    %2744 = vmatpush1.bf16.msra.mxu0 %v1026
    %2745 = vmatprep.subr.bf16.mxu0 %v1035
    %2746 = vmatpush1.bf16.msra.mxu0 %v1034
    %2747 = vmatprep.subr.bf16.mxu0 %v1043
    %2748 = vmatpush1.bf16.msra.mxu0 %v1042
    %2749 = vmatprep.subr.bf16.mxu0 %v1051
    %2750 = vmatpush1.bf16.msra.mxu0 %v1050
    %2751 = vmatprep.subr.bf16.mxu0 %v1059
    %2752 = vmatpush1.bf16.msra.mxu0 %v1058
    %2753 = vmatprep.subr.bf16.mxu0 %v1067
    %2754 = vmatpush1.bf16.msra.mxu0 %v1066
    %2755 = vmatprep.subr.bf16.mxu0 %v1075
    %2756 = vmatpush1.bf16.msra.mxu0 %v1074
    %2757 = vmatprep.mubr.bf16.mxu0 %v2683
    %2758 = vmatmul.mubr.bf16.gmra.mrb[0].mxu0 %v2682
    %v2759 = vpop.f32.mrb[0].mxu0
    %v2760 = vadd.f32 0.0, %v2759
    %v2761 = vpop.f32.mrb[0].mxu0
    %v2762 = vadd.f32 0.0, %v2761
    %v2763 = vpop.f32.mrb[0].mxu0
    %v2764 = vpop.f32.mrb[0].mxu0
    %2765 = vdwg.mxu0
    %2766 = vmatprep.subr.bf16.mxu0 %v957
    %2767 = vmatpush1.bf16.msra.mxu0 %v956
    %2768 = vmatprep.subr.bf16.mxu0 %v965
    %2769 = vmatpush1.bf16.msra.mxu0 %v964
    %2770 = vmatprep.subr.bf16.mxu0 %v973
    %2771 = vmatpush1.bf16.msra.mxu0 %v972
    %2772 = vmatprep.subr.bf16.mxu0 %v981
    %2773 = vmatpush1.bf16.msra.mxu0 %v980
    %2774 = vmatprep.subr.bf16.mxu0 %v989
    %2775 = vmatpush1.bf16.msra.mxu0 %v988
    %2776 = vmatprep.subr.bf16.mxu0 %v997
    %2777 = vmatpush1.bf16.msra.mxu0 %v996
    %2778 = vmatprep.subr.bf16.mxu0 %v1005
    %2779 = vmatpush1.bf16.msra.mxu0 %v1004
    %2780 = vmatprep.subr.bf16.mxu0 %v1013
    %2781 = vmatpush1.bf16.msra.mxu0 %v1012
    %2782 = vmatprep.subr.bf16.mxu0 %v1021
    %2783 = vmatpush1.bf16.msra.mxu0 %v1020
    %2784 = vmatprep.subr.bf16.mxu0 %v1029
    %2785 = vmatpush1.bf16.msra.mxu0 %v1028
    %2786 = vmatprep.subr.bf16.mxu0 %v1037
    %2787 = vmatpush1.bf16.msra.mxu0 %v1036
    %2788 = vmatprep.subr.bf16.mxu0 %v1045
    %2789 = vmatpush1.bf16.msra.mxu0 %v1044
    %2790 = vmatprep.subr.bf16.mxu0 %v1053
    %2791 = vmatpush1.bf16.msra.mxu0 %v1052
    %2792 = vmatprep.subr.bf16.mxu0 %v1061
    %2793 = vmatpush1.bf16.msra.mxu0 %v1060
    %2794 = vmatprep.subr.bf16.mxu0 %v1069
    %2795 = vmatpush1.bf16.msra.mxu0 %v1068
    %2796 = vmatprep.subr.bf16.mxu0 %v1077
    %2797 = vmatpush1.bf16.msra.mxu0 %v1076
    %2798 = vmatprep.mubr.bf16.mxu0 %v2683
    %2799 = vmatmul.mubr.bf16.gmra.mrb[0].mxu0 %v2682
    %v2800 = vpop.f32.mrb[0].mxu0
    %v2801 = vadd.f32 0.0, %v2800
    %v2802 = vpop.f32.mrb[0].mxu0
    %v2803 = vadd.f32 0.0, %v2802
    %v2804 = vpop.f32.mrb[0].mxu0
    %v2805 = vpop.f32.mrb[0].mxu0
    %2806 = vdwg.mxu0
    %2807 = vmatprep.subr.bf16.mxu0 %v959
    %2808 = vmatpush1.bf16.msra.mxu0 %v958
    %2809 = vmatprep.subr.bf16.mxu0 %v967
    %2810 = vmatpush1.bf16.msra.mxu0 %v966
    %2811 = vmatprep.subr.bf16.mxu0 %v975
    %2812 = vmatpush1.bf16.msra.mxu0 %v974
    %2813 = vmatprep.subr.bf16.mxu0 %v983
    %2814 = vmatpush1.bf16.msra.mxu0 %v982
    %2815 = vmatprep.subr.bf16.mxu0 %v991
    %2816 = vmatpush1.bf16.msra.mxu0 %v990
    %2817 = vmatprep.subr.bf16.mxu0 %v999
    %2818 = vmatpush1.bf16.msra.mxu0 %v998
    %2819 = vmatprep.subr.bf16.mxu0 %v1007
    %2820 = vmatpush1.bf16.msra.mxu0 %v1006
    %2821 = vmatprep.subr.bf16.mxu0 %v1015
    %2822 = vmatpush1.bf16.msra.mxu0 %v1014
    %2823 = vmatprep.subr.bf16.mxu0 %v1023
    %2824 = vmatpush1.bf16.msra.mxu0 %v1022
    %2825 = vmatprep.subr.bf16.mxu0 %v1031
    %2826 = vmatpush1.bf16.msra.mxu0 %v1030
    %2827 = vmatprep.subr.bf16.mxu0 %v1039
    %2828 = vmatpush1.bf16.msra.mxu0 %v1038
    %2829 = vmatprep.subr.bf16.mxu0 %v1047
    %2830 = vmatpush1.bf16.msra.mxu0 %v1046
    %2831 = vmatprep.subr.bf16.mxu0 %v1055
    %2832 = vmatpush1.bf16.msra.mxu0 %v1054
    %2833 = vmatprep.subr.bf16.mxu0 %v1063
    %2834 = vmatpush1.bf16.msra.mxu0 %v1062
    %2835 = vmatprep.subr.bf16.mxu0 %v1071
    %2836 = vmatpush1.bf16.msra.mxu0 %v1070
    %2837 = vmatprep.subr.bf16.mxu0 %v1079
    %2838 = vmatpush1.bf16.msra.mxu0 %v1078
    %2839 = vmatprep.mubr.bf16.mxu0 %v2683
    %2840 = vmatmul.mubr.bf16.gmra.mrb[0].mxu0 %v2682
    %v2841 = vpop.f32.mrb[0].mxu0
    %v2842 = vadd.f32 0.0, %v2841
    %v2843 = vpop.f32.mrb[0].mxu0
    %v2844 = vadd.f32 0.0, %v2843
    %v2845 = vpop.f32.mrb[0].mxu0
    %v2846 = vpop.f32.mrb[0].mxu0
    %2847 = vdwg.mxu0
    %s2848 = scalar_lea.vmem [#allocation2], 56
    %v2849 = vld [vmem:[%s2848] sm:$0xff]
    %v2851 = vcombine.high %v2849, %v2849
    %v2853 = vunpack.c.l.s4 1983009808
    %v2854 = vunpack.c.0.s8 %v2853
    %v2855 = vlaneseq
    %v2856 = vshrl.u32 %v2855, 7
    %v2857 = vsub.s32 %v2854, %v2856
    %v2858 = vrot.slane %v2849, %v2857
    %v2860 = vunpack.c.l.s4 1983009808
    %v2861 = vunpack.c.0.s8 %v2860
    %v2862 = vlaneseq
    %v2863 = vshrl.u32 %v2862, 7
    %v2864 = vsub.s32 %v2861, %v2863
    %v2865 = vrot.slane %v2851, %v2864
    %v2866 = vcombine.high %v2858, %v2858
    %v2867 = vcombine.high %v2865, %v2865
    %v2872 = vadd.f32 %v2719, %v2858
    %v2873 = vadd.f32 %v2721, %v2866
    %v2874 = vadd.f32 %v2760, %v2865
    %v2875 = vadd.f32 %v2762, %v2867
    %v2876 = vxor.u32 %v2872, 2147483648
    %v2877 = vmul.f32 %v2876, 1.442695
    %v2878 = vpow.pop %v2877
    %v2879 = vadd.f32 %v2878, 1.0
    %v2880 = vrcp.pop %v2879
    %v2881 = vmul.f32 1.0, %v2880
    %v2882 = vxor.u32 %v2873, 2147483648
    %v2883 = vmul.f32 %v2882, 1.442695
    %v2884 = vpow.pop %v2883
    %v2885 = vadd.f32 %v2884, 1.0
    %v2886 = vrcp.pop %v2885
    %v2887 = vmul.f32 1.0, %v2886
    %v2888 = vtanh.pop %v2874
    %v2889 = vxor.u32 %v2875, 2147483648
    %v2890 = vmul.f32 %v2889, 1.442695
    %v2891 = vpow.pop %v2890
    %v2892 = vadd.f32 %v2891, 1.0
    %v2893 = vrcp.pop %v2892
    %v2894 = vmul.f32 1.0, %v2893
    %v2895 = vmul.f32 %v2887, %v2651
    %v2896 = vmul.f32 %v2881, %v2888
    %v2897 = vadd.f32 %v2895, %v2896
    %v2898 = vtanh.pop %v2897
    %v2899 = vmul.f32 %v2894, %v2898
    %v2900 = vadd.f32 %v2801, %v399
    %v2901 = vadd.f32 %v2803, %v403
    %v2902 = vadd.f32 %v2842, %v407
    %v2903 = vadd.f32 %v2844, %v411
    %v2904 = vxor.u32 %v2900, 2147483648
    %v2905 = vmul.f32 %v2904, 1.442695
    %v2906 = vpow.pop %v2905
    %v2907 = vadd.f32 %v2906, 1.0
    %v2908 = vrcp.pop %v2907
    %v2909 = vmul.f32 1.0, %v2908
    %v2910 = vxor.u32 %v2901, 2147483648
    %v2911 = vmul.f32 %v2910, 1.442695
    %v2912 = vpow.pop %v2911
    %v2913 = vadd.f32 %v2912, 1.0
    %v2914 = vrcp.pop %v2913
    %v2915 = vmul.f32 1.0, %v2914
    %v2916 = vtanh.pop %v2902
    %v2917 = vxor.u32 %v2903, 2147483648
    %v2918 = vmul.f32 %v2917, 1.442695
    %v2919 = vpow.pop %v2918
    %v2920 = vadd.f32 %v2919, 1.0
    %v2921 = vrcp.pop %v2920
    %v2922 = vmul.f32 1.0, %v2921
    %v2923 = vmul.f32 %v2915, %v2679
    %v2924 = vmul.f32 %v2909, %v2916
    %v2925 = vadd.f32 %v2923, %v2924
    %v2926 = vtanh.pop %v2925
    %v2927 = vmul.f32 %v2922, %v2926
    %v2928 = vpack.c.bf16 %v2899, %v2899
    %v2929 = vpack.c.bf16 %v2927, %v2927
    %v2930 = vld [vmem:[#allocation3 + $0x10] sm:$0xff]
    %v2931 = vld [vmem:[#allocation3 + $0x18] sm:$0xff]
    %v2932 = vld [vmem:[#allocation3 + $0x30] sm:$0xff]
    %v2933 = vld [vmem:[#allocation3 + $0x38] sm:$0xff]
    %v2934 = vld [vmem:[#allocation3 + $0x50] sm:$0xff]
    %v2935 = vld [vmem:[#allocation3 + $0x58] sm:$0xff]
    %v2936 = vld [vmem:[#allocation3 + $0x70] sm:$0xff]
    %v2937 = vld [vmem:[#allocation3 + $0x78] sm:$0xff]
    %v2938 = vld [vmem:[#allocation3 + $0x90] sm:$0xff]
    %v2939 = vld [vmem:[#allocation3 + $0x98] sm:$0xff]
    %v2940 = vld [vmem:[#allocation3 + $0xb0] sm:$0xff]
    %v2941 = vld [vmem:[#allocation3 + $0xb8] sm:$0xff]
    %v2942 = vld [vmem:[#allocation3 + $0xd0] sm:$0xff]
    %v2943 = vld [vmem:[#allocation3 + $0xd8] sm:$0xff]
    %v2944 = vld [vmem:[#allocation3 + $0xf0] sm:$0xff]
    %v2945 = vld [vmem:[#allocation3 + $0xf8] sm:$0xff]
    %v2946 = vld [vmem:[#allocation3 + $0x110] sm:$0xff]
    %v2947 = vld [vmem:[#allocation3 + $0x118] sm:$0xff]
    %v2948 = vld [vmem:[#allocation3 + $0x130] sm:$0xff]
    %v2949 = vld [vmem:[#allocation3 + $0x138] sm:$0xff]
    %v2950 = vld [vmem:[#allocation3 + $0x150] sm:$0xff]
    %v2951 = vld [vmem:[#allocation3 + $0x158] sm:$0xff]
    %v2952 = vld [vmem:[#allocation3 + $0x170] sm:$0xff]
    %v2953 = vld [vmem:[#allocation3 + $0x178] sm:$0xff]
    %v2954 = vld [vmem:[#allocation3 + $0x190] sm:$0xff]
    %v2955 = vld [vmem:[#allocation3 + $0x198] sm:$0xff]
    %v2956 = vld [vmem:[#allocation3 + $0x1b0] sm:$0xff]
    %v2957 = vld [vmem:[#allocation3 + $0x1b8] sm:$0xff]
    %v2958 = vld [vmem:[#allocation3 + $0x1d0] sm:$0xff]
    %v2959 = vld [vmem:[#allocation3 + $0x1d8] sm:$0xff]
    %v2960 = vld [vmem:[#allocation3 + $0x1f0] sm:$0xff]
    %v2961 = vld [vmem:[#allocation3 + $0x1f8] sm:$0xff]
    %v2962 = vld [vmem:[#allocation3 + $0x210] sm:$0xff]
    %v2963 = vld [vmem:[#allocation3 + $0x218] sm:$0xff]
    %v2964 = vld [vmem:[#allocation3 + $0x230] sm:$0xff]
    %v2965 = vld [vmem:[#allocation3 + $0x238] sm:$0xff]
    %v2966 = vld [vmem:[#allocation3 + $0x250] sm:$0xff]
    %v2967 = vld [vmem:[#allocation3 + $0x258] sm:$0xff]
    %v2968 = vld [vmem:[#allocation3 + $0x270] sm:$0xff]
    %v2969 = vld [vmem:[#allocation3 + $0x278] sm:$0xff]
    %v2970 = vld [vmem:[#allocation3 + $0x290] sm:$0xff]
    %v2971 = vld [vmem:[#allocation3 + $0x298] sm:$0xff]
    %v2972 = vld [vmem:[#allocation3 + $0x2b0] sm:$0xff]
    %v2973 = vld [vmem:[#allocation3 + $0x2b8] sm:$0xff]
    %v2974 = vld [vmem:[#allocation3 + $0x2d0] sm:$0xff]
    %v2975 = vld [vmem:[#allocation3 + $0x2d8] sm:$0xff]
    %v2976 = vld [vmem:[#allocation3 + $0x2f0] sm:$0xff]
    %v2977 = vld [vmem:[#allocation3 + $0x2f8] sm:$0xff]
    %v2978 = vld [vmem:[#allocation3 + $0x310] sm:$0xff]
    %v2979 = vld [vmem:[#allocation3 + $0x318] sm:$0xff]
    %v2980 = vld [vmem:[#allocation3 + $0x330] sm:$0xff]
    %v2981 = vld [vmem:[#allocation3 + $0x338] sm:$0xff]
    %v2982 = vld [vmem:[#allocation3 + $0x350] sm:$0xff]
    %v2983 = vld [vmem:[#allocation3 + $0x358] sm:$0xff]
    %v2984 = vld [vmem:[#allocation3 + $0x370] sm:$0xff]
    %v2985 = vld [vmem:[#allocation3 + $0x378] sm:$0xff]
    %v2986 = vld [vmem:[#allocation3 + $0x390] sm:$0xff]
    %v2987 = vld [vmem:[#allocation3 + $0x398] sm:$0xff]
    %v2988 = vld [vmem:[#allocation3 + $0x3b0] sm:$0xff]
    %v2989 = vld [vmem:[#allocation3 + $0x3b8] sm:$0xff]
    %v2990 = vld [vmem:[#allocation3 + $0x3d0] sm:$0xff]
    %v2991 = vld [vmem:[#allocation3 + $0x3d8] sm:$0xff]
    %v2992 = vld [vmem:[#allocation3 + $0x3f0] sm:$0xff]
    %v2993 = vld [vmem:[#allocation3 + $0x3f8] sm:$0xff]
    %v3058 = vunpack.c.l.b16 %v2930
    %v3059 = vunpack.c.h.b16 %v2930
    %v3060 = vunpack.c.l.b16 %v2931
    %v3061 = vunpack.c.h.b16 %v2931
    %v3062 = vunpack.c.l.b16 %v2932
    %v3063 = vunpack.c.h.b16 %v2932
    %v3064 = vunpack.c.l.b16 %v2933
    %v3065 = vunpack.c.h.b16 %v2933
    %v3066 = vunpack.c.l.b16 %v2934
    %v3067 = vunpack.c.h.b16 %v2934
    %v3068 = vunpack.c.l.b16 %v2935
    %v3069 = vunpack.c.h.b16 %v2935
    %v3070 = vunpack.c.l.b16 %v2936
    %v3071 = vunpack.c.h.b16 %v2936
    %v3072 = vunpack.c.l.b16 %v2937
    %v3073 = vunpack.c.h.b16 %v2937
    %v3074 = vunpack.c.l.b16 %v2938
    %v3075 = vunpack.c.h.b16 %v2938
    %v3076 = vunpack.c.l.b16 %v2939
    %v3077 = vunpack.c.h.b16 %v2939
    %v3078 = vunpack.c.l.b16 %v2940
    %v3079 = vunpack.c.h.b16 %v2940
    %v3080 = vunpack.c.l.b16 %v2941
    %v3081 = vunpack.c.h.b16 %v2941
    %v3082 = vunpack.c.l.b16 %v2942
    %v3083 = vunpack.c.h.b16 %v2942
    %v3084 = vunpack.c.l.b16 %v2943
    %v3085 = vunpack.c.h.b16 %v2943
    %v3086 = vunpack.c.l.b16 %v2944
    %v3087 = vunpack.c.h.b16 %v2944
    %v3088 = vunpack.c.l.b16 %v2945
    %v3089 = vunpack.c.h.b16 %v2945
    %v3090 = vunpack.c.l.b16 %v2946
    %v3091 = vunpack.c.h.b16 %v2946
    %v3092 = vunpack.c.l.b16 %v2947
    %v3093 = vunpack.c.h.b16 %v2947
    %v3094 = vunpack.c.l.b16 %v2948
    %v3095 = vunpack.c.h.b16 %v2948
    %v3096 = vunpack.c.l.b16 %v2949
    %v3097 = vunpack.c.h.b16 %v2949
    %v3098 = vunpack.c.l.b16 %v2950
    %v3099 = vunpack.c.h.b16 %v2950
    %v3100 = vunpack.c.l.b16 %v2951
    %v3101 = vunpack.c.h.b16 %v2951
    %v3102 = vunpack.c.l.b16 %v2952
    %v3103 = vunpack.c.h.b16 %v2952
    %v3104 = vunpack.c.l.b16 %v2953
    %v3105 = vunpack.c.h.b16 %v2953
    %v3106 = vunpack.c.l.b16 %v2954
    %v3107 = vunpack.c.h.b16 %v2954
    %v3108 = vunpack.c.l.b16 %v2955
    %v3109 = vunpack.c.h.b16 %v2955
    %v3110 = vunpack.c.l.b16 %v2956
    %v3111 = vunpack.c.h.b16 %v2956
    %v3112 = vunpack.c.l.b16 %v2957
    %v3113 = vunpack.c.h.b16 %v2957
    %v3114 = vunpack.c.l.b16 %v2958
    %v3115 = vunpack.c.h.b16 %v2958
    %v3116 = vunpack.c.l.b16 %v2959
    %v3117 = vunpack.c.h.b16 %v2959
    %v3118 = vunpack.c.l.b16 %v2960
    %v3119 = vunpack.c.h.b16 %v2960
    %v3120 = vunpack.c.l.b16 %v2961
    %v3121 = vunpack.c.h.b16 %v2961
    %v3122 = vunpack.c.l.b16 %v2962
    %v3123 = vunpack.c.h.b16 %v2962
    %v3124 = vunpack.c.l.b16 %v2963
    %v3125 = vunpack.c.h.b16 %v2963
    %v3126 = vunpack.c.l.b16 %v2964
    %v3127 = vunpack.c.h.b16 %v2964
    %v3128 = vunpack.c.l.b16 %v2965
    %v3129 = vunpack.c.h.b16 %v2965
    %v3130 = vunpack.c.l.b16 %v2966
    %v3131 = vunpack.c.h.b16 %v2966
    %v3132 = vunpack.c.l.b16 %v2967
    %v3133 = vunpack.c.h.b16 %v2967
    %v3134 = vunpack.c.l.b16 %v2968
    %v3135 = vunpack.c.h.b16 %v2968
    %v3136 = vunpack.c.l.b16 %v2969
    %v3137 = vunpack.c.h.b16 %v2969
    %v3138 = vunpack.c.l.b16 %v2970
    %v3139 = vunpack.c.h.b16 %v2970
    %v3140 = vunpack.c.l.b16 %v2971
    %v3141 = vunpack.c.h.b16 %v2971
    %v3142 = vunpack.c.l.b16 %v2972
    %v3143 = vunpack.c.h.b16 %v2972
    %v3144 = vunpack.c.l.b16 %v2973
    %v3145 = vunpack.c.h.b16 %v2973
    %v3146 = vunpack.c.l.b16 %v2974
    %v3147 = vunpack.c.h.b16 %v2974
    %v3148 = vunpack.c.l.b16 %v2975
    %v3149 = vunpack.c.h.b16 %v2975
    %v3150 = vunpack.c.l.b16 %v2976
    %v3151 = vunpack.c.h.b16 %v2976
    %v3152 = vunpack.c.l.b16 %v2977
    %v3153 = vunpack.c.h.b16 %v2977
    %v3154 = vunpack.c.l.b16 %v2978
    %v3155 = vunpack.c.h.b16 %v2978
    %v3156 = vunpack.c.l.b16 %v2979
    %v3157 = vunpack.c.h.b16 %v2979
    %v3158 = vunpack.c.l.b16 %v2980
    %v3159 = vunpack.c.h.b16 %v2980
    %v3160 = vunpack.c.l.b16 %v2981
    %v3161 = vunpack.c.h.b16 %v2981
    %v3162 = vunpack.c.l.b16 %v2982
    %v3163 = vunpack.c.h.b16 %v2982
    %v3164 = vunpack.c.l.b16 %v2983
    %v3165 = vunpack.c.h.b16 %v2983
    %v3166 = vunpack.c.l.b16 %v2984
    %v3167 = vunpack.c.h.b16 %v2984
    %v3168 = vunpack.c.l.b16 %v2985
    %v3169 = vunpack.c.h.b16 %v2985
    %v3170 = vunpack.c.l.b16 %v2986
    %v3171 = vunpack.c.h.b16 %v2986
    %v3172 = vunpack.c.l.b16 %v2987
    %v3173 = vunpack.c.h.b16 %v2987
    %v3174 = vunpack.c.l.b16 %v2988
    %v3175 = vunpack.c.h.b16 %v2988
    %v3176 = vunpack.c.l.b16 %v2989
    %v3177 = vunpack.c.h.b16 %v2989
    %v3178 = vunpack.c.l.b16 %v2990
    %v3179 = vunpack.c.h.b16 %v2990
    %v3180 = vunpack.c.l.b16 %v2991
    %v3181 = vunpack.c.h.b16 %v2991
    %v3182 = vunpack.c.l.b16 %v2992
    %v3183 = vunpack.c.h.b16 %v2992
    %v3184 = vunpack.c.l.b16 %v2993
    %v3185 = vunpack.c.h.b16 %v2993
    %v3186 = vpack.c.b16 %v3062, %v3058
    %v3187 = vpack.c.b16 %v3063, %v3059
    %v3188 = vpack.c.b16 %v3064, %v3060
    %v3189 = vpack.c.b16 %v3065, %v3061
    %v3190 = vpack.c.b16 %v3070, %v3066
    %v3191 = vpack.c.b16 %v3071, %v3067
    %v3192 = vpack.c.b16 %v3072, %v3068
    %v3193 = vpack.c.b16 %v3073, %v3069
    %v3194 = vpack.c.b16 %v3078, %v3074
    %v3195 = vpack.c.b16 %v3079, %v3075
    %v3196 = vpack.c.b16 %v3080, %v3076
    %v3197 = vpack.c.b16 %v3081, %v3077
    %v3198 = vpack.c.b16 %v3086, %v3082
    %v3199 = vpack.c.b16 %v3087, %v3083
    %v3200 = vpack.c.b16 %v3088, %v3084
    %v3201 = vpack.c.b16 %v3089, %v3085
    %v3202 = vpack.c.b16 %v3094, %v3090
    %v3203 = vpack.c.b16 %v3095, %v3091
    %v3204 = vpack.c.b16 %v3096, %v3092
    %v3205 = vpack.c.b16 %v3097, %v3093
    %v3206 = vpack.c.b16 %v3102, %v3098
    %v3207 = vpack.c.b16 %v3103, %v3099
    %v3208 = vpack.c.b16 %v3104, %v3100
    %v3209 = vpack.c.b16 %v3105, %v3101
    %v3210 = vpack.c.b16 %v3110, %v3106
    %v3211 = vpack.c.b16 %v3111, %v3107
    %v3212 = vpack.c.b16 %v3112, %v3108
    %v3213 = vpack.c.b16 %v3113, %v3109
    %v3214 = vpack.c.b16 %v3118, %v3114
    %v3215 = vpack.c.b16 %v3119, %v3115
    %v3216 = vpack.c.b16 %v3120, %v3116
    %v3217 = vpack.c.b16 %v3121, %v3117
    %v3218 = vpack.c.b16 %v3126, %v3122
    %v3219 = vpack.c.b16 %v3127, %v3123
    %v3220 = vpack.c.b16 %v3128, %v3124
    %v3221 = vpack.c.b16 %v3129, %v3125
    %v3222 = vpack.c.b16 %v3134, %v3130
    %v3223 = vpack.c.b16 %v3135, %v3131
    %v3224 = vpack.c.b16 %v3136, %v3132
    %v3225 = vpack.c.b16 %v3137, %v3133
    %v3226 = vpack.c.b16 %v3142, %v3138
    %v3227 = vpack.c.b16 %v3143, %v3139
    %v3228 = vpack.c.b16 %v3144, %v3140
    %v3229 = vpack.c.b16 %v3145, %v3141
    %v3230 = vpack.c.b16 %v3150, %v3146
    %v3231 = vpack.c.b16 %v3151, %v3147
    %v3232 = vpack.c.b16 %v3152, %v3148
    %v3233 = vpack.c.b16 %v3153, %v3149
    %v3234 = vpack.c.b16 %v3158, %v3154
    %v3235 = vpack.c.b16 %v3159, %v3155
    %v3236 = vpack.c.b16 %v3160, %v3156
    %v3237 = vpack.c.b16 %v3161, %v3157
    %v3238 = vpack.c.b16 %v3166, %v3162
    %v3239 = vpack.c.b16 %v3167, %v3163
    %v3240 = vpack.c.b16 %v3168, %v3164
    %v3241 = vpack.c.b16 %v3169, %v3165
    %v3242 = vpack.c.b16 %v3174, %v3170
    %v3243 = vpack.c.b16 %v3175, %v3171
    %v3244 = vpack.c.b16 %v3176, %v3172
    %v3245 = vpack.c.b16 %v3177, %v3173
    %v3246 = vpack.c.b16 %v3182, %v3178
    %v3247 = vpack.c.b16 %v3183, %v3179
    %v3248 = vpack.c.b16 %v3184, %v3180
    %v3249 = vpack.c.b16 %v3185, %v3181
    %3314 = vmatprep.subr.bf16.mxu0 %v3187
    %3315 = vmatpush1.bf16.msra.mxu0 %v3186
    %3316 = vmatprep.subr.bf16.mxu0 %v3191
    %3317 = vmatpush1.bf16.msra.mxu0 %v3190
    %3318 = vmatprep.subr.bf16.mxu0 %v3195
    %3319 = vmatpush1.bf16.msra.mxu0 %v3194
    %3320 = vmatprep.subr.bf16.mxu0 %v3199
    %3321 = vmatpush1.bf16.msra.mxu0 %v3198
    %3322 = vmatprep.subr.bf16.mxu0 %v3203
    %3323 = vmatpush1.bf16.msra.mxu0 %v3202
    %3324 = vmatprep.subr.bf16.mxu0 %v3207
    %3325 = vmatpush1.bf16.msra.mxu0 %v3206
    %3326 = vmatprep.subr.bf16.mxu0 %v3211
    %3327 = vmatpush1.bf16.msra.mxu0 %v3210
    %3328 = vmatprep.subr.bf16.mxu0 %v3215
    %3329 = vmatpush1.bf16.msra.mxu0 %v3214
    %3330 = vmatprep.subr.bf16.mxu0 %v3219
    %3331 = vmatpush1.bf16.msra.mxu0 %v3218
    %3332 = vmatprep.subr.bf16.mxu0 %v3223
    %3333 = vmatpush1.bf16.msra.mxu0 %v3222
    %3334 = vmatprep.subr.bf16.mxu0 %v3227
    %3335 = vmatpush1.bf16.msra.mxu0 %v3226
    %3336 = vmatprep.subr.bf16.mxu0 %v3231
    %3337 = vmatpush1.bf16.msra.mxu0 %v3230
    %3338 = vmatprep.subr.bf16.mxu0 %v3235
    %3339 = vmatpush1.bf16.msra.mxu0 %v3234
    %3340 = vmatprep.subr.bf16.mxu0 %v3239
    %3341 = vmatpush1.bf16.msra.mxu0 %v3238
    %3342 = vmatprep.subr.bf16.mxu0 %v3243
    %3343 = vmatpush1.bf16.msra.mxu0 %v3242
    %3344 = vmatprep.subr.bf16.mxu0 %v3247
    %3345 = vmatpush1.bf16.msra.mxu0 %v3246
    %3346 = vmatprep.mubr.bf16.mxu0 %v2929
    %3347 = vmatmul.mubr.bf16.gmra.mrb[0].mxu0 %v2928
    %v3348 = vpop.f32.mrb[0].mxu0
    %v3349 = vadd.f32 %v399, %v3348
    %v3350 = vpop.f32.mrb[0].mxu0
    %v3351 = vadd.f32 %v403, %v3350
    %v3352 = vpop.f32.mrb[0].mxu0
    %v3353 = vpop.f32.mrb[0].mxu0
    %3354 = vdwg.mxu0
    %3355 = vmatprep.subr.bf16.mxu0 %v3189
    %3356 = vmatpush1.bf16.msra.mxu0 %v3188
    %3357 = vmatprep.subr.bf16.mxu0 %v3193
    %3358 = vmatpush1.bf16.msra.mxu0 %v3192
    %3359 = vmatprep.subr.bf16.mxu0 %v3197
    %3360 = vmatpush1.bf16.msra.mxu0 %v3196
    %3361 = vmatprep.subr.bf16.mxu0 %v3201
    %3362 = vmatpush1.bf16.msra.mxu0 %v3200
    %3363 = vmatprep.subr.bf16.mxu0 %v3205
    %3364 = vmatpush1.bf16.msra.mxu0 %v3204
    %3365 = vmatprep.subr.bf16.mxu0 %v3209
    %3366 = vmatpush1.bf16.msra.mxu0 %v3208
    %3367 = vmatprep.subr.bf16.mxu0 %v3213
    %3368 = vmatpush1.bf16.msra.mxu0 %v3212
    %3369 = vmatprep.subr.bf16.mxu0 %v3217
    %3370 = vmatpush1.bf16.msra.mxu0 %v3216
    %3371 = vmatprep.subr.bf16.mxu0 %v3221
    %3372 = vmatpush1.bf16.msra.mxu0 %v3220
    %3373 = vmatprep.subr.bf16.mxu0 %v3225
    %3374 = vmatpush1.bf16.msra.mxu0 %v3224
    %3375 = vmatprep.subr.bf16.mxu0 %v3229
    %3376 = vmatpush1.bf16.msra.mxu0 %v3228
    %3377 = vmatprep.subr.bf16.mxu0 %v3233
    %3378 = vmatpush1.bf16.msra.mxu0 %v3232
    %3379 = vmatprep.subr.bf16.mxu0 %v3237
    %3380 = vmatpush1.bf16.msra.mxu0 %v3236
    %3381 = vmatprep.subr.bf16.mxu0 %v3241
    %3382 = vmatpush1.bf16.msra.mxu0 %v3240
    %3383 = vmatprep.subr.bf16.mxu0 %v3245
    %3384 = vmatpush1.bf16.msra.mxu0 %v3244
    %3385 = vmatprep.subr.bf16.mxu0 %v3249
    %3386 = vmatpush1.bf16.msra.mxu0 %v3248
    %3387 = vmatprep.mubr.bf16.mxu0 %v2929
    %3388 = vmatmul.mubr.bf16.gmra.mrb[0].mxu0 %v2928
    %v3389 = vpop.f32.mrb[0].mxu0
    %v3390 = vadd.f32 %v407, %v3389
    %v3391 = vpop.f32.mrb[0].mxu0
    %v3392 = vadd.f32 %v411, %v3391
    %v3393 = vpop.f32.mrb[0].mxu0
    %v3394 = vpop.f32.mrb[0].mxu0
    %3395 = vdwg.mxu0
    %v3396 = vxor.u32 %v3349, 2147483648
    %v3397 = vmul.f32 %v3396, 1.442695
    %v3398 = vpow.pop %v3397
    %v3399 = vadd.f32 %v3398, 1.0
    %v3400 = vrcp.pop %v3399
    %v3401 = vmul.f32 1.0, %v3400
    %v3402 = vxor.u32 %v3351, 2147483648
    %v3403 = vmul.f32 %v3402, 1.442695
    %v3404 = vpow.pop %v3403
    %v3405 = vadd.f32 %v3404, 1.0
    %v3406 = vrcp.pop %v3405
    %v3407 = vmul.f32 1.0, %v3406
    %v3408 = vtanh.pop %v3390
    %v3409 = vxor.u32 %v3392, 2147483648
    %v3410 = vmul.f32 %v3409, 1.442695
    %v3411 = vpow.pop %v3410
    %v3412 = vadd.f32 %v3411, 1.0
    %v3413 = vrcp.pop %v3412
    %v3414 = vmul.f32 1.0, %v3413
    %v3415 = vmul.f32 %v3407, %v2925
    %v3416 = vmul.f32 %v3401, %v3408
    %v3417 = vadd.f32 %v3415, %v3416
    %v3418 = vtanh.pop %v3417
    %v3419 = vmul.f32 %v3414, %v3418
    %v3420 = vld [vmem:[#allocation5] sm:$0xff]
    %v3421 = vld [vmem:[#allocation5 + $0x8] sm:$0xff]
    %v3422 = vld [vmem:[#allocation5 + $0x10] sm:$0xff]
    %v3423 = vld [vmem:[#allocation5 + $0x18] sm:$0xff]
    %v3424 = vld [vmem:[#allocation5 + $0x20] sm:$0xff]
    %v3425 = vld [vmem:[#allocation5 + $0x28] sm:$0xff]
    %v3426 = vld [vmem:[#allocation5 + $0x30] sm:$0xff]
    %v3427 = vld [vmem:[#allocation5 + $0x38] sm:$0xff]
    %v3428 = vld [vmem:[#allocation5 + $0x40] sm:$0xff]
    %v3429 = vld [vmem:[#allocation5 + $0x48] sm:$0xff]
    %v3430 = vld [vmem:[#allocation5 + $0x50] sm:$0xff]
    %v3431 = vld [vmem:[#allocation5 + $0x58] sm:$0xff]
    %v3432 = vld [vmem:[#allocation5 + $0x60] sm:$0xff]
    %v3433 = vld [vmem:[#allocation5 + $0x68] sm:$0xff]
    %v3434 = vld [vmem:[#allocation5 + $0x70] sm:$0xff]
    %v3435 = vld [vmem:[#allocation5 + $0x78] sm:$0xff]
    %v3436 = vld [vmem:[%s6] sm:$0x1]
    %v3438 = vlaneseq
    %v3439 = vshrl.u32 %v3438, 7
    %v3440 = vsub.s32 0, %v3439
    %v3441 = vrot.slane %v3436, %v3440
    %3443 = vmatprep.subr.mxu0 0.0
    %3444 = vmatpush1.msra.mxu0 %v3420
    %3445 = vmatprep.subr.mxu0 0.0
    %3446 = vmatpush1.msra.mxu0 %v3421
    %3447 = vmatprep.subr.mxu0 0.0
    %3448 = vmatpush1.msra.mxu0 %v3422
    %3449 = vmatprep.subr.mxu0 0.0
    %3450 = vmatpush1.msra.mxu0 %v3423
    %3451 = vmatprep.subr.mxu0 0.0
    %3452 = vmatpush1.msra.mxu0 %v3424
    %3453 = vmatprep.subr.mxu0 0.0
    %3454 = vmatpush1.msra.mxu0 %v3425
    %3455 = vmatprep.subr.mxu0 0.0
    %3456 = vmatpush1.msra.mxu0 %v3426
    %3457 = vmatprep.subr.mxu0 0.0
    %3458 = vmatpush1.msra.mxu0 %v3427
    %3459 = vmatprep.subr.mxu0 0.0
    %3460 = vmatpush1.msra.mxu0 %v3428
    %3461 = vmatprep.subr.mxu0 0.0
    %3462 = vmatpush1.msra.mxu0 %v3429
    %3463 = vmatprep.subr.mxu0 0.0
    %3464 = vmatpush1.msra.mxu0 %v3430
    %3465 = vmatprep.subr.mxu0 0.0
    %3466 = vmatpush1.msra.mxu0 %v3431
    %3467 = vmatprep.subr.mxu0 0.0
    %3468 = vmatpush1.msra.mxu0 %v3432
    %3469 = vmatprep.subr.mxu0 0.0
    %3470 = vmatpush1.msra.mxu0 %v3433
    %3471 = vmatprep.subr.mxu0 0.0
    %3472 = vmatpush1.msra.mxu0 %v3434
    %3473 = vmatprep.subr.mxu0 0.0
    %3474 = vmatpush1.msra.mxu0 %v3435
    %3475 = vmatprep.subr.mxu0 0.0
    %3476 = vmatpush1.msra.mxu0 0.0
    %3477 = vmatprep.subr.mxu0 0.0
    %3478 = vmatpush1.msra.mxu0 0.0
    %3479 = vmatprep.subr.mxu0 0.0
    %3480 = vmatpush1.msra.mxu0 0.0
    %3481 = vmatprep.subr.mxu0 0.0
    %3482 = vmatpush1.msra.mxu0 0.0
    %3483 = vmatprep.subr.mxu0 0.0
    %3484 = vmatpush1.msra.mxu0 0.0
    %3485 = vmatprep.subr.mxu0 0.0
    %3486 = vmatpush1.msra.mxu0 0.0
    %3487 = vmatprep.subr.mxu0 0.0
    %3488 = vmatpush1.msra.mxu0 0.0
    %3489 = vmatprep.subr.mxu0 0.0
    %3490 = vmatpush1.msra.mxu0 0.0
    %3491 = vmatprep.subr.mxu0 0.0
    %3492 = vmatpush1.msra.mxu0 0.0
    %3493 = vmatprep.subr.mxu0 0.0
    %3494 = vmatpush1.msra.mxu0 0.0
    %3495 = vmatprep.subr.mxu0 0.0
    %3496 = vmatpush1.msra.mxu0 0.0
    %3497 = vmatprep.subr.mxu0 0.0
    %3498 = vmatpush1.msra.mxu0 0.0
    %3499 = vmatprep.subr.mxu0 0.0
    %3500 = vmatpush1.msra.mxu0 0.0
    %3501 = vmatprep.subr.mxu0 0.0
    %3502 = vmatpush1.msra.mxu0 0.0
    %3503 = vmatprep.subr.mxu0 0.0
    %3504 = vmatpush1.msra.mxu0 0.0
    %3505 = vmatprep.subr.mxu0 0.0
    %3506 = vmatpush1.msra.mxu0 0.0
    %3507 = vmatprep.mubr.f32.mxu0 0.0
    %3508 = vmatmul.mubr.f32.gmra.mrb[0].mxu0 %v3419
    %v3509 = vpop.f32.mrb[0].mxu0
    %v3510 = vadd.f32 %v3441, %v3509
    %v3511 = vpop.f32.mrb[0].mxu0
    %3512 = vdwg.mxu0
    %3513 = vst [vmem:[%s7] sm:$0x3] %v3510
    // Predicated region
    $region38: #{lstm_model_forward.1} parent=1 // pred_check
      _
    $region39: #{lstm_model_forward.1} parent=1 // pred_check_branch
      %3515 = sbr.rel (0) target = $region41
    $region40: #{lstm_model_forward.1} parent=1 // pred_region
      _
    $region41: #{lstm_model_forward.1} parent=1 // pred_fallthru
      _
    // Predicated region
    $region42: #{lstm_model_forward.1} parent=1 // pred_check
      _
    $region43: #{lstm_model_forward.1} parent=1 // pred_check_branch
      %3517 = sbr.rel (0) target = $region45
    $region44: #{lstm_model_forward.1} parent=1 // pred_region
      _
    $region45: #{lstm_model_forward.1} parent=1 // pred_fallthru
      _
    %3518 = vsyncpa [#allocation4], 1
    %3519 = vsyncpa [#allocation6], 1

</llo_original>
